<compile_context>
chip_gen: v6e
topology: v6e:2x2x1
jax: 0.10.0
libtpu: 0.0.40
codegen_flags: <defaults>
</compile_context>

<pallas_src>
import math
from functools import partial

import jax
import jax.numpy as jnp
from jax.experimental import pallas as pl
from jax.experimental.pallas import tpu as pltpu

BN_EPS = 1e-5
LANE = 128
VMEM_LIMIT_BYTES = 48 * 1024 * 1024

_COMPILER_PARAMS = pltpu.CompilerParams(
    dimension_semantics=("parallel",),
    vmem_limit_bytes=VMEM_LIMIT_BYTES,
)


# ------------------------------- tiling utils --------------------------------
def _round_up(x, m):
    return (x + m - 1) // m * m


def _cdiv(a, b):
    return -(-a // b)


def _max_row_tile():
    """Generation-aware row-tile cap: larger tiles on 128-MiB-VMEM v5e/v6e,
    conservative 1024 on v7x (64 MiB per TensorCore)."""
    try:
        if pltpu.get_tpu_info().vmem_capacity_bytes >= 96 * 1024 * 1024:
            return 2048
    except Exception:
        pass
    return 1024


def _choose_tiling(n, max_tile):
    """Return (tile_n, num_tiles, n_pad).

    Guarantees >= 2 tiles once n >= 16 (v7x megacore), keeps tiles a multiple
    of 8, and pads n up to a tile multiple instead of degrading to tile=8.
    """
    if n <= 8:
        tile = 8
    else:
        cap = min(max_tile, max(8, (n // 2) // 8 * 8))   # >= 2 tiles when n >= 16
        tile = min(cap, _round_up(_cdiv(n, _cdiv(n, cap)), 8))
    n_pad = _round_up(n, tile)
    return tile, n_pad // tile, n_pad


# ----------------------------- Pallas kernels --------------------------------
def _packed_stats(y_f32, *, n_rows, tile_n, need_mask):
    """Pack per-tile BatchNorm partials into one (1, 8, fout) block.

    sublane 0 = sum(y), sublane 1 = sum(y*y), remaining sublanes zero.
    Rows >= n_rows (padding) are masked out of the statistics.
    """
    if need_mask:
        rows = (pl.program_id(0) * tile_n
                + jax.lax.broadcasted_iota(jnp.int32, (tile_n, 1), 0))
        y_f32 = jnp.where(rows < n_rows, y_f32, 0.0)
    s = jnp.sum(y_f32, axis=0, keepdims=True)            # (1, fout)
    ss = jnp.sum(y_f32 * y_f32, axis=0, keepdims=True)   # (1, fout), same pass
    fout = y_f32.shape[-1]
    sub = jax.lax.broadcasted_iota(jnp.int32, (8, fout), 0)
    packed = jnp.where(sub == 0, s, jnp.where(sub == 1, ss, 0.0))
    return packed[None]                                   # (1, 8, fout)


def _l0_stats_kernel(x_ref, w_ref, b_ref, stats_ref, *, n_rows, tile_n, need_mask):
    """Layer-0 statistics pass: h0 = relu(x @ W0 + b0); emit stats only."""
    h = jnp.dot(x_ref[...], w_ref[...], preferred_element_type=jnp.float32)
    h = jnp.maximum(h + b_ref[...], 0.0)
    stats_ref[...] = _packed_stats(h, n_rows=n_rows, tile_n=tile_n,
                                   need_mask=need_mask)


def _fused_l0_l1_kernel(x_ref, w0_ref, b0_ref, sc0_ref, sh0_ref, w1_ref, b1_ref,
                        y_ref, stats_ref, *, n_rows, tile_n, need_mask):
    """Recompute layer 0, apply BN0 affine, layer 1 (Linear+ReLU), emit h1 + stats."""
    h0 = jnp.dot(x_ref[...], w0_ref[...], preferred_element_type=jnp.float32)
    h0 = jnp.maximum(h0 + b0_ref[...], 0.0)
    h0n = (h0 * sc0_ref[...] + sh0_ref[...]).astype(jnp.bfloat16)
    h1 = jnp.dot(h0n, w1_ref[...], preferred_element_type=jnp.float32)
    h1 = jnp.maximum(h1 + b1_ref[...], 0.0)
    y_ref[...] = h1.astype(y_ref.dtype)
    stats_ref[...] = _packed_stats(h1, n_rows=n_rows, tile_n=tile_n,
                                   need_mask=need_mask)


def _bn_linear_relu_stats_kernel(x_ref, sc_ref, sh_ref, w_ref, b_ref,
                                 y_ref, stats_ref, *, n_rows, tile_n, need_mask):
    """Apply previous layer's BN affine to the input tile (f32), then Linear+ReLU."""
    xn = (x_ref[...].astype(jnp.float32) * sc_ref[...] + sh_ref[...]).astype(jnp.bfloat16)
    h = jnp.dot(xn, w_ref[...], preferred_element_type=jnp.float32)
    h = jnp.maximum(h + b_ref[...], 0.0)
    y_ref[...] = h.astype(y_ref.dtype)
    stats_ref[...] = _packed_stats(h, n_rows=n_rows, tile_n=tile_n,
                                   need_mask=need_mask)


def _bn_linear_kernel(x_ref, sc_ref, sh_ref, w_ref, b_ref, o_ref):
    """BN affine on input tile + final Linear (lane-dense padded output)."""
    xn = (x_ref[...].astype(jnp.float32) * sc_ref[...] + sh_ref[...]).astype(jnp.bfloat16)
    h = jnp.dot(xn, w_ref[...], preferred_element_type=jnp.float32)
    o_ref[...] = (h + b_ref[...]).astype(o_ref.dtype)


# ------------------------------ layer wrappers --------------------------------
def _layer0_stats(x, w, b, n_rows, tile_n, num_tiles):
    fin, fout = w.shape
    need_mask = num_tiles * tile_n != n_rows
    return pl.pallas_call(
        partial(_l0_stats_kernel, n_rows=n_rows, tile_n=tile_n, need_mask=need_mask),
        out_shape=jax.ShapeDtypeStruct((num_tiles, 8, fout), jnp.float32),
        grid=(num_tiles,),
        in_specs=[
            pl.BlockSpec((tile_n, fin), lambda i: (i, 0)),   # row-tiled input
            pl.BlockSpec((fin, fout), lambda i: (0, 0)),     # resident weights
            pl.BlockSpec((1, fout), lambda i: (0, 0)),       # resident bias
        ],
        out_specs=pl.BlockSpec((1, 8, fout), lambda i: (i, 0, 0)),
        compiler_params=_COMPILER_PARAMS,
    )(x, w, b)


def _fused_l0_l1(x, w0, b0, sc0, sh0, w1, b1, n_rows, tile_n, num_tiles):
    n_pad = num_tiles * tile_n
    fin, f0 = w0.shape
    f1 = w1.shape[1]
    need_mask = n_pad != n_rows
    return pl.pallas_call(
        partial(_fused_l0_l1_kernel, n_rows=n_rows, tile_n=tile_n, need_mask=need_mask),
        out_shape=(
            jax.ShapeDtypeStruct((n_pad, f1), jnp.bfloat16),
            jax.ShapeDtypeStruct((num_tiles, 8, f1), jnp.float32),
        ),
        grid=(num_tiles,),
        in_specs=[
            pl.BlockSpec((tile_n, fin), lambda i: (i, 0)),
            pl.BlockSpec((fin, f0), lambda i: (0, 0)),
            pl.BlockSpec((1, f0), lambda i: (0, 0)),
            pl.BlockSpec((1, f0), lambda i: (0, 0)),
            pl.BlockSpec((1, f0), lambda i: (0, 0)),
            pl.BlockSpec((f0, f1), lambda i: (0, 0)),
            pl.BlockSpec((1, f1), lambda i: (0, 0)),
        ],
        out_specs=(
            pl.BlockSpec((tile_n, f1), lambda i: (i, 0)),
            pl.BlockSpec((1, 8, f1), lambda i: (i, 0, 0)),
        ),
        compiler_params=_COMPILER_PARAMS,
    )(x, w0, b0, sc0, sh0, w1, b1)


def _bn_hidden(x, sc, sh, w, b, n_rows, tile_n, num_tiles):
    n_pad = num_tiles * tile_n
    fin, fout = w.shape
    need_mask = n_pad != n_rows
    return pl.pallas_call(
        partial(_bn_linear_relu_stats_kernel, n_rows=n_rows, tile_n=tile_n,
                need_mask=need_mask),
        out_shape=(
            jax.ShapeDtypeStruct((n_pad, fout), jnp.bfloat16),
            jax.ShapeDtypeStruct((num_tiles, 8, fout), jnp.float32),
        ),
        grid=(num_tiles,),
        in_specs=[
            pl.BlockSpec((tile_n, fin), lambda i: (i, 0)),
            pl.BlockSpec((1, fin), lambda i: (0, 0)),
            pl.BlockSpec((1, fin), lambda i: (0, 0)),
            pl.BlockSpec((fin, fout), lambda i: (0, 0)),
            pl.BlockSpec((1, fout), lambda i: (0, 0)),
        ],
        out_specs=(
            pl.BlockSpec((tile_n, fout), lambda i: (i, 0)),
            pl.BlockSpec((1, 8, fout), lambda i: (i, 0, 0)),
        ),
        compiler_params=_COMPILER_PARAMS,
    )(x, sc, sh, w, b)


def _bn_final(x, sc, sh, w, b, tile_n, num_tiles):
    n_pad = num_tiles * tile_n
    fin, fout = w.shape
    return pl.pallas_call(
        _bn_linear_kernel,
        out_shape=jax.ShapeDtypeStruct((n_pad, fout), jnp.float32),
        grid=(num_tiles,),
        in_specs=[
            pl.BlockSpec((tile_n, fin), lambda i: (i, 0)),
            pl.BlockSpec((1, fin), lambda i: (0, 0)),
            pl.BlockSpec((1, fin), lambda i: (0, 0)),
            pl.BlockSpec((fin, fout), lambda i: (0, 0)),
            pl.BlockSpec((1, fout), lambda i: (0, 0)),
        ],
        out_specs=pl.BlockSpec((tile_n, fout), lambda i: (i, 0)),
        compiler_params=_COMPILER_PARAMS,
    )(x, sc, sh, w, b)


def _bn_affine(stats, n_rows, gamma, beta):
    """Combine per-tile partials into GLOBAL batch stats -> (scale, shift)."""
    s = jnp.sum(stats[:, 0, :], axis=0)
    ss = jnp.sum(stats[:, 1, :], axis=0)
    mean = s / n_rows
    var = jnp.maximum(ss / n_rows - mean * mean, 0.0)   # biased batch variance
    # TODO(synk): E[y^2]-E[y]^2 in f32 can lose precision for very large
    # batches of post-ReLU activations; a two-pass/Welford scheme is safer.
    scale = gamma * jax.lax.rsqrt(var + BN_EPS)
    shift = beta - mean * scale
    return scale.reshape(1, -1), shift.reshape(1, -1)


# --------------------------- parameter handling -------------------------------
def init_params(key, input_dim, output_dim):
    """Deterministic PyTorch-style init, f32, weights stored (in, out)."""
    dims = [input_dim, 512, 256, 128, 64, output_dim]
    params = []
    for i in range(5):
        fan_in, fan_out = dims[i], dims[i + 1]
        key, kw, kb = jax.random.split(key, 3)
        bound = 1.0 / math.sqrt(fan_in)
        w = jax.random.uniform(kw, (fan_in, fan_out), jnp.float32, -bound, bound)
        b = jax.random.uniform(kb, (fan_out,), jnp.float32, -bound, bound)
        if i < 4:
            gamma = jnp.ones((fan_out,), jnp.float32)    # BatchNorm default init
            beta = jnp.zeros((fan_out,), jnp.float32)
            params.append((w, b, gamma, beta))
        else:
            params.append((w, b))
    return params


def prepare_params(params, input_dim, output_dim):
    """One-time device prep: cast weights to bf16, lane-pad layer-0 rows
    (input 16 -> 128) and final-layer columns/bias (4 -> 128)."""
    in_pad = _round_up(input_dim, LANE)
    out_pad = _round_up(output_dim, LANE)
    prepped = []
    for i, p in enumerate(params):
        if i < 4:
            w, b, g, be = p
        else:
            w, b = p
        if i == 0:
            w = jnp.pad(w, ((0, in_pad - w.shape[0]), (0, 0)))
        if i == 4:
            w = jnp.pad(w, ((0, 0), (0, out_pad - w.shape[1])))
            b = jnp.pad(b, (0, out_pad - b.shape[0]))
        w = w.astype(jnp.bfloat16)
        b = b.reshape(1, -1).astype(jnp.float32)
        if i < 4:
            prepped.append((w, b, g.astype(jnp.float32), be.astype(jnp.float32)))
        else:
            prepped.append((w, b))
    return prepped


# ------------------------------ forward glue ----------------------------------
def latent_guidance_forward(x, t, params, *, num_encodings, output_dim):
    # pos_encoding = [sin(2*pi*t*2^-l) for l in range(num_encodings)], cat last dim
    pos = [jnp.sin(2.0 * math.pi * t * (2.0 ** (-l))) for l in range(num_encodings)]
    h = jnp.concatenate([x, t] + pos, axis=-1)
    # x.flatten(start_dim=0, end_dim=3)
    n = h.shape[0] * h.shape[1] * h.shape[2] * h.shape[3]
    h = h.reshape(n, h.shape[-1]).astype(jnp.float32)
    # lane-dense input: zero-pad features (16 -> 128), bf16 activations
    f = h.shape[-1]
    h = jnp.pad(h, ((0, 0), (0, _round_up(f, LANE) - f))).astype(jnp.bfloat16)

    tile_n, num_tiles, n_pad = _choose_tiling(n, _max_row_tile())
    if n_pad != n:
        h = jnp.pad(h, ((0, n_pad - n), (0, 0)))   # padded rows masked in stats

    (w0, b0, g0, be0), (w1, b1, g1, be1), (w2, b2, g2, be2), (w3, b3, g3, be3), \
        (w4, b4) = params

    # Pass 1: layer-0 statistics only — h0 never hits HBM.
    stats0 = _layer0_stats(h, w0, b0, n, tile_n, num_tiles)
    sc0, sh0 = _bn_affine(stats0, n, g0, be0)

    # Pass 2: recompute layer 0, apply BN0, layer 1 (Linear+ReLU), stats of h1.
    h1, stats1 = _fused_l0_l1(h, w0, b0, sc0, sh0, w1, b1, n, tile_n, num_tiles)
    sc1, sh1 = _bn_affine(stats1, n, g1, be1)

    # Layers 2 and 3: BN(prev) applied in-kernel + Linear + ReLU + stats.
    h2, stats2 = _bn_hidden(h1, sc1, sh1, w2, b2, n, tile_n, num_tiles)
    sc2, sh2 = _bn_affine(stats2, n, g2, be2)

    h3, stats3 = _bn_hidden(h2, sc2, sh2, w3, b3, n, tile_n, num_tiles)
    sc3, sh3 = _bn_affine(stats3, n, g3, be3)

    # Final Linear (output columns lane-padded 4 -> 128).
    out = _bn_final(h3, sc3, sh3, w4, b4, tile_n, num_tiles)
    return out[:n, :output_dim]


# ------------------------- pure-JAX f32 reference -----------------------------
def reference_forward(x, t, params, *, num_encodings):
    pos = [jnp.sin(2.0 * math.pi * t * (2.0 ** (-l))) for l in range(num_encodings)]
    h = jnp.concatenate([x, t] + pos, axis=-1)
    n = h.shape[0] * h.shape[1] * h.shape[2] * h.shape[3]
    h = h.reshape(n, h.shape[-1]).astype(jnp.float32)
    for i in range(4):
        w, b, g, be = params[i]
        h = jnp.maximum(h @ w + b, 0.0)
        mean = jnp.mean(h, axis=0)
        var = jnp.mean((h - mean) ** 2, axis=0)          # biased, train-mode BN
        h = (h - mean) / jnp.sqrt(var + BN_EPS) * g + be
    w, b = params[4]
    return h @ w + b


# ----------------------------------- main --------------------------------------
if __name__ == "__main__":
    # Shapes consistent with the module's forward():
    #   x: (B, D1, D2, D3, Cx), t: (B, D1, D2, D3, 1)
    B, D1, D2, D3 = 2, 4, 4, 4
    Cx, Ct = 6, 1
    num_encodings = 9
    output_dim = 4
    input_dim = Cx + Ct + Ct * num_encodings    # = 16, matches nn.Linear(input_dim, 512)

    key = jax.random.PRNGKey(0)
    kx, kt, kp = jax.random.split(key, 3)
    x = jax.random.normal(kx, (B, D1, D2, D3, Cx), jnp.float32)
    t = jax.random.uniform(kt, (B, D1, D2, D3, Ct), jnp.float32)

    params_f32 = init_params(kp, input_dim, output_dim)
    params_dev = prepare_params(params_f32, input_dim, output_dim)

    fwd = jax.jit(partial(latent_guidance_forward,
                          num_encodings=num_encodings, output_dim=output_dim))
    out = fwd(x, t, params_dev)
    jax.block_until_ready(out)

    n = B * D1 * D2 * D3
    assert out.shape == (n, output_dim), out.shape
    assert bool(jnp.all(jnp.isfinite(out)))

    ref = reference_forward(x, t, params_f32, num_encodings=num_encodings)
    assert bool(jnp.allclose(out, ref, rtol=1e-1, atol=1e-1)), (
        float(jnp.max(jnp.abs(out - ref))))
    print("KERNEL_OK")
</pallas_src>

<mosaic_0001>
module attributes {stable_mosaic.version = 11 : i64} {
  func.func @_l0_stats_kernel(%arg0: i32, %arg1: memref<64x128xbf16, #tpu.memory_space<vmem>>, %arg2: memref<128x512xbf16, #tpu.memory_space<vmem>>, %arg3: memref<1x512xf32, #tpu.memory_space<vmem>>, %arg4: memref<1x8x512xf32, #tpu.memory_space<vmem>>) attributes {dimension_semantics = [#tpu.dimension_semantics<parallel>], iteration_bounds = array<i64: 2>, scalar_prefetch = 0 : i64, scratch_operands = 0 : i64, tpu.core_type = #tpu.core_type<tc>, window_params = [{transform_indices = @transform_0, window_bounds = array<i64: 64, 128>}, {pipeline_mode = #tpu.pipeline_mode<synchronous>, transform_indices = @transform_1, window_bounds = array<i64: 128, 512>}, {pipeline_mode = #tpu.pipeline_mode<synchronous>, transform_indices = @transform_2, window_bounds = array<i64: 1, 512>}, {transform_indices = @transform_3, window_bounds = array<i64: 1, 8, 512>}]} {
    %c0 = arith.constant 0 : index
    %c0_0 = arith.constant 0 : index
    %0 = vector.load %arg1[%c0, %c0_0] : memref<64x128xbf16, #tpu.memory_space<vmem>>, vector<64x128xbf16>
    %c0_1 = arith.constant 0 : index
    %c0_2 = arith.constant 0 : index
    %1 = vector.load %arg2[%c0_1, %c0_2] : memref<128x512xbf16, #tpu.memory_space<vmem>>, vector<128x512xbf16>
    %cst = arith.constant dense<0.000000e+00> : vector<64x512xf32>
    %2 = tpu.matmul %0, %1, %cst {dimension_numbers = #tpu.dot_dimension_numbers<[1], [0], [0], [1], [0, 0, 1, 1], [], []>} : vector<64x128xbf16>, vector<128x512xbf16>, vector<64x512xf32> -> vector<64x512xf32>
    %c0_3 = arith.constant 0 : index
    %c0_4 = arith.constant 0 : index
    %3 = vector.load %arg3[%c0_3, %c0_4] : memref<1x512xf32, #tpu.memory_space<vmem>>, vector<1x512xf32>
    %4 = vector.broadcast %3 : vector<1x512xf32> to vector<64x512xf32>
    %5 = arith.addf %2, %4 : vector<64x512xf32>
    %cst_5 = arith.constant 0.000000e+00 : f32
    %6 = vector.broadcast %cst_5 : f32 to vector<64x512xf32>
    %7 = arith.maximumf %5, %6 : vector<64x512xf32>
    %cst_6 = arith.constant dense<0.000000e+00> : vector<512xf32>
    %8 = vector.multi_reduction <add>, %7, %cst_6 [0] : vector<64x512xf32> to vector<512xf32>
    %9 = vector.shape_cast %8 : vector<512xf32> to vector<1x512xf32>
    %10 = arith.mulf %7, %7 : vector<64x512xf32>
    %cst_7 = arith.constant dense<0.000000e+00> : vector<512xf32>
    %11 = vector.multi_reduction <add>, %10, %cst_7 [0] : vector<64x512xf32> to vector<512xf32>
    %12 = vector.shape_cast %11 : vector<512xf32> to vector<1x512xf32>
    %13 = tpu.iota {dimensions = array<i32: 0>} : vector<8x512xi32>
    %c0_i32 = arith.constant 0 : i32
    %14 = vector.broadcast %c0_i32 : i32 to vector<8x512xi32>
    %15 = arith.cmpi eq, %13, %14 : vector<8x512xi32>
    %c1_i32 = arith.constant 1 : i32
    %16 = vector.broadcast %c1_i32 : i32 to vector<8x512xi32>
    %17 = arith.cmpi eq, %13, %16 : vector<8x512xi32>
    %cst_8 = arith.constant 0.000000e+00 : f32
    %18 = vector.shape_cast %12 : vector<1x512xf32> to vector<1x512xf32>
    %19 = vector.broadcast %18 : vector<1x512xf32> to vector<8x512xf32>
    %20 = vector.broadcast %cst_8 : f32 to vector<8x512xf32>
    %21 = arith.select %17, %19, %20 : vector<8x512xi1>, vector<8x512xf32>
    %22 = vector.shape_cast %9 : vector<1x512xf32> to vector<1x512xf32>
    %23 = vector.broadcast %22 : vector<1x512xf32> to vector<8x512xf32>
    %24 = arith.select %15, %23, %21 : vector<8x512xi1>, vector<8x512xf32>
    %25 = vector.shape_cast %24 : vector<8x512xf32> to vector<1x8x512xf32>
    %c0_9 = arith.constant 0 : index
    %c0_10 = arith.constant 0 : index
    %c0_11 = arith.constant 0 : index
    %26 = vector.load %arg4[%c0_9, %c0_10, %c0_11] : memref<1x8x512xf32, #tpu.memory_space<vmem>>, vector<1x8x512xf32>
    tpu.vector_store %arg4[%c0_9, %c0_10, %c0_11], %25 {strides = array<i32>} : memref<1x8x512xf32, #tpu.memory_space<vmem>>, vector<1x8x512xf32>,
    return
  }
  func.func @transform_0(%arg0: i32) -> (i32, i32) {
    %c0_i32 = arith.constant 0 : i32
    %c0_i32_0 = arith.constant 0 : i32
    return %arg0, %c0_i32 : i32, i32
  }
  func.func @transform_1(%arg0: i32) -> (i32, i32) {
    %c0_i32 = arith.constant 0 : i32
    %c0_i32_0 = arith.constant 0 : i32
    %c0_i32_1 = arith.constant 0 : i32
    return %c0_i32, %c0_i32_0 : i32, i32
  }
  func.func @transform_2(%arg0: i32) -> (i32, i32) {
    %c0_i32 = arith.constant 0 : i32
    %c0_i32_0 = arith.constant 0 : i32
    %c0_i32_1 = arith.constant 0 : i32
    return %c0_i32, %c0_i32_0 : i32, i32
  }
  func.func @transform_3(%arg0: i32) -> (i32, i32, i32) {
    %c0_i32 = arith.constant 0 : i32
    %c0_i32_0 = arith.constant 0 : i32
    %c0_i32_1 = arith.constant 0 : i32
    return %arg0, %c0_i32, %c0_i32_0 : i32, i32, i32
  }
}

module attributes {stable_mosaic.version = 11 : i64} {
  func.func @_fused_l0_l1_kernel(%arg0: i32, %arg1: memref<64x128xbf16, #tpu.memory_space<vmem>>, %arg2: memref<128x512xbf16, #tpu.memory_space<vmem>>, %arg3: memref<1x512xf32, #tpu.memory_space<vmem>>, %arg4: memref<1x512xf32, #tpu.memory_space<vmem>>, %arg5: memref<1x512xf32, #tpu.memory_space<vmem>>, %arg6: memref<512x256xbf16, #tpu.memory_space<vmem>>, %arg7: memref<1x256xf32, #tpu.memory_space<vmem>>, %arg8: memref<64x256xbf16, #tpu.memory_space<vmem>>, %arg9: memref<1x8x256xf32, #tpu.memory_space<vmem>>) attributes {dimension_semantics = [#tpu.dimension_semantics<parallel>], iteration_bounds = array<i64: 2>, scalar_prefetch = 0 : i64, scratch_operands = 0 : i64, tpu.core_type = #tpu.core_type<tc>, window_params = [{transform_indices = @transform_0, window_bounds = array<i64: 64, 128>}, {pipeline_mode = #tpu.pipeline_mode<synchronous>, transform_indices = @transform_1, window_bounds = array<i64: 128, 512>}, {pipeline_mode = #tpu.pipeline_mode<synchronous>, transform_indices = @transform_2, window_bounds = array<i64: 1, 512>}, {pipeline_mode = #tpu.pipeline_mode<synchronous>, transform_indices = @transform_3, window_bounds = array<i64: 1, 512>}, {pipeline_mode = #tpu.pipeline_mode<synchronous>, transform_indices = @transform_4, window_bounds = array<i64: 1, 512>}, {pipeline_mode = #tpu.pipeline_mode<synchronous>, transform_indices = @transform_5, window_bounds = array<i64: 512, 256>}, {pipeline_mode = #tpu.pipeline_mode<synchronous>, transform_indices = @transform_6, window_bounds = array<i64: 1, 256>}, {transform_indices = @transform_7, window_bounds = array<i64: 64, 256>}, {transform_indices = @transform_8, window_bounds = array<i64: 1, 8, 256>}]} {
    %c0 = arith.constant 0 : index
    %c0_0 = arith.constant 0 : index
    %0 = vector.load %arg1[%c0, %c0_0] : memref<64x128xbf16, #tpu.memory_space<vmem>>, vector<64x128xbf16>
    %c0_1 = arith.constant 0 : index
    %c0_2 = arith.constant 0 : index
    %1 = vector.load %arg2[%c0_1, %c0_2] : memref<128x512xbf16, #tpu.memory_space<vmem>>, vector<128x512xbf16>
    %cst = arith.constant dense<0.000000e+00> : vector<64x512xf32>
    %2 = tpu.matmul %0, %1, %cst {dimension_numbers = #tpu.dot_dimension_numbers<[1], [0], [0], [1], [0, 0, 1, 1], [], []>} : vector<64x128xbf16>, vector<128x512xbf16>, vector<64x512xf32> -> vector<64x512xf32>
    %c0_3 = arith.constant 0 : index
    %c0_4 = arith.constant 0 : index
    %3 = vector.load %arg3[%c0_3, %c0_4] : memref<1x512xf32, #tpu.memory_space<vmem>>, vector<1x512xf32>
    %4 = vector.broadcast %3 : vector<1x512xf32> to vector<64x512xf32>
    %5 = arith.addf %2, %4 : vector<64x512xf32>
    %cst_5 = arith.constant 0.000000e+00 : f32
    %6 = vector.broadcast %cst_5 : f32 to vector<64x512xf32>
    %7 = arith.maximumf %5, %6 : vector<64x512xf32>
    %c0_6 = arith.constant 0 : index
    %c0_7 = arith.constant 0 : index
    %8 = vector.load %arg4[%c0_6, %c0_7] : memref<1x512xf32, #tpu.memory_space<vmem>>, vector<1x512xf32>
    %9 = vector.broadcast %8 : vector<1x512xf32> to vector<64x512xf32>
    %10 = arith.mulf %7, %9 : vector<64x512xf32>
    %c0_8 = arith.constant 0 : index
    %c0_9 = arith.constant 0 : index
    %11 = vector.load %arg5[%c0_8, %c0_9] : memref<1x512xf32, #tpu.memory_space<vmem>>, vector<1x512xf32>
    %12 = vector.broadcast %11 : vector<1x512xf32> to vector<64x512xf32>
    %13 = arith.addf %10, %12 : vector<64x512xf32>
    %14 = arith.truncf %13 : vector<64x512xf32> to vector<64x512xbf16>
    %c0_10 = arith.constant 0 : index
    %c0_11 = arith.constant 0 : index
    %15 = vector.load %arg6[%c0_10, %c0_11] : memref<512x256xbf16, #tpu.memory_space<vmem>>, vector<512x256xbf16>
    %cst_12 = arith.constant dense<0.000000e+00> : vector<64x256xf32>
    %16 = tpu.matmul %14, %15, %cst_12 {dimension_numbers = #tpu.dot_dimension_numbers<[1], [0], [0], [1], [0, 0, 1, 1], [], []>} : vector<64x512xbf16>, vector<512x256xbf16>, vector<64x256xf32> -> vector<64x256xf32>
    %c0_13 = arith.constant 0 : index
    %c0_14 = arith.constant 0 : index
    %17 = vector.load %arg7[%c0_13, %c0_14] : memref<1x256xf32, #tpu.memory_space<vmem>>, vector<1x256xf32>
    %18 = vector.broadcast %17 : vector<1x256xf32> to vector<64x256xf32>
    %19 = arith.addf %16, %18 : vector<64x256xf32>
    %cst_15 = arith.constant 0.000000e+00 : f32
    %20 = vector.broadcast %cst_15 : f32 to vector<64x256xf32>
    %21 = arith.maximumf %19, %20 : vector<64x256xf32>
    %22 = arith.truncf %21 : vector<64x256xf32> to vector<64x256xbf16>
    %c0_16 = arith.constant 0 : index
    %c0_17 = arith.constant 0 : index
    %23 = vector.load %arg8[%c0_16, %c0_17] : memref<64x256xbf16, #tpu.memory_space<vmem>>, vector<64x256xbf16>
    tpu.vector_store %arg8[%c0_16, %c0_17], %22 {strides = array<i32>} : memref<64x256xbf16, #tpu.memory_space<vmem>>, vector<64x256xbf16>,
    %cst_18 = arith.constant dense<0.000000e+00> : vector<256xf32>
    %24 = vector.multi_reduction <add>, %21, %cst_18 [0] : vector<64x256xf32> to vector<256xf32>
    %25 = vector.shape_cast %24 : vector<256xf32> to vector<1x256xf32>
    %26 = arith.mulf %21, %21 : vector<64x256xf32>
    %cst_19 = arith.constant dense<0.000000e+00> : vector<256xf32>
    %27 = vector.multi_reduction <add>, %26, %cst_19 [0] : vector<64x256xf32> to vector<256xf32>
    %28 = vector.shape_cast %27 : vector<256xf32> to vector<1x256xf32>
    %29 = tpu.iota {dimensions = array<i32: 0>} : vector<8x256xi32>
    %c0_i32 = arith.constant 0 : i32
    %30 = vector.broadcast %c0_i32 : i32 to vector<8x256xi32>
    %31 = arith.cmpi eq, %29, %30 : vector<8x256xi32>
    %c1_i32 = arith.constant 1 : i32
    %32 = vector.broadcast %c1_i32 : i32 to vector<8x256xi32>
    %33 = arith.cmpi eq, %29, %32 : vector<8x256xi32>
    %cst_20 = arith.constant 0.000000e+00 : f32
    %34 = vector.shape_cast %28 : vector<1x256xf32> to vector<1x256xf32>
    %35 = vector.broadcast %34 : vector<1x256xf32> to vector<8x256xf32>
    %36 = vector.broadcast %cst_20 : f32 to vector<8x256xf32>
    %37 = arith.select %33, %35, %36 : vector<8x256xi1>, vector<8x256xf32>
    %38 = vector.shape_cast %25 : vector<1x256xf32> to vector<1x256xf32>
    %39 = vector.broadcast %38 : vector<1x256xf32> to vector<8x256xf32>
    %40 = arith.select %31, %39, %37 : vector<8x256xi1>, vector<8x256xf32>
    %41 = vector.shape_cast %40 : vector<8x256xf32> to vector<1x8x256xf32>
    %c0_21 = arith.constant 0 : index
    %c0_22 = arith.constant 0 : index
    %c0_23 = arith.constant 0 : index
    %42 = vector.load %arg9[%c0_21, %c0_22, %c0_23] : memref<1x8x256xf32, #tpu.memory_space<vmem>>, vector<1x8x256xf32>
    tpu.vector_store %arg9[%c0_21, %c0_22, %c0_23], %41 {strides = array<i32>} : memref<1x8x256xf32, #tpu.memory_space<vmem>>, vector<1x8x256xf32>,
    return
  }
  func.func @transform_0(%arg0: i32) -> (i32, i32) {
    %c0_i32 = arith.constant 0 : i32
    %c0_i32_0 = arith.constant 0 : i32
    return %arg0, %c0_i32 : i32, i32
  }
  func.func @transform_1(%arg0: i32) -> (i32, i32) {
    %c0_i32 = arith.constant 0 : i32
    %c0_i32_0 = arith.constant 0 : i32
    %c0_i32_1 = arith.constant 0 : i32
    return %c0_i32, %c0_i32_0 : i32, i32
  }
  func.func @transform_2(%arg0: i32) -> (i32, i32) {
    %c0_i32 = arith.constant 0 : i32
    %c0_i32_0 = arith.constant 0 : i32
    %c0_i32_1 = arith.constant 0 : i32
    return %c0_i32, %c0_i32_0 : i32, i32
  }
  func.func @transform_3(%arg0: i32) -> (i32, i32) {
    %c0_i32 = arith.constant 0 : i32
    %c0_i32_0 = arith.constant 0 : i32
    %c0_i32_1 = arith.constant 0 : i32
    return %c0_i32, %c0_i32_0 : i32, i32
  }
  func.func @transform_4(%arg0: i32) -> (i32, i32) {
    %c0_i32 = arith.constant 0 : i32
    %c0_i32_0 = arith.constant 0 : i32
    %c0_i32_1 = arith.constant 0 : i32
    return %c0_i32, %c0_i32_0 : i32, i32
  }
  func.func @transform_5(%arg0: i32) -> (i32, i32) {
    %c0_i32 = arith.constant 0 : i32
    %c0_i32_0 = arith.constant 0 : i32
    %c0_i32_1 = arith.constant 0 : i32
    return %c0_i32, %c0_i32_0 : i32, i32
  }
  func.func @transform_6(%arg0: i32) -> (i32, i32) {
    %c0_i32 = arith.constant 0 : i32
    %c0_i32_0 = arith.constant 0 : i32
    %c0_i32_1 = arith.constant 0 : i32
    return %c0_i32, %c0_i32_0 : i32, i32
  }
  func.func @transform_7(%arg0: i32) -> (i32, i32) {
    %c0_i32 = arith.constant 0 : i32
    %c0_i32_0 = arith.constant 0 : i32
    return %arg0, %c0_i32 : i32, i32
  }
  func.func @transform_8(%arg0: i32) -> (i32, i32, i32) {
    %c0_i32 = arith.constant 0 : i32
    %c0_i32_0 = arith.constant 0 : i32
    %c0_i32_1 = arith.constant 0 : i32
    return %arg0, %c0_i32, %c0_i32_0 : i32, i32, i32
  }
}

module attributes {stable_mosaic.version = 11 : i64} {
  func.func @_bn_linear_relu_stats_kernel(%arg0: i32, %arg1: memref<64x256xbf16, #tpu.memory_space<vmem>>, %arg2: memref<1x256xf32, #tpu.memory_space<vmem>>, %arg3: memref<1x256xf32, #tpu.memory_space<vmem>>, %arg4: memref<256x128xbf16, #tpu.memory_space<vmem>>, %arg5: memref<1x128xf32, #tpu.memory_space<vmem>>, %arg6: memref<64x128xbf16, #tpu.memory_space<vmem>>, %arg7: memref<1x8x128xf32, #tpu.memory_space<vmem>>) attributes {dimension_semantics = [#tpu.dimension_semantics<parallel>], iteration_bounds = array<i64: 2>, scalar_prefetch = 0 : i64, scratch_operands = 0 : i64, tpu.core_type = #tpu.core_type<tc>, window_params = [{transform_indices = @transform_0, window_bounds = array<i64: 64, 256>}, {pipeline_mode = #tpu.pipeline_mode<synchronous>, transform_indices = @transform_1, window_bounds = array<i64: 1, 256>}, {pipeline_mode = #tpu.pipeline_mode<synchronous>, transform_indices = @transform_2, window_bounds = array<i64: 1, 256>}, {pipeline_mode = #tpu.pipeline_mode<synchronous>, transform_indices = @transform_3, window_bounds = array<i64: 256, 128>}, {pipeline_mode = #tpu.pipeline_mode<synchronous>, transform_indices = @transform_4, window_bounds = array<i64: 1, 128>}, {transform_indices = @transform_5, window_bounds = array<i64: 64, 128>}, {transform_indices = @transform_6, window_bounds = array<i64: 1, 8, 128>}]} {
    %c0 = arith.constant 0 : index
    %c0_0 = arith.constant 0 : index
    %0 = vector.load %arg1[%c0, %c0_0] : memref<64x256xbf16, #tpu.memory_space<vmem>>, vector<64x256xbf16>
    %1 = arith.extf %0 : vector<64x256xbf16> to vector<64x256xf32>
    %c0_1 = arith.constant 0 : index
    %c0_2 = arith.constant 0 : index
    %2 = vector.load %arg2[%c0_1, %c0_2] : memref<1x256xf32, #tpu.memory_space<vmem>>, vector<1x256xf32>
    %3 = vector.broadcast %2 : vector<1x256xf32> to vector<64x256xf32>
    %4 = arith.mulf %1, %3 : vector<64x256xf32>
    %c0_3 = arith.constant 0 : index
    %c0_4 = arith.constant 0 : index
    %5 = vector.load %arg3[%c0_3, %c0_4] : memref<1x256xf32, #tpu.memory_space<vmem>>, vector<1x256xf32>
    %6 = vector.broadcast %5 : vector<1x256xf32> to vector<64x256xf32>
    %7 = arith.addf %4, %6 : vector<64x256xf32>
    %8 = arith.truncf %7 : vector<64x256xf32> to vector<64x256xbf16>
    %c0_5 = arith.constant 0 : index
    %c0_6 = arith.constant 0 : index
    %9 = vector.load %arg4[%c0_5, %c0_6] : memref<256x128xbf16, #tpu.memory_space<vmem>>, vector<256x128xbf16>
    %cst = arith.constant dense<0.000000e+00> : vector<64x128xf32>
    %10 = tpu.matmul %8, %9, %cst {dimension_numbers = #tpu.dot_dimension_numbers<[1], [0], [0], [1], [0, 0, 1, 1], [], []>} : vector<64x256xbf16>, vector<256x128xbf16>, vector<64x128xf32> -> vector<64x128xf32>
    %c0_7 = arith.constant 0 : index
    %c0_8 = arith.constant 0 : index
    %11 = vector.load %arg5[%c0_7, %c0_8] : memref<1x128xf32, #tpu.memory_space<vmem>>, vector<1x128xf32>
    %12 = vector.broadcast %11 : vector<1x128xf32> to vector<64x128xf32>
    %13 = arith.addf %10, %12 : vector<64x128xf32>
    %cst_9 = arith.constant 0.000000e+00 : f32
    %14 = vector.broadcast %cst_9 : f32 to vector<64x128xf32>
    %15 = arith.maximumf %13, %14 : vector<64x128xf32>
    %16 = arith.truncf %15 : vector<64x128xf32> to vector<64x128xbf16>
    %c0_10 = arith.constant 0 : index
    %c0_11 = arith.constant 0 : index
    %17 = vector.load %arg6[%c0_10, %c0_11] : memref<64x128xbf16, #tpu.memory_space<vmem>>, vector<64x128xbf16>
    tpu.vector_store %arg6[%c0_10, %c0_11], %16 {strides = array<i32>} : memref<64x128xbf16, #tpu.memory_space<vmem>>, vector<64x128xbf16>,
    %cst_12 = arith.constant dense<0.000000e+00> : vector<128xf32>
    %18 = vector.multi_reduction <add>, %15, %cst_12 [0] : vector<64x128xf32> to vector<128xf32>
    %19 = vector.shape_cast %18 : vector<128xf32> to vector<1x128xf32>
    %20 = arith.mulf %15, %15 : vector<64x128xf32>
    %cst_13 = arith.constant dense<0.000000e+00> : vector<128xf32>
    %21 = vector.multi_reduction <add>, %20, %cst_13 [0] : vector<64x128xf32> to vector<128xf32>
    %22 = vector.shape_cast %21 : vector<128xf32> to vector<1x128xf32>
    %23 = tpu.iota {dimensions = array<i32: 0>} : vector<8x128xi32>
    %c0_i32 = arith.constant 0 : i32
    %24 = vector.broadcast %c0_i32 : i32 to vector<8x128xi32>
    %25 = arith.cmpi eq, %23, %24 : vector<8x128xi32>
    %c1_i32 = arith.constant 1 : i32
    %26 = vector.broadcast %c1_i32 : i32 to vector<8x128xi32>
    %27 = arith.cmpi eq, %23, %26 : vector<8x128xi32>
    %cst_14 = arith.constant 0.000000e+00 : f32
    %28 = vector.shape_cast %22 : vector<1x128xf32> to vector<1x128xf32>
    %29 = vector.broadcast %28 : vector<1x128xf32> to vector<8x128xf32>
    %30 = vector.broadcast %cst_14 : f32 to vector<8x128xf32>
    %31 = arith.select %27, %29, %30 : vector<8x128xi1>, vector<8x128xf32>
    %32 = vector.shape_cast %19 : vector<1x128xf32> to vector<1x128xf32>
    %33 = vector.broadcast %32 : vector<1x128xf32> to vector<8x128xf32>
    %34 = arith.select %25, %33, %31 : vector<8x128xi1>, vector<8x128xf32>
    %35 = vector.shape_cast %34 : vector<8x128xf32> to vector<1x8x128xf32>
    %c0_15 = arith.constant 0 : index
    %c0_16 = arith.constant 0 : index
    %c0_17 = arith.constant 0 : index
    %36 = vector.load %arg7[%c0_15, %c0_16, %c0_17] : memref<1x8x128xf32, #tpu.memory_space<vmem>>, vector<1x8x128xf32>
    tpu.vector_store %arg7[%c0_15, %c0_16, %c0_17], %35 {strides = array<i32>} : memref<1x8x128xf32, #tpu.memory_space<vmem>>, vector<1x8x128xf32>,
    return
  }
  func.func @transform_0(%arg0: i32) -> (i32, i32) {
    %c0_i32 = arith.constant 0 : i32
    %c0_i32_0 = arith.constant 0 : i32
    return %arg0, %c0_i32 : i32, i32
  }
  func.func @transform_1(%arg0: i32) -> (i32, i32) {
    %c0_i32 = arith.constant 0 : i32
    %c0_i32_0 = arith.constant 0 : i32
    %c0_i32_1 = arith.constant 0 : i32
    return %c0_i32, %c0_i32_0 : i32, i32
  }
  func.func @transform_2(%arg0: i32) -> (i32, i32) {
    %c0_i32 = arith.constant 0 : i32
    %c0_i32_0 = arith.constant 0 : i32
    %c0_i32_1 = arith.constant 0 : i32
    return %c0_i32, %c0_i32_0 : i32, i32
  }
  func.func @transform_3(%arg0: i32) -> (i32, i32) {
    %c0_i32 = arith.constant 0 : i32
    %c0_i32_0 = arith.constant 0 : i32
    %c0_i32_1 = arith.constant 0 : i32
    return %c0_i32, %c0_i32_0 : i32, i32
  }
  func.func @transform_4(%arg0: i32) -> (i32, i32) {
    %c0_i32 = arith.constant 0 : i32
    %c0_i32_0 = arith.constant 0 : i32
    %c0_i32_1 = arith.constant 0 : i32
    return %c0_i32, %c0_i32_0 : i32, i32
  }
  func.func @transform_5(%arg0: i32) -> (i32, i32) {
    %c0_i32 = arith.constant 0 : i32
    %c0_i32_0 = arith.constant 0 : i32
    return %arg0, %c0_i32 : i32, i32
  }
  func.func @transform_6(%arg0: i32) -> (i32, i32, i32) {
    %c0_i32 = arith.constant 0 : i32
    %c0_i32_0 = arith.constant 0 : i32
    %c0_i32_1 = arith.constant 0 : i32
    return %arg0, %c0_i32, %c0_i32_0 : i32, i32, i32
  }
}

module attributes {stable_mosaic.version = 11 : i64} {
  func.func @_bn_linear_kernel(%arg0: i32, %arg1: memref<64x64xbf16, #tpu.memory_space<vmem>>, %arg2: memref<1x64xf32, #tpu.memory_space<vmem>>, %arg3: memref<1x64xf32, #tpu.memory_space<vmem>>, %arg4: memref<64x128xbf16, #tpu.memory_space<vmem>>, %arg5: memref<1x128xf32, #tpu.memory_space<vmem>>, %arg6: memref<64x128xf32, #tpu.memory_space<vmem>>) attributes {dimension_semantics = [#tpu.dimension_semantics<parallel>], iteration_bounds = array<i64: 2>, scalar_prefetch = 0 : i64, scratch_operands = 0 : i64, tpu.core_type = #tpu.core_type<tc>, window_params = [{transform_indices = @transform_0, window_bounds = array<i64: 64, 64>}, {pipeline_mode = #tpu.pipeline_mode<synchronous>, transform_indices = @transform_1, window_bounds = array<i64: 1, 64>}, {pipeline_mode = #tpu.pipeline_mode<synchronous>, transform_indices = @transform_2, window_bounds = array<i64: 1, 64>}, {pipeline_mode = #tpu.pipeline_mode<synchronous>, transform_indices = @transform_3, window_bounds = array<i64: 64, 128>}, {pipeline_mode = #tpu.pipeline_mode<synchronous>, transform_indices = @transform_4, window_bounds = array<i64: 1, 128>}, {transform_indices = @transform_5, window_bounds = array<i64: 64, 128>}]} {
    %c0 = arith.constant 0 : index
    %c0_0 = arith.constant 0 : index
    %0 = vector.load %arg1[%c0, %c0_0] : memref<64x64xbf16, #tpu.memory_space<vmem>>, vector<64x64xbf16>
    %1 = arith.extf %0 : vector<64x64xbf16> to vector<64x64xf32>
    %c0_1 = arith.constant 0 : index
    %c0_2 = arith.constant 0 : index
    %2 = vector.load %arg2[%c0_1, %c0_2] : memref<1x64xf32, #tpu.memory_space<vmem>>, vector<1x64xf32>
    %3 = vector.broadcast %2 : vector<1x64xf32> to vector<64x64xf32>
    %4 = arith.mulf %1, %3 : vector<64x64xf32>
    %c0_3 = arith.constant 0 : index
    %c0_4 = arith.constant 0 : index
    %5 = vector.load %arg3[%c0_3, %c0_4] : memref<1x64xf32, #tpu.memory_space<vmem>>, vector<1x64xf32>
    %6 = vector.broadcast %5 : vector<1x64xf32> to vector<64x64xf32>
    %7 = arith.addf %4, %6 : vector<64x64xf32>
    %8 = arith.truncf %7 : vector<64x64xf32> to vector<64x64xbf16>
    %c0_5 = arith.constant 0 : index
    %c0_6 = arith.constant 0 : index
    %9 = vector.load %arg4[%c0_5, %c0_6] : memref<64x128xbf16, #tpu.memory_space<vmem>>, vector<64x128xbf16>
    %cst = arith.constant dense<0.000000e+00> : vector<64x128xf32>
    %10 = tpu.matmul %8, %9, %cst {dimension_numbers = #tpu.dot_dimension_numbers<[1], [0], [0], [1], [0, 0, 1, 1], [], []>} : vector<64x64xbf16>, vector<64x128xbf16>, vector<64x128xf32> -> vector<64x128xf32>
    %c0_7 = arith.constant 0 : index
    %c0_8 = arith.constant 0 : index
    %11 = vector.load %arg5[%c0_7, %c0_8] : memref<1x128xf32, #tpu.memory_space<vmem>>, vector<1x128xf32>
    %12 = vector.broadcast %11 : vector<1x128xf32> to vector<64x128xf32>
    %13 = arith.addf %10, %12 : vector<64x128xf32>
    %c0_9 = arith.constant 0 : index
    %c0_10 = arith.constant 0 : index
    %14 = vector.load %arg6[%c0_9, %c0_10] : memref<64x128xf32, #tpu.memory_space<vmem>>, vector<64x128xf32>
    tpu.vector_store %arg6[%c0_9, %c0_10], %13 {strides = array<i32>} : memref<64x128xf32, #tpu.memory_space<vmem>>, vector<64x128xf32>,
    return
  }
  func.func @transform_0(%arg0: i32) -> (i32, i32) {
    %c0_i32 = arith.constant 0 : i32
    %c0_i32_0 = arith.constant 0 : i32
    return %arg0, %c0_i32 : i32, i32
  }
  func.func @transform_1(%arg0: i32) -> (i32, i32) {
    %c0_i32 = arith.constant 0 : i32
    %c0_i32_0 = arith.constant 0 : i32
    %c0_i32_1 = arith.constant 0 : i32
    return %c0_i32, %c0_i32_0 : i32, i32
  }
  func.func @transform_2(%arg0: i32) -> (i32, i32) {
    %c0_i32 = arith.constant 0 : i32
    %c0_i32_0 = arith.constant 0 : i32
    %c0_i32_1 = arith.constant 0 : i32
    return %c0_i32, %c0_i32_0 : i32, i32
  }
  func.func @transform_3(%arg0: i32) -> (i32, i32) {
    %c0_i32 = arith.constant 0 : i32
    %c0_i32_0 = arith.constant 0 : i32
    %c0_i32_1 = arith.constant 0 : i32
    return %c0_i32, %c0_i32_0 : i32, i32
  }
  func.func @transform_4(%arg0: i32) -> (i32, i32) {
    %c0_i32 = arith.constant 0 : i32
    %c0_i32_0 = arith.constant 0 : i32
    %c0_i32_1 = arith.constant 0 : i32
    return %c0_i32, %c0_i32_0 : i32, i32
  }
  func.func @transform_5(%arg0: i32) -> (i32, i32) {
    %c0_i32 = arith.constant 0 : i32
    %c0_i32_0 = arith.constant 0 : i32
    return %arg0, %c0_i32 : i32, i32
  }
}

module attributes {stable_mosaic.version = 11 : i64} {
  func.func @_bn_linear_relu_stats_kernel(%arg0: i32, %arg1: memref<64x128xbf16, #tpu.memory_space<vmem>>, %arg2: memref<1x128xf32, #tpu.memory_space<vmem>>, %arg3: memref<1x128xf32, #tpu.memory_space<vmem>>, %arg4: memref<128x64xbf16, #tpu.memory_space<vmem>>, %arg5: memref<1x64xf32, #tpu.memory_space<vmem>>, %arg6: memref<64x64xbf16, #tpu.memory_space<vmem>>, %arg7: memref<1x8x64xf32, #tpu.memory_space<vmem>>) attributes {dimension_semantics = [#tpu.dimension_semantics<parallel>], iteration_bounds = array<i64: 2>, scalar_prefetch = 0 : i64, scratch_operands = 0 : i64, tpu.core_type = #tpu.core_type<tc>, window_params = [{transform_indices = @transform_0, window_bounds = array<i64: 64, 128>}, {pipeline_mode = #tpu.pipeline_mode<synchronous>, transform_indices = @transform_1, window_bounds = array<i64: 1, 128>}, {pipeline_mode = #tpu.pipeline_mode<synchronous>, transform_indices = @transform_2, window_bounds = array<i64: 1, 128>}, {pipeline_mode = #tpu.pipeline_mode<synchronous>, transform_indices = @transform_3, window_bounds = array<i64: 128, 64>}, {pipeline_mode = #tpu.pipeline_mode<synchronous>, transform_indices = @transform_4, window_bounds = array<i64: 1, 64>}, {transform_indices = @transform_5, window_bounds = array<i64: 64, 64>}, {transform_indices = @transform_6, window_bounds = array<i64: 1, 8, 64>}]} {
    %c0 = arith.constant 0 : index
    %c0_0 = arith.constant 0 : index
    %0 = vector.load %arg1[%c0, %c0_0] : memref<64x128xbf16, #tpu.memory_space<vmem>>, vector<64x128xbf16>
    %1 = arith.extf %0 : vector<64x128xbf16> to vector<64x128xf32>
    %c0_1 = arith.constant 0 : index
    %c0_2 = arith.constant 0 : index
    %2 = vector.load %arg2[%c0_1, %c0_2] : memref<1x128xf32, #tpu.memory_space<vmem>>, vector<1x128xf32>
    %3 = vector.broadcast %2 : vector<1x128xf32> to vector<64x128xf32>
    %4 = arith.mulf %1, %3 : vector<64x128xf32>
    %c0_3 = arith.constant 0 : index
    %c0_4 = arith.constant 0 : index
    %5 = vector.load %arg3[%c0_3, %c0_4] : memref<1x128xf32, #tpu.memory_space<vmem>>, vector<1x128xf32>
    %6 = vector.broadcast %5 : vector<1x128xf32> to vector<64x128xf32>
    %7 = arith.addf %4, %6 : vector<64x128xf32>
    %8 = arith.truncf %7 : vector<64x128xf32> to vector<64x128xbf16>
    %c0_5 = arith.constant 0 : index
    %c0_6 = arith.constant 0 : index
    %9 = vector.load %arg4[%c0_5, %c0_6] : memref<128x64xbf16, #tpu.memory_space<vmem>>, vector<128x64xbf16>
    %cst = arith.constant dense<0.000000e+00> : vector<64x64xf32>
    %10 = tpu.matmul %8, %9, %cst {dimension_numbers = #tpu.dot_dimension_numbers<[1], [0], [0], [1], [0, 0, 1, 1], [], []>} : vector<64x128xbf16>, vector<128x64xbf16>, vector<64x64xf32> -> vector<64x64xf32>
    %c0_7 = arith.constant 0 : index
    %c0_8 = arith.constant 0 : index
    %11 = vector.load %arg5[%c0_7, %c0_8] : memref<1x64xf32, #tpu.memory_space<vmem>>, vector<1x64xf32>
    %12 = vector.broadcast %11 : vector<1x64xf32> to vector<64x64xf32>
    %13 = arith.addf %10, %12 : vector<64x64xf32>
    %cst_9 = arith.constant 0.000000e+00 : f32
    %14 = vector.broadcast %cst_9 : f32 to vector<64x64xf32>
    %15 = arith.maximumf %13, %14 : vector<64x64xf32>
    %16 = arith.truncf %15 : vector<64x64xf32> to vector<64x64xbf16>
    %c0_10 = arith.constant 0 : index
    %c0_11 = arith.constant 0 : index
    %17 = vector.load %arg6[%c0_10, %c0_11] : memref<64x64xbf16, #tpu.memory_space<vmem>>, vector<64x64xbf16>
    tpu.vector_store %arg6[%c0_10, %c0_11], %16 {strides = array<i32>} : memref<64x64xbf16, #tpu.memory_space<vmem>>, vector<64x64xbf16>,
    %cst_12 = arith.constant dense<0.000000e+00> : vector<64xf32>
    %18 = vector.multi_reduction <add>, %15, %cst_12 [0] : vector<64x64xf32> to vector<64xf32>
    %19 = vector.shape_cast %18 : vector<64xf32> to vector<1x64xf32>
    %20 = arith.mulf %15, %15 : vector<64x64xf32>
    %cst_13 = arith.constant dense<0.000000e+00> : vector<64xf32>
    %21 = vector.multi_reduction <add>, %20, %cst_13 [0] : vector<64x64xf32> to vector<64xf32>
    %22 = vector.shape_cast %21 : vector<64xf32> to vector<1x64xf32>
    %23 = tpu.iota {dimensions = array<i32: 0>} : vector<8x64xi32>
    %c0_i32 = arith.constant 0 : i32
    %24 = vector.broadcast %c0_i32 : i32 to vector<8x64xi32>
    %25 = arith.cmpi eq, %23, %24 : vector<8x64xi32>
    %c1_i32 = arith.constant 1 : i32
    %26 = vector.broadcast %c1_i32 : i32 to vector<8x64xi32>
    %27 = arith.cmpi eq, %23, %26 : vector<8x64xi32>
    %cst_14 = arith.constant 0.000000e+00 : f32
    %28 = vector.shape_cast %22 : vector<1x64xf32> to vector<1x64xf32>
    %29 = vector.broadcast %28 : vector<1x64xf32> to vector<8x64xf32>
    %30 = vector.broadcast %cst_14 : f32 to vector<8x64xf32>
    %31 = arith.select %27, %29, %30 : vector<8x64xi1>, vector<8x64xf32>
    %32 = vector.shape_cast %19 : vector<1x64xf32> to vector<1x64xf32>
    %33 = vector.broadcast %32 : vector<1x64xf32> to vector<8x64xf32>
    %34 = arith.select %25, %33, %31 : vector<8x64xi1>, vector<8x64xf32>
    %35 = vector.shape_cast %34 : vector<8x64xf32> to vector<1x8x64xf32>
    %c0_15 = arith.constant 0 : index
    %c0_16 = arith.constant 0 : index
    %c0_17 = arith.constant 0 : index
    %36 = vector.load %arg7[%c0_15, %c0_16, %c0_17] : memref<1x8x64xf32, #tpu.memory_space<vmem>>, vector<1x8x64xf32>
    tpu.vector_store %arg7[%c0_15, %c0_16, %c0_17], %35 {strides = array<i32>} : memref<1x8x64xf32, #tpu.memory_space<vmem>>, vector<1x8x64xf32>,
    return
  }
  func.func @transform_0(%arg0: i32) -> (i32, i32) {
    %c0_i32 = arith.constant 0 : i32
    %c0_i32_0 = arith.constant 0 : i32
    return %arg0, %c0_i32 : i32, i32
  }
  func.func @transform_1(%arg0: i32) -> (i32, i32) {
    %c0_i32 = arith.constant 0 : i32
    %c0_i32_0 = arith.constant 0 : i32
    %c0_i32_1 = arith.constant 0 : i32
    return %c0_i32, %c0_i32_0 : i32, i32
  }
  func.func @transform_2(%arg0: i32) -> (i32, i32) {
    %c0_i32 = arith.constant 0 : i32
    %c0_i32_0 = arith.constant 0 : i32
    %c0_i32_1 = arith.constant 0 : i32
    return %c0_i32, %c0_i32_0 : i32, i32
  }
  func.func @transform_3(%arg0: i32) -> (i32, i32) {
    %c0_i32 = arith.constant 0 : i32
    %c0_i32_0 = arith.constant 0 : i32
    %c0_i32_1 = arith.constant 0 : i32
    return %c0_i32, %c0_i32_0 : i32, i32
  }
  func.func @transform_4(%arg0: i32) -> (i32, i32) {
    %c0_i32 = arith.constant 0 : i32
    %c0_i32_0 = arith.constant 0 : i32
    %c0_i32_1 = arith.constant 0 : i32
    return %c0_i32, %c0_i32_0 : i32, i32
  }
  func.func @transform_5(%arg0: i32) -> (i32, i32) {
    %c0_i32 = arith.constant 0 : i32
    %c0_i32_0 = arith.constant 0 : i32
    return %arg0, %c0_i32 : i32, i32
  }
  func.func @transform_6(%arg0: i32) -> (i32, i32, i32) {
    %c0_i32 = arith.constant 0 : i32
    %c0_i32_0 = arith.constant 0 : i32
    %c0_i32_1 = arith.constant 0 : i32
    return %arg0, %c0_i32, %c0_i32_0 : i32, i32, i32
  }
}

</mosaic_0001>

<llo_original>
// kernel: latent_guidance_forward.5
$region0: #{latent_guidance_forward.5}
  #allocation0 [shape = 'u32[]', space=smem, size = 0x4, offset = 0x4, fixed_abs, tag = 'smem constant byte address 0x4 - core index']
  #allocation1 [shape = 'u32[144,128]{1,0:T(1,128)}', space=vmem, size = 0x12000, scoped, tag = 'internal scratch']
  %s0 = inlined_call_operand.vmem [shape: bf16[128,128], index: 0, kind: input, shape index: {}]
  %s1 = inlined_call_operand.vmem [shape: bf16[128,512], index: 1, kind: input, shape index: {}]
  %s2 = inlined_call_operand.vmem [shape: f32[1,512], index: 2, kind: input, shape index: {}]
  %s3 = inlined_call_operand.vmem [shape: f32[2,8,512], index: 3, kind: output, shape index: {}]
  %s4 = sld [smem:[#allocation0]]
  $region45: #{latent_guidance_forward.5} parent=0
    _
  %s6 = ssub.s32 1, %s4
  %s7 = scalar_select 0, %s6, %s4
  loop: start=0, step=1, limit=4
  $region2: #{latent_guidance_forward.5} parent=0 // loop_pre_header
    _
  $region3: #{latent_guidance_forward.5} parent=0 // loop_header
    %s9 = sphi 0, %s13
    %p10 = scmp.ge.s32.totalorder %s9, 4
    %s19 = sphi 0, %s21
    %s22 = sphi 0, %s19
    %s23 = sphi 0, %s22
    %s39 = sphi 0, %s23
    %s43 = sphi 0, %s43
    %s45 = sphi 0, %s43
    %s46 = sphi 0, %s45
    %s60 = sphi 0, %s46
    %s64 = sphi 0, %s64
    %s66 = sphi 0, %s64
    %s67 = sphi 0, %s66
    %s81 = sphi 0, %s67
    %s87 = sphi 0, %s89
    %s90 = sphi 0, %s87
    %s91 = sphi 0, %s90
    %s107 = sphi 0, %s91
  $region4: #{latent_guidance_forward.5} parent=0 // loop_header_branch
    %12 = sbr.rel (%p10) target = $region8
  $region5: #{latent_guidance_forward.5} parent=0 // loop_body
    %s14 = ssub.s32 %s9, 1
    %s15 = ssub.s32 %s9, 2
    %s16 = sadd.s32 %s9, 1
    %s17 = ssub.s32 %s9, %s16
    %p18 = scmp.eq.s32.totalorder %s17, 0
    %s20 = sadd.s32 %s19, 1
    %s21 = scalar_select %p18, %s19, %s20
    %p24 = pneg %p18
    %p25 = scmp.eq.s32.totalorder %s9, 1
    %p26 = por %p24, %p25
    %p27 = scmp.ne.s32.totalorder %s19, %s22
    %p28 = scmp.eq.s32.totalorder %s9, 0
    %p29 = por %p27, %p28
    %p30 = scmp.ne.s32.totalorder %s19, %s22
    %p31 = scmp.eq.s32.totalorder %s14, 1
    %p32 = por %p30, %p31
    %p33 = scmp.ne.s32.totalorder %s22, %s23
    %p34 = scmp.eq.s32.totalorder %s14, 0
    %p35 = por %p33, %p34
    %p36 = scmp.ne.s32.totalorder %s22, %s23
    %p37 = scmp.eq.s32.totalorder %s15, 1
    %p38 = por %p36, %p37
    %p40 = scmp.ne.s32.totalorder %s23, %s39
    %p41 = scmp.eq.s32.totalorder %s15, 0
    %p42 = por %p40, %p41
    %s44 = sadd.s32 %s43, 1
    %p47 = scmp.eq.s32.totalorder %s9, 1
    %p48 = scmp.ne.s32.totalorder %s43, %s45
    %p49 = scmp.eq.s32.totalorder %s9, 0
    %p50 = por %p48, %p49
    %p51 = scmp.ne.s32.totalorder %s43, %s45
    %p52 = scmp.eq.s32.totalorder %s14, 1
    %p53 = por %p51, %p52
    %p54 = scmp.ne.s32.totalorder %s45, %s46
    %p55 = scmp.eq.s32.totalorder %s14, 0
    %p56 = por %p54, %p55
    %p57 = scmp.ne.s32.totalorder %s45, %s46
    %p58 = scmp.eq.s32.totalorder %s15, 1
    %p59 = por %p57, %p58
    %p61 = scmp.ne.s32.totalorder %s46, %s60
    %p62 = scmp.eq.s32.totalorder %s15, 0
    %p63 = por %p61, %p62
    %s65 = sadd.s32 %s64, 1
    %p68 = scmp.eq.s32.totalorder %s9, 1
    %p69 = scmp.ne.s32.totalorder %s64, %s66
    %p70 = scmp.eq.s32.totalorder %s9, 0
    %p71 = por %p69, %p70
    %p72 = scmp.ne.s32.totalorder %s64, %s66
    %p73 = scmp.eq.s32.totalorder %s14, 1
    %p74 = por %p72, %p73
    %p75 = scmp.ne.s32.totalorder %s66, %s67
    %p76 = scmp.eq.s32.totalorder %s14, 0
    %p77 = por %p75, %p76
    %p78 = scmp.ne.s32.totalorder %s66, %s67
    %p79 = scmp.eq.s32.totalorder %s15, 1
    %p80 = por %p78, %p79
    %p82 = scmp.ne.s32.totalorder %s67, %s81
    %p83 = scmp.eq.s32.totalorder %s15, 0
    %p84 = por %p82, %p83
    %s85 = ssub.s32 %s9, %s16
    %p86 = scmp.eq.s32.totalorder %s85, 0
    %s88 = sadd.s32 %s87, 1
    %s89 = scalar_select %p86, %s87, %s88
    %p92 = pneg %p86
    %p93 = scmp.eq.s32.totalorder %s9, 1
    %p94 = por %p92, %p93
    %p95 = scmp.ne.s32.totalorder %s87, %s90
    %p96 = scmp.eq.s32.totalorder %s9, 0
    %p97 = por %p95, %p96
    %p98 = scmp.ne.s32.totalorder %s87, %s90
    %p99 = scmp.eq.s32.totalorder %s14, 1
    %p100 = por %p98, %p99
    %p101 = scmp.ne.s32.totalorder %s90, %s91
    %p102 = scmp.eq.s32.totalorder %s14, 0
    %p103 = por %p101, %p102
    %p104 = scmp.ne.s32.totalorder %s90, %s91
    %p105 = scmp.eq.s32.totalorder %s15, 1
    %p106 = por %p104, %p105
    %p108 = scmp.ne.s32.totalorder %s91, %s107
    %p109 = scmp.eq.s32.totalorder %s15, 0
    %p110 = por %p108, %p109
    %p111 = scmp.le.s32.totalorder 1, %s9
    %p112 = scmp.lt.s32.totalorder %s9, 3
    %p113 = pnand %p111, %p112
    %p114 = pneg %p113
    // Predicated region
    $region9: #{latent_guidance_forward.5} parent=5 // pred_check
      _
    $region10: #{latent_guidance_forward.5} parent=5 // pred_check_branch
      %116 = sbr.rel (%p113) target = $region12
    $region11: #{latent_guidance_forward.5} parent=5 // pred_region
      %s117 = ssub.s32 %s9, 1
      // Predicated region
      $region13: #{latent_guidance_forward.5} parent=11 // pred_check
        %p118 = pneg %p56
      $region14: #{latent_guidance_forward.5} parent=11 // pred_check_branch
        %120 = sbr.rel (%p118) target = $region16
      $region15: #{latent_guidance_forward.5} parent=11 // pred_region
        _
      $region16: #{latent_guidance_forward.5} parent=11 // pred_fallthru
        _
      // Predicated region
      $region17: #{latent_guidance_forward.5} parent=11 // pred_check
        %p121 = pneg %p77
      $region18: #{latent_guidance_forward.5} parent=11 // pred_check_branch
        %123 = sbr.rel (%p121) target = $region20
      $region19: #{latent_guidance_forward.5} parent=11 // pred_region
        _
      $region20: #{latent_guidance_forward.5} parent=11 // pred_fallthru
        _
    $region12: #{latent_guidance_forward.5} parent=5 // pred_fallthru
      _
    %p124 = scmp.lt.s32.totalorder %s9, 2
    // Predicated region
    $region21: #{latent_guidance_forward.5} parent=5 // pred_check
      %p125 = pneg %p124
    $region22: #{latent_guidance_forward.5} parent=5 // pred_check_branch
      %127 = sbr.rel (%p125) target = $region24
    $region23: #{latent_guidance_forward.5} parent=5 // pred_region
      // Predicated region
      $region25: #{latent_guidance_forward.5} parent=23 // pred_check
        %p128 = pneg %p29
      $region26: #{latent_guidance_forward.5} parent=23 // pred_check_branch
        %130 = sbr.rel (%p128) target = $region28
      $region27: #{latent_guidance_forward.5} parent=23 // pred_region
        %s131 = smul.u32 8, %s9
        %p132 = scmp.lt.s32.totalorder %s131, 15
        %s133 = scalar_select %p132, %s131, 15
        %s134 = smul.addr %s133, 4
        %s135 = scalar_lea.vmem %s0, %s134
        %s136 = smul.u32 8, %s9
      $region28: #{latent_guidance_forward.5} parent=23 // pred_fallthru
        _
    $region24: #{latent_guidance_forward.5} parent=5 // pred_fallthru
      _
    %p137 = scmp.le.s32.totalorder 1, %s9
    %p138 = scmp.lt.s32.totalorder %s9, 3
    %p139 = pnand %p137, %p138
    %p140 = pneg %p139
    // Predicated region
    $region29: #{latent_guidance_forward.5} parent=5 // pred_check
      _
    $region30: #{latent_guidance_forward.5} parent=5 // pred_check_branch
      %142 = sbr.rel (%p139) target = $region32
    $region31: #{latent_guidance_forward.5} parent=5 // pred_region
      %s143 = ssub.s32 %s9, 1
      %s144 = smul.u32 8, %s14
      %p145 = scmp.lt.s32.totalorder %s144, 15
      %s146 = scalar_select %p145, %s144, 15
      %s147 = smul.addr %s146, 4
      %s148 = scalar_lea.vmem %s0, %s147
      %p149 = pneg %p35
      %p150 = pneg %p32
      %p151 = pneg %p56
      %p152 = pneg %p53
      %p153 = pneg %p77
      %p154 = pneg %p74
      %p155 = pneg %p103
      %p156 = pneg %p100
      %p157 = scmp.lt.s32.totalorder %s14, 1
      %s158 = scalar_select %p157, %s14, 1
      %s159 = smul.addr %s158, 4
      %s160 = smul.addr %s159, 8
      %s161 = scalar_lea.vmem %s3, %s160
      %s162 = smul.u32 8, %s14
      %p163 = scmp.lt.s32.totalorder %s162, 15
      %s164 = scalar_select %p163, %s162, 15
      %s165 = smul.addr %s164, 4
      %s166 = scalar_lea.vmem %s0, %s165
      %s167 = smul.u32 8, %s14
      %p168 = scmp.lt.s32.totalorder %s14, 1
      %s169 = scalar_select %p168, %s14, 1
      %s170 = smul.addr %s169, 4
      %s171 = smul.addr %s170, 8
      %s172 = scalar_lea.vmem %s3, %s171
      %v174 = vld [vmem:[%s166] sm:$0xf]
      %v175 = vld [vmem:[%s166 + $0x4] sm:$0xf]
      %v176 = vld [vmem:[%s166 + $0x8] sm:$0xf]
      %v177 = vld [vmem:[%s166 + $0xc] sm:$0xf]
      %v178 = vld [vmem:[%s166 + $0x10] sm:$0xf]
      %v179 = vld [vmem:[%s166 + $0x14] sm:$0xf]
      %v180 = vld [vmem:[%s166 + $0x18] sm:$0xf]
      %v181 = vld [vmem:[%s166 + $0x1c] sm:$0xf]
      %v182 = vld [vmem:[%s1] sm:$0xff]
      %v183 = vld [vmem:[%s1 + $0x8] sm:$0xff]
      %v184 = vld [vmem:[%s1 + $0x10] sm:$0xff]
      %v185 = vld [vmem:[%s1 + $0x18] sm:$0xff]
      %v186 = vld [vmem:[%s1 + $0x20] sm:$0xff]
      %v187 = vld [vmem:[%s1 + $0x28] sm:$0xff]
      %v188 = vld [vmem:[%s1 + $0x30] sm:$0xff]
      %v189 = vld [vmem:[%s1 + $0x38] sm:$0xff]
      %v190 = vld [vmem:[%s1 + $0x40] sm:$0xff]
      %v191 = vld [vmem:[%s1 + $0x48] sm:$0xff]
      %v192 = vld [vmem:[%s1 + $0x50] sm:$0xff]
      %v193 = vld [vmem:[%s1 + $0x58] sm:$0xff]
      %v194 = vld [vmem:[%s1 + $0x60] sm:$0xff]
      %v195 = vld [vmem:[%s1 + $0x68] sm:$0xff]
      %v196 = vld [vmem:[%s1 + $0x70] sm:$0xff]
      %v197 = vld [vmem:[%s1 + $0x78] sm:$0xff]
      %v198 = vld [vmem:[%s1 + $0x80] sm:$0xff]
      %v199 = vld [vmem:[%s1 + $0x88] sm:$0xff]
      %v200 = vld [vmem:[%s1 + $0x90] sm:$0xff]
      %v201 = vld [vmem:[%s1 + $0x98] sm:$0xff]
      %v202 = vld [vmem:[%s1 + $0xa0] sm:$0xff]
      %v203 = vld [vmem:[%s1 + $0xa8] sm:$0xff]
      %v204 = vld [vmem:[%s1 + $0xb0] sm:$0xff]
      %v205 = vld [vmem:[%s1 + $0xb8] sm:$0xff]
      %v206 = vld [vmem:[%s1 + $0xc0] sm:$0xff]
      %v207 = vld [vmem:[%s1 + $0xc8] sm:$0xff]
      %v208 = vld [vmem:[%s1 + $0xd0] sm:$0xff]
      %v209 = vld [vmem:[%s1 + $0xd8] sm:$0xff]
      %v210 = vld [vmem:[%s1 + $0xe0] sm:$0xff]
      %v211 = vld [vmem:[%s1 + $0xe8] sm:$0xff]
      %v212 = vld [vmem:[%s1 + $0xf0] sm:$0xff]
      %v213 = vld [vmem:[%s1 + $0xf8] sm:$0xff]
      %v214 = vld [vmem:[%s2] sm:$0xf]
      %v216 = vlaneseq
      %v217 = vshrl.u32 %v216, 7
      %v218 = vsub.s32 0, %v217
      %v219 = vrot.slane %v214, %v218
      %v220 = vlaneseq
      %v221 = vshrl.u32 %v220, 7
      %v222 = vsub.s32 1, %v221
      %v223 = vrot.slane %v214, %v222
      %v224 = vlaneseq
      %v225 = vshrl.u32 %v224, 7
      %v226 = vsub.s32 2, %v225
      %v227 = vrot.slane %v214, %v226
      %v228 = vlaneseq
      %v229 = vshrl.u32 %v228, 7
      %v230 = vsub.s32 3, %v229
      %v231 = vrot.slane %v214, %v230
      %v244 = vunpack.c.l.b16 %v174
      %v245 = vunpack.c.l.b16 %v175
      %v246 = vunpack.c.l.b16 %v176
      %v247 = vunpack.c.l.b16 %v177
      %v248 = vunpack.c.l.b16 %v178
      %v249 = vunpack.c.l.b16 %v179
      %v250 = vunpack.c.l.b16 %v180
      %v251 = vunpack.c.l.b16 %v181
      %v252 = vpack.c.b16 %v245, %v244
      %v253 = vpack.c.b16 %v247, %v246
      %v254 = vpack.c.b16 %v249, %v248
      %v255 = vpack.c.b16 %v251, %v250
      %v292 = vunpack.c.l.b16 %v182
      %v293 = vunpack.c.h.b16 %v182
      %v294 = vunpack.c.l.b16 %v183
      %v295 = vunpack.c.h.b16 %v183
      %v296 = vunpack.c.l.b16 %v184
      %v297 = vunpack.c.h.b16 %v184
      %v298 = vunpack.c.l.b16 %v185
      %v299 = vunpack.c.h.b16 %v185
      %v300 = vunpack.c.l.b16 %v186
      %v301 = vunpack.c.h.b16 %v186
      %v302 = vunpack.c.l.b16 %v187
      %v303 = vunpack.c.h.b16 %v187
      %v304 = vunpack.c.l.b16 %v188
      %v305 = vunpack.c.h.b16 %v188
      %v306 = vunpack.c.l.b16 %v189
      %v307 = vunpack.c.h.b16 %v189
      %v308 = vunpack.c.l.b16 %v190
      %v309 = vunpack.c.h.b16 %v190
      %v310 = vunpack.c.l.b16 %v191
      %v311 = vunpack.c.h.b16 %v191
      %v312 = vunpack.c.l.b16 %v192
      %v313 = vunpack.c.h.b16 %v192
      %v314 = vunpack.c.l.b16 %v193
      %v315 = vunpack.c.h.b16 %v193
      %v316 = vunpack.c.l.b16 %v194
      %v317 = vunpack.c.h.b16 %v194
      %v318 = vunpack.c.l.b16 %v195
      %v319 = vunpack.c.h.b16 %v195
      %v320 = vunpack.c.l.b16 %v196
      %v321 = vunpack.c.h.b16 %v196
      %v322 = vunpack.c.l.b16 %v197
      %v323 = vunpack.c.h.b16 %v197
      %v324 = vunpack.c.l.b16 %v198
      %v325 = vunpack.c.h.b16 %v198
      %v326 = vunpack.c.l.b16 %v199
      %v327 = vunpack.c.h.b16 %v199
      %v328 = vunpack.c.l.b16 %v200
      %v329 = vunpack.c.h.b16 %v200
      %v330 = vunpack.c.l.b16 %v201
      %v331 = vunpack.c.h.b16 %v201
      %v332 = vunpack.c.l.b16 %v202
      %v333 = vunpack.c.h.b16 %v202
      %v334 = vunpack.c.l.b16 %v203
      %v335 = vunpack.c.h.b16 %v203
      %v336 = vunpack.c.l.b16 %v204
      %v337 = vunpack.c.h.b16 %v204
      %v338 = vunpack.c.l.b16 %v205
      %v339 = vunpack.c.h.b16 %v205
      %v340 = vunpack.c.l.b16 %v206
      %v341 = vunpack.c.h.b16 %v206
      %v342 = vunpack.c.l.b16 %v207
      %v343 = vunpack.c.h.b16 %v207
      %v344 = vunpack.c.l.b16 %v208
      %v345 = vunpack.c.h.b16 %v208
      %v346 = vunpack.c.l.b16 %v209
      %v347 = vunpack.c.h.b16 %v209
      %v348 = vunpack.c.l.b16 %v210
      %v349 = vunpack.c.h.b16 %v210
      %v350 = vunpack.c.l.b16 %v211
      %v351 = vunpack.c.h.b16 %v211
      %v352 = vunpack.c.l.b16 %v212
      %v353 = vunpack.c.h.b16 %v212
      %v354 = vunpack.c.l.b16 %v213
      %v355 = vunpack.c.h.b16 %v213
      %v356 = vpack.c.b16 %v296, %v292
      %v357 = vpack.c.b16 %v297, %v293
      %v358 = vpack.c.b16 %v298, %v294
      %v359 = vpack.c.b16 %v299, %v295
      %v360 = vpack.c.b16 %v304, %v300
      %v361 = vpack.c.b16 %v305, %v301
      %v362 = vpack.c.b16 %v306, %v302
      %v363 = vpack.c.b16 %v307, %v303
      %v364 = vpack.c.b16 %v312, %v308
      %v365 = vpack.c.b16 %v313, %v309
      %v366 = vpack.c.b16 %v314, %v310
      %v367 = vpack.c.b16 %v315, %v311
      %v368 = vpack.c.b16 %v320, %v316
      %v369 = vpack.c.b16 %v321, %v317
      %v370 = vpack.c.b16 %v322, %v318
      %v371 = vpack.c.b16 %v323, %v319
      %v372 = vpack.c.b16 %v328, %v324
      %v373 = vpack.c.b16 %v329, %v325
      %v374 = vpack.c.b16 %v330, %v326
      %v375 = vpack.c.b16 %v331, %v327
      %v376 = vpack.c.b16 %v336, %v332
      %v377 = vpack.c.b16 %v337, %v333
      %v378 = vpack.c.b16 %v338, %v334
      %v379 = vpack.c.b16 %v339, %v335
      %v380 = vpack.c.b16 %v344, %v340
      %v381 = vpack.c.b16 %v345, %v341
      %v382 = vpack.c.b16 %v346, %v342
      %v383 = vpack.c.b16 %v347, %v343
      %v384 = vpack.c.b16 %v352, %v348
      %v385 = vpack.c.b16 %v353, %v349
      %v386 = vpack.c.b16 %v354, %v350
      %v387 = vpack.c.b16 %v355, %v351
      %420 = vmatprep.subr.bf16.mxu0 %v385
      %421 = vmatpush1.bf16.msra.mxu0 %v384
      %422 = vmatprep.subr.bf16.mxu0 %v381
      %423 = vmatpush1.bf16.msra.mxu0 %v380
      %424 = vmatprep.subr.bf16.mxu0 %v377
      %425 = vmatpush1.bf16.msra.mxu0 %v376
      %426 = vmatprep.subr.bf16.mxu0 %v373
      %427 = vmatpush1.bf16.msra.mxu0 %v372
      %428 = vmatprep.subr.bf16.mxu0 %v369
      %429 = vmatpush1.bf16.msra.mxu0 %v368
      %430 = vmatprep.subr.bf16.mxu0 %v365
      %431 = vmatpush1.bf16.msra.mxu0 %v364
      %432 = vmatprep.subr.bf16.mxu0 %v361
      %433 = vmatpush1.bf16.msra.mxu0 %v360
      %434 = vmatprep.subr.bf16.mxu0 %v357
      %435 = vmatpush1.bf16.msra.mxu0 %v356
      %436 = vmatprep.subr.bf16.mxu0 0
      %437 = vmatpush2.bf16.msra.mxu0 0
      %438 = vmatprep.subr.bf16.mxu0 0
      %439 = vmatpush2.bf16.msra.mxu0 0
      %440 = vmatprep.subr.bf16.mxu0 0
      %441 = vmatpush2.bf16.msra.mxu0 0
      %442 = vmatprep.subr.bf16.mxu0 0
      %443 = vmatpush2.bf16.msra.mxu0 0
      %444 = vmatprep.subr.bf16.mxu0 0
      %445 = vmatpush2.bf16.msra.mxu0 0
      %446 = vmatprep.subr.bf16.mxu0 0
      %447 = vmatpush2.bf16.msra.mxu0 0
      %448 = vmatprep.subr.bf16.mxu0 0
      %449 = vmatpush2.bf16.msra.mxu0 0
      %450 = vmatprep.subr.bf16.mxu0 0
      %451 = vmatpush2.bf16.msra.mxu0 0
      %452 = vmatprep.mubr.bf16.mxu0 0
      %453 = vmatmul.mubr.bf16.gmra.mxu0 %v252
      %v454 = vpop.f32.mrf.mxu0
      %v455 = vadd.f32 %v219, %v454
      %v456 = vpop.f32.mrf.mxu0
      %v457 = vadd.f32 %v223, %v456
      %v458 = vpop.f32.mrf.mxu0
      %v459 = vadd.f32 %v219, %v458
      %v460 = vpop.f32.mrf.mxu0
      %v461 = vadd.f32 %v223, %v460
      %462 = vmatprep.mubr.bf16.mxu0 0
      %463 = vmatmul.mubr.bf16.gmra.mxu0 %v253
      %v464 = vpop.f32.mrf.mxu0
      %v465 = vadd.f32 %v219, %v464
      %v466 = vpop.f32.mrf.mxu0
      %v467 = vadd.f32 %v223, %v466
      %v468 = vpop.f32.mrf.mxu0
      %v469 = vadd.f32 %v219, %v468
      %v470 = vpop.f32.mrf.mxu0
      %v471 = vadd.f32 %v223, %v470
      %472 = vmatprep.mubr.bf16.mxu0 0
      %473 = vmatmul.mubr.bf16.gmra.mxu0 %v254
      %v474 = vpop.f32.mrf.mxu0
      %v475 = vadd.f32 %v219, %v474
      %v476 = vpop.f32.mrf.mxu0
      %v477 = vadd.f32 %v223, %v476
      %v478 = vpop.f32.mrf.mxu0
      %v479 = vadd.f32 %v219, %v478
      %v480 = vpop.f32.mrf.mxu0
      %v481 = vadd.f32 %v223, %v480
      %482 = vmatprep.mubr.bf16.mxu0 0
      %483 = vmatmul.mubr.bf16.gmra.mxu0 %v255
      %v484 = vpop.f32.mrf.mxu0
      %v485 = vadd.f32 %v219, %v484
      %v486 = vpop.f32.mrf.mxu0
      %v487 = vadd.f32 %v223, %v486
      %v488 = vpop.f32.mrf.mxu0
      %v489 = vadd.f32 %v219, %v488
      %v490 = vpop.f32.mrf.mxu0
      %v491 = vadd.f32 %v223, %v490
      %492 = vdwg.mxu0
      %493 = vmatprep.subr.bf16.mxu0 %v387
      %494 = vmatpush1.bf16.msra.mxu0 %v386
      %495 = vmatprep.subr.bf16.mxu0 %v383
      %496 = vmatpush1.bf16.msra.mxu0 %v382
      %497 = vmatprep.subr.bf16.mxu0 %v379
      %498 = vmatpush1.bf16.msra.mxu0 %v378
      %499 = vmatprep.subr.bf16.mxu0 %v375
      %500 = vmatpush1.bf16.msra.mxu0 %v374
      %501 = vmatprep.subr.bf16.mxu0 %v371
      %502 = vmatpush1.bf16.msra.mxu0 %v370
      %503 = vmatprep.subr.bf16.mxu0 %v367
      %504 = vmatpush1.bf16.msra.mxu0 %v366
      %505 = vmatprep.subr.bf16.mxu0 %v363
      %506 = vmatpush1.bf16.msra.mxu0 %v362
      %507 = vmatprep.subr.bf16.mxu0 %v359
      %508 = vmatpush1.bf16.msra.mxu0 %v358
      %509 = vmatprep.subr.bf16.mxu0 0
      %510 = vmatpush2.bf16.msra.mxu0 0
      %511 = vmatprep.subr.bf16.mxu0 0
      %512 = vmatpush2.bf16.msra.mxu0 0
      %513 = vmatprep.subr.bf16.mxu0 0
      %514 = vmatpush2.bf16.msra.mxu0 0
      %515 = vmatprep.subr.bf16.mxu0 0
      %516 = vmatpush2.bf16.msra.mxu0 0
      %517 = vmatprep.subr.bf16.mxu0 0
      %518 = vmatpush2.bf16.msra.mxu0 0
      %519 = vmatprep.subr.bf16.mxu0 0
      %520 = vmatpush2.bf16.msra.mxu0 0
      %521 = vmatprep.subr.bf16.mxu0 0
      %522 = vmatpush2.bf16.msra.mxu0 0
      %523 = vmatprep.subr.bf16.mxu0 0
      %524 = vmatpush2.bf16.msra.mxu0 0
      %525 = vmatprep.mubr.bf16.mxu0 0
      %526 = vmatmul.mubr.bf16.gmra.mxu0 %v252
      %v527 = vpop.f32.mrf.mxu0
      %v528 = vadd.f32 %v227, %v527
      %v529 = vpop.f32.mrf.mxu0
      %v530 = vadd.f32 %v231, %v529
      %v531 = vpop.f32.mrf.mxu0
      %v532 = vadd.f32 %v227, %v531
      %v533 = vpop.f32.mrf.mxu0
      %v534 = vadd.f32 %v231, %v533
      %535 = vmatprep.mubr.bf16.mxu0 0
      %536 = vmatmul.mubr.bf16.gmra.mxu0 %v253
      %v537 = vpop.f32.mrf.mxu0
      %v538 = vadd.f32 %v227, %v537
      %v539 = vpop.f32.mrf.mxu0
      %v540 = vadd.f32 %v231, %v539
      %v541 = vpop.f32.mrf.mxu0
      %v542 = vadd.f32 %v227, %v541
      %v543 = vpop.f32.mrf.mxu0
      %v544 = vadd.f32 %v231, %v543
      %545 = vmatprep.mubr.bf16.mxu0 0
      %546 = vmatmul.mubr.bf16.gmra.mxu0 %v254
      %v547 = vpop.f32.mrf.mxu0
      %v548 = vadd.f32 %v227, %v547
      %v549 = vpop.f32.mrf.mxu0
      %v550 = vadd.f32 %v231, %v549
      %v551 = vpop.f32.mrf.mxu0
      %v552 = vadd.f32 %v227, %v551
      %v553 = vpop.f32.mrf.mxu0
      %v554 = vadd.f32 %v231, %v553
      %555 = vmatprep.mubr.bf16.mxu0 0
      %556 = vmatmul.mubr.bf16.gmra.mxu0 %v255
      %v557 = vpop.f32.mrf.mxu0
      %v558 = vadd.f32 %v227, %v557
      %v559 = vpop.f32.mrf.mxu0
      %v560 = vadd.f32 %v231, %v559
      %v561 = vpop.f32.mrf.mxu0
      %v562 = vadd.f32 %v227, %v561
      %v563 = vpop.f32.mrf.mxu0
      %v564 = vadd.f32 %v231, %v563
      %565 = vdwg.mxu0
      %v566 = vmax.f32 %v455, 0.0
      %v567 = vmax.f32 %v457, 0.0
      %v568 = vmax.f32 %v528, 0.0
      %v569 = vmax.f32 %v530, 0.0
      %v570 = vmax.f32 %v459, 0.0
      %v571 = vmax.f32 %v461, 0.0
      %v572 = vmax.f32 %v532, 0.0
      %v573 = vmax.f32 %v534, 0.0
      %v574 = vmax.f32 %v465, 0.0
      %v575 = vmax.f32 %v467, 0.0
      %v576 = vmax.f32 %v538, 0.0
      %v577 = vmax.f32 %v540, 0.0
      %v578 = vmax.f32 %v469, 0.0
      %v579 = vmax.f32 %v471, 0.0
      %v580 = vmax.f32 %v542, 0.0
      %v581 = vmax.f32 %v544, 0.0
      %v582 = vmax.f32 %v475, 0.0
      %v583 = vmax.f32 %v477, 0.0
      %v584 = vmax.f32 %v548, 0.0
      %v585 = vmax.f32 %v550, 0.0
      %v586 = vmax.f32 %v479, 0.0
      %v587 = vmax.f32 %v481, 0.0
      %v588 = vmax.f32 %v552, 0.0
      %v589 = vmax.f32 %v554, 0.0
      %v590 = vmax.f32 %v485, 0.0
      %v591 = vmax.f32 %v487, 0.0
      %v592 = vmax.f32 %v558, 0.0
      %v593 = vmax.f32 %v560, 0.0
      %v594 = vmax.f32 %v489, 0.0
      %v595 = vmax.f32 %v491, 0.0
      %v596 = vmax.f32 %v562, 0.0
      %v597 = vmax.f32 %v564, 0.0
      %v598 = vadd.f32 %v566, %v570
      %v599 = vadd.f32 %v598, %v574
      %v600 = vadd.f32 %v599, %v578
      %v601 = vadd.f32 %v600, %v582
      %v602 = vadd.f32 %v601, %v586
      %v603 = vadd.f32 %v602, %v590
      %v604 = vadd.f32 %v603, %v594
      %v605 = vrot.slane %v604, 4
      %v606 = vadd.f32 %v604, %v605
      %v607 = vrot.slane %v606, 2
      %v608 = vadd.f32 %v606, %v607
      %v609 = vrot.slane %v608, 1
      %v610 = vadd.f32 %v608, %v609
      %v611 = vadd.f32 %v567, %v571
      %v612 = vadd.f32 %v611, %v575
      %v613 = vadd.f32 %v612, %v579
      %v614 = vadd.f32 %v613, %v583
      %v615 = vadd.f32 %v614, %v587
      %v616 = vadd.f32 %v615, %v591
      %v617 = vadd.f32 %v616, %v595
      %v618 = vrot.slane %v617, 4
      %v619 = vadd.f32 %v617, %v618
      %v620 = vrot.slane %v619, 2
      %v621 = vadd.f32 %v619, %v620
      %v622 = vrot.slane %v621, 1
      %v623 = vadd.f32 %v621, %v622
      %v624 = vadd.f32 %v568, %v572
      %v625 = vadd.f32 %v624, %v576
      %v626 = vadd.f32 %v625, %v580
      %v627 = vadd.f32 %v626, %v584
      %v628 = vadd.f32 %v627, %v588
      %v629 = vadd.f32 %v628, %v592
      %v630 = vadd.f32 %v629, %v596
      %v631 = vrot.slane %v630, 4
      %v632 = vadd.f32 %v630, %v631
      %v633 = vrot.slane %v632, 2
      %v634 = vadd.f32 %v632, %v633
      %v635 = vrot.slane %v634, 1
      %v636 = vadd.f32 %v634, %v635
      %v637 = vadd.f32 %v569, %v573
      %v638 = vadd.f32 %v637, %v577
      %v639 = vadd.f32 %v638, %v581
      %v640 = vadd.f32 %v639, %v585
      %v641 = vadd.f32 %v640, %v589
      %v642 = vadd.f32 %v641, %v593
      %v643 = vadd.f32 %v642, %v597
      %v644 = vrot.slane %v643, 4
      %v645 = vadd.f32 %v643, %v644
      %v646 = vrot.slane %v645, 2
      %v647 = vadd.f32 %v645, %v646
      %v648 = vrot.slane %v647, 1
      %v649 = vadd.f32 %v647, %v648
      %v650 = vmul.f32 %v566, %v566
      %v651 = vmul.f32 %v567, %v567
      %v652 = vmul.f32 %v568, %v568
      %v653 = vmul.f32 %v569, %v569
      %v654 = vmul.f32 %v570, %v570
      %v655 = vmul.f32 %v571, %v571
      %v656 = vmul.f32 %v572, %v572
      %v657 = vmul.f32 %v573, %v573
      %v658 = vmul.f32 %v574, %v574
      %v659 = vmul.f32 %v575, %v575
      %v660 = vmul.f32 %v576, %v576
      %v661 = vmul.f32 %v577, %v577
      %v662 = vmul.f32 %v578, %v578
      %v663 = vmul.f32 %v579, %v579
      %v664 = vmul.f32 %v580, %v580
      %v665 = vmul.f32 %v581, %v581
      %v666 = vmul.f32 %v582, %v582
      %v667 = vmul.f32 %v583, %v583
      %v668 = vmul.f32 %v584, %v584
      %v669 = vmul.f32 %v585, %v585
      %v670 = vmul.f32 %v586, %v586
      %v671 = vmul.f32 %v587, %v587
      %v672 = vmul.f32 %v588, %v588
      %v673 = vmul.f32 %v589, %v589
      %v674 = vmul.f32 %v590, %v590
      %v675 = vmul.f32 %v591, %v591
      %v676 = vmul.f32 %v592, %v592
      %v677 = vmul.f32 %v593, %v593
      %v678 = vmul.f32 %v594, %v594
      %v679 = vmul.f32 %v595, %v595
      %v680 = vmul.f32 %v596, %v596
      %v681 = vmul.f32 %v597, %v597
      %v682 = vadd.f32 %v650, %v654
      %v683 = vadd.f32 %v682, %v658
      %v684 = vadd.f32 %v683, %v662
      %v685 = vadd.f32 %v684, %v666
      %v686 = vadd.f32 %v685, %v670
      %v687 = vadd.f32 %v686, %v674
      %v688 = vadd.f32 %v687, %v678
      %v689 = vrot.slane %v688, 4
      %v690 = vadd.f32 %v688, %v689
      %v691 = vrot.slane %v690, 2
      %v692 = vadd.f32 %v690, %v691
      %v693 = vrot.slane %v692, 1
      %v694 = vadd.f32 %v692, %v693
      %v695 = vadd.f32 %v651, %v655
      %v696 = vadd.f32 %v695, %v659
      %v697 = vadd.f32 %v696, %v663
      %v698 = vadd.f32 %v697, %v667
      %v699 = vadd.f32 %v698, %v671
      %v700 = vadd.f32 %v699, %v675
      %v701 = vadd.f32 %v700, %v679
      %v702 = vrot.slane %v701, 4
      %v703 = vadd.f32 %v701, %v702
      %v704 = vrot.slane %v703, 2
      %v705 = vadd.f32 %v703, %v704
      %v706 = vrot.slane %v705, 1
      %v707 = vadd.f32 %v705, %v706
      %v708 = vadd.f32 %v652, %v656
      %v709 = vadd.f32 %v708, %v660
      %v710 = vadd.f32 %v709, %v664
      %v711 = vadd.f32 %v710, %v668
      %v712 = vadd.f32 %v711, %v672
      %v713 = vadd.f32 %v712, %v676
      %v714 = vadd.f32 %v713, %v680
      %v715 = vrot.slane %v714, 4
      %v716 = vadd.f32 %v714, %v715
      %v717 = vrot.slane %v716, 2
      %v718 = vadd.f32 %v716, %v717
      %v719 = vrot.slane %v718, 1
      %v720 = vadd.f32 %v718, %v719
      %v721 = vadd.f32 %v653, %v657
      %v722 = vadd.f32 %v721, %v661
      %v723 = vadd.f32 %v722, %v665
      %v724 = vadd.f32 %v723, %v669
      %v725 = vadd.f32 %v724, %v673
      %v726 = vadd.f32 %v725, %v677
      %v727 = vadd.f32 %v726, %v681
      %v728 = vrot.slane %v727, 4
      %v729 = vadd.f32 %v727, %v728
      %v730 = vrot.slane %v729, 2
      %v731 = vadd.f32 %v729, %v730
      %v732 = vrot.slane %v731, 1
      %v733 = vadd.f32 %v731, %v732
      %v734 = vlaneseq
      %v735 = vshrl.u32 %v734, 7
      %vm736 = vcmp.eq.s32.totalorder %v735, 0
      %vm737 = vcmp.eq.s32.totalorder %v735, 1
      %v738 = vsel %vm737, %v694, 0.0
      %v739 = vsel %vm737, %v707, 0.0
      %v740 = vsel %vm737, %v720, 0.0
      %v741 = vsel %vm737, %v733, 0.0
      %v742 = vsel %vm736, %v610, %v738
      %v743 = vsel %vm736, %v623, %v739
      %v744 = vsel %vm736, %v636, %v740
      %v745 = vsel %vm736, %v649, %v741
      %746 = vst [vmem:[%s172] sm:$0xff] %v742
      %747 = vst [vmem:[%s172 + $0x8] sm:$0xff] %v743
      %748 = vst [vmem:[%s172 + $0x10] sm:$0xff] %v744
      %749 = vst [vmem:[%s172 + $0x18] sm:$0xff] %v745
      %p750 = scmp.lt.s32.totalorder %s14, 1
      %s751 = scalar_select %p750, %s14, 1
      %s752 = smul.addr %s751, 4
      %s753 = smul.addr %s752, 8
      %s754 = scalar_lea.vmem %s3, %s753
      // Predicated region
      $region33: #{latent_guidance_forward.5} parent=31 // pred_check
        %p755 = pneg %p100
      $region34: #{latent_guidance_forward.5} parent=31 // pred_check_branch
        %757 = sbr.rel (%p755) target = $region36
      $region35: #{latent_guidance_forward.5} parent=31 // pred_region
        _
      $region36: #{latent_guidance_forward.5} parent=31 // pred_fallthru
        _
    $region32: #{latent_guidance_forward.5} parent=5 // pred_fallthru
      _
    %p758 = scmp.le.s32.totalorder 2, %s9
    // Predicated region
    $region37: #{latent_guidance_forward.5} parent=5 // pred_check
      %p759 = pneg %p758
    $region38: #{latent_guidance_forward.5} parent=5 // pred_check_branch
      %761 = sbr.rel (%p759) target = $region40
    $region39: #{latent_guidance_forward.5} parent=5 // pred_region
      %s762 = ssub.s32 %s9, 2
      // Predicated region
      $region41: #{latent_guidance_forward.5} parent=39 // pred_check
        %p763 = pneg %p106
      $region42: #{latent_guidance_forward.5} parent=39 // pred_check_branch
        %765 = sbr.rel (%p763) target = $region44
      $region43: #{latent_guidance_forward.5} parent=39 // pred_region
        %p766 = scmp.lt.s32.totalorder %s15, 1
        %s767 = scalar_select %p766, %s15, 1
        %s768 = smul.addr %s767, 4
        %s769 = smul.addr %s768, 8
        %s770 = scalar_lea.vmem %s3, %s769
      $region44: #{latent_guidance_forward.5} parent=39 // pred_fallthru
        _
    $region40: #{latent_guidance_forward.5} parent=5 // pred_fallthru
      _
  $region6: #{latent_guidance_forward.5} parent=0 // loop_footer
    %s13 = sadd.s32 1, %s9
  $region7: #{latent_guidance_forward.5} parent=0 // loop_footer_branch
    %8 = sbr.rel target = $region3
  $region8: #{latent_guidance_forward.5} parent=0 // loop_exit
    _

// kernel: latent_guidance_forward.6
$region0: #{latent_guidance_forward.6}
  #allocation0 [shape = 'u32[]', space=smem, size = 0x4, offset = 0x4, fixed_abs, tag = 'smem constant byte address 0x4 - core index']
  #allocation1 [shape = 'u32[144,128]{1,0:T(1,128)}', space=vmem, size = 0x12000, scoped, tag = 'internal scratch']
  %s0 = inlined_call_operand.vmem [shape: bf16[128,128], index: 0, kind: input, shape index: {}]
  %s1 = inlined_call_operand.vmem [shape: bf16[128,512], index: 1, kind: input, shape index: {}]
  %s2 = inlined_call_operand.vmem [shape: f32[1,512], index: 2, kind: input, shape index: {}]
  %s3 = inlined_call_operand.vmem [shape: f32[1,512], index: 3, kind: input, shape index: {}]
  %s4 = inlined_call_operand.vmem [shape: f32[1,512], index: 4, kind: input, shape index: {}]
  %s5 = inlined_call_operand.vmem [shape: bf16[512,256], index: 5, kind: input, shape index: {}]
  %s6 = inlined_call_operand.vmem [shape: f32[1,256], index: 6, kind: input, shape index: {}]
  %s7 = inlined_call_operand.vmem [shape: bf16[128,256], index: 7, kind: output, shape index: {0}]
  %s8 = inlined_call_operand.vmem [shape: f32[2,8,256], index: 8, kind: output, shape index: {1}]
  %9 = xla_tuple %s7, %s8
  %s10 = sld [smem:[#allocation0]]
  $region69: #{latent_guidance_forward.6} parent=0
    _
  %s12 = ssub.s32 1, %s10
  %s13 = scalar_select 0, %s12, %s10
  loop: start=0, step=1, limit=4
  $region2: #{latent_guidance_forward.6} parent=0 // loop_pre_header
    _
  $region3: #{latent_guidance_forward.6} parent=0 // loop_header
    %s15 = sphi 0, %s19
    %p16 = scmp.ge.s32.totalorder %s15, 4
    %s25 = sphi 0, %s27
    %s28 = sphi 0, %s25
    %s29 = sphi 0, %s28
    %s45 = sphi 0, %s29
    %s49 = sphi 0, %s49
    %s51 = sphi 0, %s49
    %s52 = sphi 0, %s51
    %s66 = sphi 0, %s52
    %s70 = sphi 0, %s70
    %s72 = sphi 0, %s70
    %s73 = sphi 0, %s72
    %s87 = sphi 0, %s73
    %s91 = sphi 0, %s91
    %s93 = sphi 0, %s91
    %s94 = sphi 0, %s93
    %s108 = sphi 0, %s94
    %s112 = sphi 0, %s112
    %s114 = sphi 0, %s112
    %s115 = sphi 0, %s114
    %s129 = sphi 0, %s115
    %s133 = sphi 0, %s133
    %s135 = sphi 0, %s133
    %s136 = sphi 0, %s135
    %s150 = sphi 0, %s136
    %s154 = sphi 0, %s154
    %s156 = sphi 0, %s154
    %s157 = sphi 0, %s156
    %s171 = sphi 0, %s157
    %s177 = sphi 0, %s179
    %s180 = sphi 0, %s177
    %s181 = sphi 0, %s180
    %s197 = sphi 0, %s181
    %s203 = sphi 0, %s205
    %s206 = sphi 0, %s203
    %s207 = sphi 0, %s206
    %s223 = sphi 0, %s207
  $region4: #{latent_guidance_forward.6} parent=0 // loop_header_branch
    %18 = sbr.rel (%p16) target = $region8
  $region5: #{latent_guidance_forward.6} parent=0 // loop_body
    %s20 = ssub.s32 %s15, 1
    %s21 = ssub.s32 %s15, 2
    %s22 = sadd.s32 %s15, 1
    %s23 = ssub.s32 %s15, %s22
    %p24 = scmp.eq.s32.totalorder %s23, 0
    %s26 = sadd.s32 %s25, 1
    %s27 = scalar_select %p24, %s25, %s26
    %p30 = pneg %p24
    %p31 = scmp.eq.s32.totalorder %s15, 1
    %p32 = por %p30, %p31
    %p33 = scmp.ne.s32.totalorder %s25, %s28
    %p34 = scmp.eq.s32.totalorder %s15, 0
    %p35 = por %p33, %p34
    %p36 = scmp.ne.s32.totalorder %s25, %s28
    %p37 = scmp.eq.s32.totalorder %s20, 1
    %p38 = por %p36, %p37
    %p39 = scmp.ne.s32.totalorder %s28, %s29
    %p40 = scmp.eq.s32.totalorder %s20, 0
    %p41 = por %p39, %p40
    %p42 = scmp.ne.s32.totalorder %s28, %s29
    %p43 = scmp.eq.s32.totalorder %s21, 1
    %p44 = por %p42, %p43
    %p46 = scmp.ne.s32.totalorder %s29, %s45
    %p47 = scmp.eq.s32.totalorder %s21, 0
    %p48 = por %p46, %p47
    %s50 = sadd.s32 %s49, 1
    %p53 = scmp.eq.s32.totalorder %s15, 1
    %p54 = scmp.ne.s32.totalorder %s49, %s51
    %p55 = scmp.eq.s32.totalorder %s15, 0
    %p56 = por %p54, %p55
    %p57 = scmp.ne.s32.totalorder %s49, %s51
    %p58 = scmp.eq.s32.totalorder %s20, 1
    %p59 = por %p57, %p58
    %p60 = scmp.ne.s32.totalorder %s51, %s52
    %p61 = scmp.eq.s32.totalorder %s20, 0
    %p62 = por %p60, %p61
    %p63 = scmp.ne.s32.totalorder %s51, %s52
    %p64 = scmp.eq.s32.totalorder %s21, 1
    %p65 = por %p63, %p64
    %p67 = scmp.ne.s32.totalorder %s52, %s66
    %p68 = scmp.eq.s32.totalorder %s21, 0
    %p69 = por %p67, %p68
    %s71 = sadd.s32 %s70, 1
    %p74 = scmp.eq.s32.totalorder %s15, 1
    %p75 = scmp.ne.s32.totalorder %s70, %s72
    %p76 = scmp.eq.s32.totalorder %s15, 0
    %p77 = por %p75, %p76
    %p78 = scmp.ne.s32.totalorder %s70, %s72
    %p79 = scmp.eq.s32.totalorder %s20, 1
    %p80 = por %p78, %p79
    %p81 = scmp.ne.s32.totalorder %s72, %s73
    %p82 = scmp.eq.s32.totalorder %s20, 0
    %p83 = por %p81, %p82
    %p84 = scmp.ne.s32.totalorder %s72, %s73
    %p85 = scmp.eq.s32.totalorder %s21, 1
    %p86 = por %p84, %p85
    %p88 = scmp.ne.s32.totalorder %s73, %s87
    %p89 = scmp.eq.s32.totalorder %s21, 0
    %p90 = por %p88, %p89
    %s92 = sadd.s32 %s91, 1
    %p95 = scmp.eq.s32.totalorder %s15, 1
    %p96 = scmp.ne.s32.totalorder %s91, %s93
    %p97 = scmp.eq.s32.totalorder %s15, 0
    %p98 = por %p96, %p97
    %p99 = scmp.ne.s32.totalorder %s91, %s93
    %p100 = scmp.eq.s32.totalorder %s20, 1
    %p101 = por %p99, %p100
    %p102 = scmp.ne.s32.totalorder %s93, %s94
    %p103 = scmp.eq.s32.totalorder %s20, 0
    %p104 = por %p102, %p103
    %p105 = scmp.ne.s32.totalorder %s93, %s94
    %p106 = scmp.eq.s32.totalorder %s21, 1
    %p107 = por %p105, %p106
    %p109 = scmp.ne.s32.totalorder %s94, %s108
    %p110 = scmp.eq.s32.totalorder %s21, 0
    %p111 = por %p109, %p110
    %s113 = sadd.s32 %s112, 1
    %p116 = scmp.eq.s32.totalorder %s15, 1
    %p117 = scmp.ne.s32.totalorder %s112, %s114
    %p118 = scmp.eq.s32.totalorder %s15, 0
    %p119 = por %p117, %p118
    %p120 = scmp.ne.s32.totalorder %s112, %s114
    %p121 = scmp.eq.s32.totalorder %s20, 1
    %p122 = por %p120, %p121
    %p123 = scmp.ne.s32.totalorder %s114, %s115
    %p124 = scmp.eq.s32.totalorder %s20, 0
    %p125 = por %p123, %p124
    %p126 = scmp.ne.s32.totalorder %s114, %s115
    %p127 = scmp.eq.s32.totalorder %s21, 1
    %p128 = por %p126, %p127
    %p130 = scmp.ne.s32.totalorder %s115, %s129
    %p131 = scmp.eq.s32.totalorder %s21, 0
    %p132 = por %p130, %p131
    %s134 = sadd.s32 %s133, 1
    %p137 = scmp.eq.s32.totalorder %s15, 1
    %p138 = scmp.ne.s32.totalorder %s133, %s135
    %p139 = scmp.eq.s32.totalorder %s15, 0
    %p140 = por %p138, %p139
    %p141 = scmp.ne.s32.totalorder %s133, %s135
    %p142 = scmp.eq.s32.totalorder %s20, 1
    %p143 = por %p141, %p142
    %p144 = scmp.ne.s32.totalorder %s135, %s136
    %p145 = scmp.eq.s32.totalorder %s20, 0
    %p146 = por %p144, %p145
    %p147 = scmp.ne.s32.totalorder %s135, %s136
    %p148 = scmp.eq.s32.totalorder %s21, 1
    %p149 = por %p147, %p148
    %p151 = scmp.ne.s32.totalorder %s136, %s150
    %p152 = scmp.eq.s32.totalorder %s21, 0
    %p153 = por %p151, %p152
    %s155 = sadd.s32 %s154, 1
    %p158 = scmp.eq.s32.totalorder %s15, 1
    %p159 = scmp.ne.s32.totalorder %s154, %s156
    %p160 = scmp.eq.s32.totalorder %s15, 0
    %p161 = por %p159, %p160
    %p162 = scmp.ne.s32.totalorder %s154, %s156
    %p163 = scmp.eq.s32.totalorder %s20, 1
    %p164 = por %p162, %p163
    %p165 = scmp.ne.s32.totalorder %s156, %s157
    %p166 = scmp.eq.s32.totalorder %s20, 0
    %p167 = por %p165, %p166
    %p168 = scmp.ne.s32.totalorder %s156, %s157
    %p169 = scmp.eq.s32.totalorder %s21, 1
    %p170 = por %p168, %p169
    %p172 = scmp.ne.s32.totalorder %s157, %s171
    %p173 = scmp.eq.s32.totalorder %s21, 0
    %p174 = por %p172, %p173
    %s175 = ssub.s32 %s15, %s22
    %p176 = scmp.eq.s32.totalorder %s175, 0
    %s178 = sadd.s32 %s177, 1
    %s179 = scalar_select %p176, %s177, %s178
    %p182 = pneg %p176
    %p183 = scmp.eq.s32.totalorder %s15, 1
    %p184 = por %p182, %p183
    %p185 = scmp.ne.s32.totalorder %s177, %s180
    %p186 = scmp.eq.s32.totalorder %s15, 0
    %p187 = por %p185, %p186
    %p188 = scmp.ne.s32.totalorder %s177, %s180
    %p189 = scmp.eq.s32.totalorder %s20, 1
    %p190 = por %p188, %p189
    %p191 = scmp.ne.s32.totalorder %s180, %s181
    %p192 = scmp.eq.s32.totalorder %s20, 0
    %p193 = por %p191, %p192
    %p194 = scmp.ne.s32.totalorder %s180, %s181
    %p195 = scmp.eq.s32.totalorder %s21, 1
    %p196 = por %p194, %p195
    %p198 = scmp.ne.s32.totalorder %s181, %s197
    %p199 = scmp.eq.s32.totalorder %s21, 0
    %p200 = por %p198, %p199
    %s201 = ssub.s32 %s15, %s22
    %p202 = scmp.eq.s32.totalorder %s201, 0
    %s204 = sadd.s32 %s203, 1
    %s205 = scalar_select %p202, %s203, %s204
    %p208 = pneg %p202
    %p209 = scmp.eq.s32.totalorder %s15, 1
    %p210 = por %p208, %p209
    %p211 = scmp.ne.s32.totalorder %s203, %s206
    %p212 = scmp.eq.s32.totalorder %s15, 0
    %p213 = por %p211, %p212
    %p214 = scmp.ne.s32.totalorder %s203, %s206
    %p215 = scmp.eq.s32.totalorder %s20, 1
    %p216 = por %p214, %p215
    %p217 = scmp.ne.s32.totalorder %s206, %s207
    %p218 = scmp.eq.s32.totalorder %s20, 0
    %p219 = por %p217, %p218
    %p220 = scmp.ne.s32.totalorder %s206, %s207
    %p221 = scmp.eq.s32.totalorder %s21, 1
    %p222 = por %p220, %p221
    %p224 = scmp.ne.s32.totalorder %s207, %s223
    %p225 = scmp.eq.s32.totalorder %s21, 0
    %p226 = por %p224, %p225
    %p227 = scmp.le.s32.totalorder 1, %s15
    %p228 = scmp.lt.s32.totalorder %s15, 3
    %p229 = pnand %p227, %p228
    %p230 = pneg %p229
    // Predicated region
    $region9: #{latent_guidance_forward.6} parent=5 // pred_check
      _
    $region10: #{latent_guidance_forward.6} parent=5 // pred_check_branch
      %232 = sbr.rel (%p229) target = $region12
    $region11: #{latent_guidance_forward.6} parent=5 // pred_region
      %s233 = ssub.s32 %s15, 1
      // Predicated region
      $region13: #{latent_guidance_forward.6} parent=11 // pred_check
        %p234 = pneg %p62
      $region14: #{latent_guidance_forward.6} parent=11 // pred_check_branch
        %236 = sbr.rel (%p234) target = $region16
      $region15: #{latent_guidance_forward.6} parent=11 // pred_region
        _
      $region16: #{latent_guidance_forward.6} parent=11 // pred_fallthru
        _
      // Predicated region
      $region17: #{latent_guidance_forward.6} parent=11 // pred_check
        %p237 = pneg %p83
      $region18: #{latent_guidance_forward.6} parent=11 // pred_check_branch
        %239 = sbr.rel (%p237) target = $region20
      $region19: #{latent_guidance_forward.6} parent=11 // pred_region
        _
      $region20: #{latent_guidance_forward.6} parent=11 // pred_fallthru
        _
      // Predicated region
      $region21: #{latent_guidance_forward.6} parent=11 // pred_check
        %p240 = pneg %p104
      $region22: #{latent_guidance_forward.6} parent=11 // pred_check_branch
        %242 = sbr.rel (%p240) target = $region24
      $region23: #{latent_guidance_forward.6} parent=11 // pred_region
        _
      $region24: #{latent_guidance_forward.6} parent=11 // pred_fallthru
        _
      // Predicated region
      $region25: #{latent_guidance_forward.6} parent=11 // pred_check
        %p243 = pneg %p125
      $region26: #{latent_guidance_forward.6} parent=11 // pred_check_branch
        %245 = sbr.rel (%p243) target = $region28
      $region27: #{latent_guidance_forward.6} parent=11 // pred_region
        _
      $region28: #{latent_guidance_forward.6} parent=11 // pred_fallthru
        _
      // Predicated region
      $region29: #{latent_guidance_forward.6} parent=11 // pred_check
        %p246 = pneg %p146
      $region30: #{latent_guidance_forward.6} parent=11 // pred_check_branch
        %248 = sbr.rel (%p246) target = $region32
      $region31: #{latent_guidance_forward.6} parent=11 // pred_region
        _
      $region32: #{latent_guidance_forward.6} parent=11 // pred_fallthru
        _
      // Predicated region
      $region33: #{latent_guidance_forward.6} parent=11 // pred_check
        %p249 = pneg %p167
      $region34: #{latent_guidance_forward.6} parent=11 // pred_check_branch
        %251 = sbr.rel (%p249) target = $region36
      $region35: #{latent_guidance_forward.6} parent=11 // pred_region
        _
      $region36: #{latent_guidance_forward.6} parent=11 // pred_fallthru
        _
    $region12: #{latent_guidance_forward.6} parent=5 // pred_fallthru
      _
    %p252 = scmp.lt.s32.totalorder %s15, 2
    // Predicated region
    $region37: #{latent_guidance_forward.6} parent=5 // pred_check
      %p253 = pneg %p252
    $region38: #{latent_guidance_forward.6} parent=5 // pred_check_branch
      %255 = sbr.rel (%p253) target = $region40
    $region39: #{latent_guidance_forward.6} parent=5 // pred_region
      // Predicated region
      $region41: #{latent_guidance_forward.6} parent=39 // pred_check
        %p256 = pneg %p35
      $region42: #{latent_guidance_forward.6} parent=39 // pred_check_branch
        %258 = sbr.rel (%p256) target = $region44
      $region43: #{latent_guidance_forward.6} parent=39 // pred_region
        %s259 = smul.u32 8, %s15
        %p260 = scmp.lt.s32.totalorder %s259, 15
        %s261 = scalar_select %p260, %s259, 15
        %s262 = smul.addr %s261, 4
        %s263 = scalar_lea.vmem %s0, %s262
        %s264 = smul.u32 8, %s15
      $region44: #{latent_guidance_forward.6} parent=39 // pred_fallthru
        _
    $region40: #{latent_guidance_forward.6} parent=5 // pred_fallthru
      _
    %p265 = scmp.le.s32.totalorder 1, %s15
    %p266 = scmp.lt.s32.totalorder %s15, 3
    %p267 = pnand %p265, %p266
    %p268 = pneg %p267
    // Predicated region
    $region45: #{latent_guidance_forward.6} parent=5 // pred_check
      _
    $region46: #{latent_guidance_forward.6} parent=5 // pred_check_branch
      %270 = sbr.rel (%p267) target = $region48
    $region47: #{latent_guidance_forward.6} parent=5 // pred_region
      %s271 = ssub.s32 %s15, 1
      %s272 = smul.u32 8, %s20
      %p273 = scmp.lt.s32.totalorder %s272, 15
      %s274 = scalar_select %p273, %s272, 15
      %s275 = smul.addr %s274, 4
      %s276 = scalar_lea.vmem %s0, %s275
      %p277 = pneg %p41
      %p278 = pneg %p38
      %p279 = pneg %p62
      %p280 = pneg %p59
      %p281 = pneg %p83
      %p282 = pneg %p80
      %p283 = pneg %p104
      %p284 = pneg %p101
      %p285 = pneg %p125
      %p286 = pneg %p122
      %p287 = pneg %p146
      %p288 = pneg %p143
      %p289 = pneg %p167
      %p290 = pneg %p164
      %p291 = pneg %p193
      %p292 = pneg %p190
      %s293 = smul.u32 8, %s20
      %p294 = scmp.lt.s32.totalorder %s293, 15
      %s295 = scalar_select %p294, %s293, 15
      %s296 = smul.addr %s295, 2
      %s297 = smul.addr %s296, 4
      %s298 = scalar_lea.vmem %s7, %s297
      %p299 = pneg %p219
      %p300 = pneg %p216
      %p301 = scmp.lt.s32.totalorder %s20, 1
      %s302 = scalar_select %p301, %s20, 1
      %s303 = smul.addr %s302, 2
      %s304 = smul.addr %s303, 8
      %s305 = scalar_lea.vmem %s8, %s304
      %s306 = smul.u32 8, %s20
      %p307 = scmp.lt.s32.totalorder %s306, 15
      %s308 = scalar_select %p307, %s306, 15
      %s309 = smul.addr %s308, 4
      %s310 = scalar_lea.vmem %s0, %s309
      %s311 = smul.u32 8, %s20
      %s312 = smul.u32 8, %s20
      %p313 = scmp.lt.s32.totalorder %s312, 15
      %s314 = scalar_select %p313, %s312, 15
      %s315 = smul.addr %s314, 2
      %s316 = smul.addr %s315, 4
      %s317 = scalar_lea.vmem %s7, %s316
      %s318 = smul.u32 8, %s20
      %p319 = scmp.lt.s32.totalorder %s20, 1
      %s320 = scalar_select %p319, %s20, 1
      %s321 = smul.addr %s320, 2
      %s322 = smul.addr %s321, 8
      %s323 = scalar_lea.vmem %s8, %s322
      %v325 = vld [vmem:[%s310] sm:$0xf]
      %v326 = vld [vmem:[%s310 + $0x4] sm:$0xf]
      %v327 = vld [vmem:[%s310 + $0x8] sm:$0xf]
      %v328 = vld [vmem:[%s310 + $0xc] sm:$0xf]
      %v329 = vld [vmem:[%s310 + $0x10] sm:$0xf]
      %v330 = vld [vmem:[%s310 + $0x14] sm:$0xf]
      %v331 = vld [vmem:[%s310 + $0x18] sm:$0xf]
      %v332 = vld [vmem:[%s310 + $0x1c] sm:$0xf]
      %v333 = vld [vmem:[%s1] sm:$0xff]
      %v334 = vld [vmem:[%s1 + $0x8] sm:$0xff]
      %v335 = vld [vmem:[%s1 + $0x10] sm:$0xff]
      %v336 = vld [vmem:[%s1 + $0x18] sm:$0xff]
      %v337 = vld [vmem:[%s1 + $0x20] sm:$0xff]
      %v338 = vld [vmem:[%s1 + $0x28] sm:$0xff]
      %v339 = vld [vmem:[%s1 + $0x30] sm:$0xff]
      %v340 = vld [vmem:[%s1 + $0x38] sm:$0xff]
      %v341 = vld [vmem:[%s1 + $0x40] sm:$0xff]
      %v342 = vld [vmem:[%s1 + $0x48] sm:$0xff]
      %v343 = vld [vmem:[%s1 + $0x50] sm:$0xff]
      %v344 = vld [vmem:[%s1 + $0x58] sm:$0xff]
      %v345 = vld [vmem:[%s1 + $0x60] sm:$0xff]
      %v346 = vld [vmem:[%s1 + $0x68] sm:$0xff]
      %v347 = vld [vmem:[%s1 + $0x70] sm:$0xff]
      %v348 = vld [vmem:[%s1 + $0x78] sm:$0xff]
      %v349 = vld [vmem:[%s1 + $0x80] sm:$0xff]
      %v350 = vld [vmem:[%s1 + $0x88] sm:$0xff]
      %v351 = vld [vmem:[%s1 + $0x90] sm:$0xff]
      %v352 = vld [vmem:[%s1 + $0x98] sm:$0xff]
      %v353 = vld [vmem:[%s1 + $0xa0] sm:$0xff]
      %v354 = vld [vmem:[%s1 + $0xa8] sm:$0xff]
      %v355 = vld [vmem:[%s1 + $0xb0] sm:$0xff]
      %v356 = vld [vmem:[%s1 + $0xb8] sm:$0xff]
      %v357 = vld [vmem:[%s1 + $0xc0] sm:$0xff]
      %v358 = vld [vmem:[%s1 + $0xc8] sm:$0xff]
      %v359 = vld [vmem:[%s1 + $0xd0] sm:$0xff]
      %v360 = vld [vmem:[%s1 + $0xd8] sm:$0xff]
      %v361 = vld [vmem:[%s1 + $0xe0] sm:$0xff]
      %v362 = vld [vmem:[%s1 + $0xe8] sm:$0xff]
      %v363 = vld [vmem:[%s1 + $0xf0] sm:$0xff]
      %v364 = vld [vmem:[%s1 + $0xf8] sm:$0xff]
      %v365 = vld [vmem:[%s2] sm:$0xf]
      %v367 = vlaneseq
      %v368 = vshrl.u32 %v367, 7
      %v369 = vsub.s32 0, %v368
      %v370 = vrot.slane %v365, %v369
      %v371 = vlaneseq
      %v372 = vshrl.u32 %v371, 7
      %v373 = vsub.s32 1, %v372
      %v374 = vrot.slane %v365, %v373
      %v375 = vlaneseq
      %v376 = vshrl.u32 %v375, 7
      %v377 = vsub.s32 2, %v376
      %v378 = vrot.slane %v365, %v377
      %v379 = vlaneseq
      %v380 = vshrl.u32 %v379, 7
      %v381 = vsub.s32 3, %v380
      %v382 = vrot.slane %v365, %v381
      %v395 = vunpack.c.l.b16 %v325
      %v396 = vunpack.c.l.b16 %v326
      %v397 = vunpack.c.l.b16 %v327
      %v398 = vunpack.c.l.b16 %v328
      %v399 = vunpack.c.l.b16 %v329
      %v400 = vunpack.c.l.b16 %v330
      %v401 = vunpack.c.l.b16 %v331
      %v402 = vunpack.c.l.b16 %v332
      %v403 = vpack.c.b16 %v396, %v395
      %v404 = vpack.c.b16 %v398, %v397
      %v405 = vpack.c.b16 %v400, %v399
      %v406 = vpack.c.b16 %v402, %v401
      %v443 = vunpack.c.l.b16 %v333
      %v444 = vunpack.c.h.b16 %v333
      %v445 = vunpack.c.l.b16 %v334
      %v446 = vunpack.c.h.b16 %v334
      %v447 = vunpack.c.l.b16 %v335
      %v448 = vunpack.c.h.b16 %v335
      %v449 = vunpack.c.l.b16 %v336
      %v450 = vunpack.c.h.b16 %v336
      %v451 = vunpack.c.l.b16 %v337
      %v452 = vunpack.c.h.b16 %v337
      %v453 = vunpack.c.l.b16 %v338
      %v454 = vunpack.c.h.b16 %v338
      %v455 = vunpack.c.l.b16 %v339
      %v456 = vunpack.c.h.b16 %v339
      %v457 = vunpack.c.l.b16 %v340
      %v458 = vunpack.c.h.b16 %v340
      %v459 = vunpack.c.l.b16 %v341
      %v460 = vunpack.c.h.b16 %v341
      %v461 = vunpack.c.l.b16 %v342
      %v462 = vunpack.c.h.b16 %v342
      %v463 = vunpack.c.l.b16 %v343
      %v464 = vunpack.c.h.b16 %v343
      %v465 = vunpack.c.l.b16 %v344
      %v466 = vunpack.c.h.b16 %v344
      %v467 = vunpack.c.l.b16 %v345
      %v468 = vunpack.c.h.b16 %v345
      %v469 = vunpack.c.l.b16 %v346
      %v470 = vunpack.c.h.b16 %v346
      %v471 = vunpack.c.l.b16 %v347
      %v472 = vunpack.c.h.b16 %v347
      %v473 = vunpack.c.l.b16 %v348
      %v474 = vunpack.c.h.b16 %v348
      %v475 = vunpack.c.l.b16 %v349
      %v476 = vunpack.c.h.b16 %v349
      %v477 = vunpack.c.l.b16 %v350
      %v478 = vunpack.c.h.b16 %v350
      %v479 = vunpack.c.l.b16 %v351
      %v480 = vunpack.c.h.b16 %v351
      %v481 = vunpack.c.l.b16 %v352
      %v482 = vunpack.c.h.b16 %v352
      %v483 = vunpack.c.l.b16 %v353
      %v484 = vunpack.c.h.b16 %v353
      %v485 = vunpack.c.l.b16 %v354
      %v486 = vunpack.c.h.b16 %v354
      %v487 = vunpack.c.l.b16 %v355
      %v488 = vunpack.c.h.b16 %v355
      %v489 = vunpack.c.l.b16 %v356
      %v490 = vunpack.c.h.b16 %v356
      %v491 = vunpack.c.l.b16 %v357
      %v492 = vunpack.c.h.b16 %v357
      %v493 = vunpack.c.l.b16 %v358
      %v494 = vunpack.c.h.b16 %v358
      %v495 = vunpack.c.l.b16 %v359
      %v496 = vunpack.c.h.b16 %v359
      %v497 = vunpack.c.l.b16 %v360
      %v498 = vunpack.c.h.b16 %v360
      %v499 = vunpack.c.l.b16 %v361
      %v500 = vunpack.c.h.b16 %v361
      %v501 = vunpack.c.l.b16 %v362
      %v502 = vunpack.c.h.b16 %v362
      %v503 = vunpack.c.l.b16 %v363
      %v504 = vunpack.c.h.b16 %v363
      %v505 = vunpack.c.l.b16 %v364
      %v506 = vunpack.c.h.b16 %v364
      %v507 = vpack.c.b16 %v447, %v443
      %v508 = vpack.c.b16 %v448, %v444
      %v509 = vpack.c.b16 %v449, %v445
      %v510 = vpack.c.b16 %v450, %v446
      %v511 = vpack.c.b16 %v455, %v451
      %v512 = vpack.c.b16 %v456, %v452
      %v513 = vpack.c.b16 %v457, %v453
      %v514 = vpack.c.b16 %v458, %v454
      %v515 = vpack.c.b16 %v463, %v459
      %v516 = vpack.c.b16 %v464, %v460
      %v517 = vpack.c.b16 %v465, %v461
      %v518 = vpack.c.b16 %v466, %v462
      %v519 = vpack.c.b16 %v471, %v467
      %v520 = vpack.c.b16 %v472, %v468
      %v521 = vpack.c.b16 %v473, %v469
      %v522 = vpack.c.b16 %v474, %v470
      %v523 = vpack.c.b16 %v479, %v475
      %v524 = vpack.c.b16 %v480, %v476
      %v525 = vpack.c.b16 %v481, %v477
      %v526 = vpack.c.b16 %v482, %v478
      %v527 = vpack.c.b16 %v487, %v483
      %v528 = vpack.c.b16 %v488, %v484
      %v529 = vpack.c.b16 %v489, %v485
      %v530 = vpack.c.b16 %v490, %v486
      %v531 = vpack.c.b16 %v495, %v491
      %v532 = vpack.c.b16 %v496, %v492
      %v533 = vpack.c.b16 %v497, %v493
      %v534 = vpack.c.b16 %v498, %v494
      %v535 = vpack.c.b16 %v503, %v499
      %v536 = vpack.c.b16 %v504, %v500
      %v537 = vpack.c.b16 %v505, %v501
      %v538 = vpack.c.b16 %v506, %v502
      %571 = vmatprep.subr.bf16.mxu0 %v536
      %572 = vmatpush1.bf16.msra.mxu0 %v535
      %573 = vmatprep.subr.bf16.mxu0 %v532
      %574 = vmatpush1.bf16.msra.mxu0 %v531
      %575 = vmatprep.subr.bf16.mxu0 %v528
      %576 = vmatpush1.bf16.msra.mxu0 %v527
      %577 = vmatprep.subr.bf16.mxu0 %v524
      %578 = vmatpush1.bf16.msra.mxu0 %v523
      %579 = vmatprep.subr.bf16.mxu0 %v520
      %580 = vmatpush1.bf16.msra.mxu0 %v519
      %581 = vmatprep.subr.bf16.mxu0 %v516
      %582 = vmatpush1.bf16.msra.mxu0 %v515
      %583 = vmatprep.subr.bf16.mxu0 %v512
      %584 = vmatpush1.bf16.msra.mxu0 %v511
      %585 = vmatprep.subr.bf16.mxu0 %v508
      %586 = vmatpush1.bf16.msra.mxu0 %v507
      %587 = vmatprep.subr.bf16.mxu0 0
      %588 = vmatpush2.bf16.msra.mxu0 0
      %589 = vmatprep.subr.bf16.mxu0 0
      %590 = vmatpush2.bf16.msra.mxu0 0
      %591 = vmatprep.subr.bf16.mxu0 0
      %592 = vmatpush2.bf16.msra.mxu0 0
      %593 = vmatprep.subr.bf16.mxu0 0
      %594 = vmatpush2.bf16.msra.mxu0 0
      %595 = vmatprep.subr.bf16.mxu0 0
      %596 = vmatpush2.bf16.msra.mxu0 0
      %597 = vmatprep.subr.bf16.mxu0 0
      %598 = vmatpush2.bf16.msra.mxu0 0
      %599 = vmatprep.subr.bf16.mxu0 0
      %600 = vmatpush2.bf16.msra.mxu0 0
      %601 = vmatprep.subr.bf16.mxu0 0
      %602 = vmatpush2.bf16.msra.mxu0 0
      %603 = vmatprep.mubr.bf16.mxu0 0
      %604 = vmatmul.mubr.bf16.gmra.mxu0 %v403
      %v605 = vpop.f32.mrf.mxu0
      %v606 = vadd.f32 %v370, %v605
      %v607 = vpop.f32.mrf.mxu0
      %v608 = vadd.f32 %v374, %v607
      %v609 = vpop.f32.mrf.mxu0
      %v610 = vadd.f32 %v370, %v609
      %v611 = vpop.f32.mrf.mxu0
      %v612 = vadd.f32 %v374, %v611
      %613 = vmatprep.mubr.bf16.mxu0 0
      %614 = vmatmul.mubr.bf16.gmra.mxu0 %v404
      %v615 = vpop.f32.mrf.mxu0
      %v616 = vadd.f32 %v370, %v615
      %v617 = vpop.f32.mrf.mxu0
      %v618 = vadd.f32 %v374, %v617
      %v619 = vpop.f32.mrf.mxu0
      %v620 = vadd.f32 %v370, %v619
      %v621 = vpop.f32.mrf.mxu0
      %v622 = vadd.f32 %v374, %v621
      %623 = vmatprep.mubr.bf16.mxu0 0
      %624 = vmatmul.mubr.bf16.gmra.mxu0 %v405
      %v625 = vpop.f32.mrf.mxu0
      %v626 = vadd.f32 %v370, %v625
      %v627 = vpop.f32.mrf.mxu0
      %v628 = vadd.f32 %v374, %v627
      %v629 = vpop.f32.mrf.mxu0
      %v630 = vadd.f32 %v370, %v629
      %v631 = vpop.f32.mrf.mxu0
      %v632 = vadd.f32 %v374, %v631
      %633 = vmatprep.mubr.bf16.mxu0 0
      %634 = vmatmul.mubr.bf16.gmra.mxu0 %v406
      %v635 = vpop.f32.mrf.mxu0
      %v636 = vadd.f32 %v370, %v635
      %v637 = vpop.f32.mrf.mxu0
      %v638 = vadd.f32 %v374, %v637
      %v639 = vpop.f32.mrf.mxu0
      %v640 = vadd.f32 %v370, %v639
      %v641 = vpop.f32.mrf.mxu0
      %v642 = vadd.f32 %v374, %v641
      %643 = vdwg.mxu0
      %644 = vmatprep.subr.bf16.mxu0 %v538
      %645 = vmatpush1.bf16.msra.mxu0 %v537
      %646 = vmatprep.subr.bf16.mxu0 %v534
      %647 = vmatpush1.bf16.msra.mxu0 %v533
      %648 = vmatprep.subr.bf16.mxu0 %v530
      %649 = vmatpush1.bf16.msra.mxu0 %v529
      %650 = vmatprep.subr.bf16.mxu0 %v526
      %651 = vmatpush1.bf16.msra.mxu0 %v525
      %652 = vmatprep.subr.bf16.mxu0 %v522
      %653 = vmatpush1.bf16.msra.mxu0 %v521
      %654 = vmatprep.subr.bf16.mxu0 %v518
      %655 = vmatpush1.bf16.msra.mxu0 %v517
      %656 = vmatprep.subr.bf16.mxu0 %v514
      %657 = vmatpush1.bf16.msra.mxu0 %v513
      %658 = vmatprep.subr.bf16.mxu0 %v510
      %659 = vmatpush1.bf16.msra.mxu0 %v509
      %660 = vmatprep.subr.bf16.mxu0 0
      %661 = vmatpush2.bf16.msra.mxu0 0
      %662 = vmatprep.subr.bf16.mxu0 0
      %663 = vmatpush2.bf16.msra.mxu0 0
      %664 = vmatprep.subr.bf16.mxu0 0
      %665 = vmatpush2.bf16.msra.mxu0 0
      %666 = vmatprep.subr.bf16.mxu0 0
      %667 = vmatpush2.bf16.msra.mxu0 0
      %668 = vmatprep.subr.bf16.mxu0 0
      %669 = vmatpush2.bf16.msra.mxu0 0
      %670 = vmatprep.subr.bf16.mxu0 0
      %671 = vmatpush2.bf16.msra.mxu0 0
      %672 = vmatprep.subr.bf16.mxu0 0
      %673 = vmatpush2.bf16.msra.mxu0 0
      %674 = vmatprep.subr.bf16.mxu0 0
      %675 = vmatpush2.bf16.msra.mxu0 0
      %676 = vmatprep.mubr.bf16.mxu0 0
      %677 = vmatmul.mubr.bf16.gmra.mxu0 %v403
      %v678 = vpop.f32.mrf.mxu0
      %v679 = vadd.f32 %v378, %v678
      %v680 = vpop.f32.mrf.mxu0
      %v681 = vadd.f32 %v382, %v680
      %v682 = vpop.f32.mrf.mxu0
      %v683 = vadd.f32 %v378, %v682
      %v684 = vpop.f32.mrf.mxu0
      %v685 = vadd.f32 %v382, %v684
      %686 = vmatprep.mubr.bf16.mxu0 0
      %687 = vmatmul.mubr.bf16.gmra.mxu0 %v404
      %v688 = vpop.f32.mrf.mxu0
      %v689 = vadd.f32 %v378, %v688
      %v690 = vpop.f32.mrf.mxu0
      %v691 = vadd.f32 %v382, %v690
      %v692 = vpop.f32.mrf.mxu0
      %v693 = vadd.f32 %v378, %v692
      %v694 = vpop.f32.mrf.mxu0
      %v695 = vadd.f32 %v382, %v694
      %696 = vmatprep.mubr.bf16.mxu0 0
      %697 = vmatmul.mubr.bf16.gmra.mxu0 %v405
      %v698 = vpop.f32.mrf.mxu0
      %v699 = vadd.f32 %v378, %v698
      %v700 = vpop.f32.mrf.mxu0
      %v701 = vadd.f32 %v382, %v700
      %v702 = vpop.f32.mrf.mxu0
      %v703 = vadd.f32 %v378, %v702
      %v704 = vpop.f32.mrf.mxu0
      %v705 = vadd.f32 %v382, %v704
      %706 = vmatprep.mubr.bf16.mxu0 0
      %707 = vmatmul.mubr.bf16.gmra.mxu0 %v406
      %v708 = vpop.f32.mrf.mxu0
      %v709 = vadd.f32 %v378, %v708
      %v710 = vpop.f32.mrf.mxu0
      %v711 = vadd.f32 %v382, %v710
      %v712 = vpop.f32.mrf.mxu0
      %v713 = vadd.f32 %v378, %v712
      %v714 = vpop.f32.mrf.mxu0
      %v715 = vadd.f32 %v382, %v714
      %716 = vdwg.mxu0
      %v717 = vmax.f32 %v606, 0.0
      %v718 = vmax.f32 %v608, 0.0
      %v719 = vmax.f32 %v679, 0.0
      %v720 = vmax.f32 %v681, 0.0
      %v721 = vmax.f32 %v610, 0.0
      %v722 = vmax.f32 %v612, 0.0
      %v723 = vmax.f32 %v683, 0.0
      %v724 = vmax.f32 %v685, 0.0
      %v725 = vmax.f32 %v616, 0.0
      %v726 = vmax.f32 %v618, 0.0
      %v727 = vmax.f32 %v689, 0.0
      %v728 = vmax.f32 %v691, 0.0
      %v729 = vmax.f32 %v620, 0.0
      %v730 = vmax.f32 %v622, 0.0
      %v731 = vmax.f32 %v693, 0.0
      %v732 = vmax.f32 %v695, 0.0
      %v733 = vmax.f32 %v626, 0.0
      %v734 = vmax.f32 %v628, 0.0
      %v735 = vmax.f32 %v699, 0.0
      %v736 = vmax.f32 %v701, 0.0
      %v737 = vmax.f32 %v630, 0.0
      %v738 = vmax.f32 %v632, 0.0
      %v739 = vmax.f32 %v703, 0.0
      %v740 = vmax.f32 %v705, 0.0
      %v741 = vmax.f32 %v636, 0.0
      %v742 = vmax.f32 %v638, 0.0
      %v743 = vmax.f32 %v709, 0.0
      %v744 = vmax.f32 %v711, 0.0
      %v745 = vmax.f32 %v640, 0.0
      %v746 = vmax.f32 %v642, 0.0
      %v747 = vmax.f32 %v713, 0.0
      %v748 = vmax.f32 %v715, 0.0
      %v749 = vld [vmem:[%s3] sm:$0xf]
      %v751 = vlaneseq
      %v752 = vshrl.u32 %v751, 7
      %v753 = vsub.s32 0, %v752
      %v754 = vrot.slane %v749, %v753
      %v755 = vlaneseq
      %v756 = vshrl.u32 %v755, 7
      %v757 = vsub.s32 1, %v756
      %v758 = vrot.slane %v749, %v757
      %v759 = vlaneseq
      %v760 = vshrl.u32 %v759, 7
      %v761 = vsub.s32 2, %v760
      %v762 = vrot.slane %v749, %v761
      %v763 = vlaneseq
      %v764 = vshrl.u32 %v763, 7
      %v765 = vsub.s32 3, %v764
      %v766 = vrot.slane %v749, %v765
      %v771 = vmul.f32 %v717, %v754
      %v772 = vmul.f32 %v718, %v758
      %v773 = vmul.f32 %v719, %v762
      %v774 = vmul.f32 %v720, %v766
      %v775 = vmul.f32 %v721, %v754
      %v776 = vmul.f32 %v722, %v758
      %v777 = vmul.f32 %v723, %v762
      %v778 = vmul.f32 %v724, %v766
      %v779 = vmul.f32 %v725, %v754
      %v780 = vmul.f32 %v726, %v758
      %v781 = vmul.f32 %v727, %v762
      %v782 = vmul.f32 %v728, %v766
      %v783 = vmul.f32 %v729, %v754
      %v784 = vmul.f32 %v730, %v758
      %v785 = vmul.f32 %v731, %v762
      %v786 = vmul.f32 %v732, %v766
      %v787 = vmul.f32 %v733, %v754
      %v788 = vmul.f32 %v734, %v758
      %v789 = vmul.f32 %v735, %v762
      %v790 = vmul.f32 %v736, %v766
      %v791 = vmul.f32 %v737, %v754
      %v792 = vmul.f32 %v738, %v758
      %v793 = vmul.f32 %v739, %v762
      %v794 = vmul.f32 %v740, %v766
      %v795 = vmul.f32 %v741, %v754
      %v796 = vmul.f32 %v742, %v758
      %v797 = vmul.f32 %v743, %v762
      %v798 = vmul.f32 %v744, %v766
      %v799 = vmul.f32 %v745, %v754
      %v800 = vmul.f32 %v746, %v758
      %v801 = vmul.f32 %v747, %v762
      %v802 = vmul.f32 %v748, %v766
      %v803 = vld [vmem:[%s4] sm:$0xf]
      %v805 = vlaneseq
      %v806 = vshrl.u32 %v805, 7
      %v807 = vsub.s32 0, %v806
      %v808 = vrot.slane %v803, %v807
      %v809 = vlaneseq
      %v810 = vshrl.u32 %v809, 7
      %v811 = vsub.s32 1, %v810
      %v812 = vrot.slane %v803, %v811
      %v813 = vlaneseq
      %v814 = vshrl.u32 %v813, 7
      %v815 = vsub.s32 2, %v814
      %v816 = vrot.slane %v803, %v815
      %v817 = vlaneseq
      %v818 = vshrl.u32 %v817, 7
      %v819 = vsub.s32 3, %v818
      %v820 = vrot.slane %v803, %v819
      %v825 = vadd.f32 %v771, %v808
      %v826 = vadd.f32 %v772, %v812
      %v827 = vadd.f32 %v773, %v816
      %v828 = vadd.f32 %v774, %v820
      %v829 = vadd.f32 %v775, %v808
      %v830 = vadd.f32 %v776, %v812
      %v831 = vadd.f32 %v777, %v816
      %v832 = vadd.f32 %v778, %v820
      %v833 = vadd.f32 %v779, %v808
      %v834 = vadd.f32 %v780, %v812
      %v835 = vadd.f32 %v781, %v816
      %v836 = vadd.f32 %v782, %v820
      %v837 = vadd.f32 %v783, %v808
      %v838 = vadd.f32 %v784, %v812
      %v839 = vadd.f32 %v785, %v816
      %v840 = vadd.f32 %v786, %v820
      %v841 = vadd.f32 %v787, %v808
      %v842 = vadd.f32 %v788, %v812
      %v843 = vadd.f32 %v789, %v816
      %v844 = vadd.f32 %v790, %v820
      %v845 = vadd.f32 %v791, %v808
      %v846 = vadd.f32 %v792, %v812
      %v847 = vadd.f32 %v793, %v816
      %v848 = vadd.f32 %v794, %v820
      %v849 = vadd.f32 %v795, %v808
      %v850 = vadd.f32 %v796, %v812
      %v851 = vadd.f32 %v797, %v816
      %v852 = vadd.f32 %v798, %v820
      %v853 = vadd.f32 %v799, %v808
      %v854 = vadd.f32 %v800, %v812
      %v855 = vadd.f32 %v801, %v816
      %v856 = vadd.f32 %v802, %v820
      %v857 = vpack.c.bf16 %v829, %v825
      %v858 = vpack.c.bf16 %v830, %v826
      %v859 = vpack.c.bf16 %v831, %v827
      %v860 = vpack.c.bf16 %v832, %v828
      %v861 = vpack.c.bf16 %v837, %v833
      %v862 = vpack.c.bf16 %v838, %v834
      %v863 = vpack.c.bf16 %v839, %v835
      %v864 = vpack.c.bf16 %v840, %v836
      %v865 = vpack.c.bf16 %v845, %v841
      %v866 = vpack.c.bf16 %v846, %v842
      %v867 = vpack.c.bf16 %v847, %v843
      %v868 = vpack.c.bf16 %v848, %v844
      %v869 = vpack.c.bf16 %v853, %v849
      %v870 = vpack.c.bf16 %v854, %v850
      %v871 = vpack.c.bf16 %v855, %v851
      %v872 = vpack.c.bf16 %v856, %v852
      %v873 = vld [vmem:[%s5] sm:$0xff]
      %v874 = vld [vmem:[%s5 + $0x8] sm:$0xff]
      %v875 = vld [vmem:[%s5 + $0x10] sm:$0xff]
      %v876 = vld [vmem:[%s5 + $0x18] sm:$0xff]
      %v877 = vld [vmem:[%s5 + $0x20] sm:$0xff]
      %v878 = vld [vmem:[%s5 + $0x28] sm:$0xff]
      %v879 = vld [vmem:[%s5 + $0x30] sm:$0xff]
      %v880 = vld [vmem:[%s5 + $0x38] sm:$0xff]
      %v881 = vld [vmem:[%s5 + $0x40] sm:$0xff]
      %v882 = vld [vmem:[%s5 + $0x48] sm:$0xff]
      %v883 = vld [vmem:[%s5 + $0x50] sm:$0xff]
      %v884 = vld [vmem:[%s5 + $0x58] sm:$0xff]
      %v885 = vld [vmem:[%s5 + $0x60] sm:$0xff]
      %v886 = vld [vmem:[%s5 + $0x68] sm:$0xff]
      %v887 = vld [vmem:[%s5 + $0x70] sm:$0xff]
      %v888 = vld [vmem:[%s5 + $0x78] sm:$0xff]
      %v889 = vld [vmem:[%s5 + $0x80] sm:$0xff]
      %v890 = vld [vmem:[%s5 + $0x88] sm:$0xff]
      %v891 = vld [vmem:[%s5 + $0x90] sm:$0xff]
      %v892 = vld [vmem:[%s5 + $0x98] sm:$0xff]
      %v893 = vld [vmem:[%s5 + $0xa0] sm:$0xff]
      %v894 = vld [vmem:[%s5 + $0xa8] sm:$0xff]
      %v895 = vld [vmem:[%s5 + $0xb0] sm:$0xff]
      %v896 = vld [vmem:[%s5 + $0xb8] sm:$0xff]
      %v897 = vld [vmem:[%s5 + $0xc0] sm:$0xff]
      %v898 = vld [vmem:[%s5 + $0xc8] sm:$0xff]
      %v899 = vld [vmem:[%s5 + $0xd0] sm:$0xff]
      %v900 = vld [vmem:[%s5 + $0xd8] sm:$0xff]
      %v901 = vld [vmem:[%s5 + $0xe0] sm:$0xff]
      %v902 = vld [vmem:[%s5 + $0xe8] sm:$0xff]
      %v903 = vld [vmem:[%s5 + $0xf0] sm:$0xff]
      %v904 = vld [vmem:[%s5 + $0xf8] sm:$0xff]
      %v905 = vld [vmem:[%s5 + $0x100] sm:$0xff]
      %v906 = vld [vmem:[%s5 + $0x108] sm:$0xff]
      %v907 = vld [vmem:[%s5 + $0x110] sm:$0xff]
      %v908 = vld [vmem:[%s5 + $0x118] sm:$0xff]
      %v909 = vld [vmem:[%s5 + $0x120] sm:$0xff]
      %v910 = vld [vmem:[%s5 + $0x128] sm:$0xff]
      %v911 = vld [vmem:[%s5 + $0x130] sm:$0xff]
      %v912 = vld [vmem:[%s5 + $0x138] sm:$0xff]
      %v913 = vld [vmem:[%s5 + $0x140] sm:$0xff]
      %v914 = vld [vmem:[%s5 + $0x148] sm:$0xff]
      %v915 = vld [vmem:[%s5 + $0x150] sm:$0xff]
      %v916 = vld [vmem:[%s5 + $0x158] sm:$0xff]
      %v917 = vld [vmem:[%s5 + $0x160] sm:$0xff]
      %v918 = vld [vmem:[%s5 + $0x168] sm:$0xff]
      %v919 = vld [vmem:[%s5 + $0x170] sm:$0xff]
      %v920 = vld [vmem:[%s5 + $0x178] sm:$0xff]
      %v921 = vld [vmem:[%s5 + $0x180] sm:$0xff]
      %v922 = vld [vmem:[%s5 + $0x188] sm:$0xff]
      %v923 = vld [vmem:[%s5 + $0x190] sm:$0xff]
      %v924 = vld [vmem:[%s5 + $0x198] sm:$0xff]
      %v925 = vld [vmem:[%s5 + $0x1a0] sm:$0xff]
      %v926 = vld [vmem:[%s5 + $0x1a8] sm:$0xff]
      %v927 = vld [vmem:[%s5 + $0x1b0] sm:$0xff]
      %v928 = vld [vmem:[%s5 + $0x1b8] sm:$0xff]
      %v929 = vld [vmem:[%s5 + $0x1c0] sm:$0xff]
      %v930 = vld [vmem:[%s5 + $0x1c8] sm:$0xff]
      %v931 = vld [vmem:[%s5 + $0x1d0] sm:$0xff]
      %v932 = vld [vmem:[%s5 + $0x1d8] sm:$0xff]
      %v933 = vld [vmem:[%s5 + $0x1e0] sm:$0xff]
      %v934 = vld [vmem:[%s5 + $0x1e8] sm:$0xff]
      %v935 = vld [vmem:[%s5 + $0x1f0] sm:$0xff]
      %v936 = vld [vmem:[%s5 + $0x1f8] sm:$0xff]
      %v937 = vld [vmem:[%s6] sm:$0x3]
      %v939 = vlaneseq
      %v940 = vshrl.u32 %v939, 7
      %v941 = vsub.s32 0, %v940
      %v942 = vrot.slane %v937, %v941
      %v943 = vlaneseq
      %v944 = vshrl.u32 %v943, 7
      %v945 = vsub.s32 1, %v944
      %v946 = vrot.slane %v937, %v945
      %v1013 = vunpack.c.l.b16 %v873
      %v1014 = vunpack.c.h.b16 %v873
      %v1015 = vunpack.c.l.b16 %v874
      %v1016 = vunpack.c.h.b16 %v874
      %v1017 = vunpack.c.l.b16 %v875
      %v1018 = vunpack.c.h.b16 %v875
      %v1019 = vunpack.c.l.b16 %v876
      %v1020 = vunpack.c.h.b16 %v876
      %v1021 = vunpack.c.l.b16 %v877
      %v1022 = vunpack.c.h.b16 %v877
      %v1023 = vunpack.c.l.b16 %v878
      %v1024 = vunpack.c.h.b16 %v878
      %v1025 = vunpack.c.l.b16 %v879
      %v1026 = vunpack.c.h.b16 %v879
      %v1027 = vunpack.c.l.b16 %v880
      %v1028 = vunpack.c.h.b16 %v880
      %v1029 = vunpack.c.l.b16 %v881
      %v1030 = vunpack.c.h.b16 %v881
      %v1031 = vunpack.c.l.b16 %v882
      %v1032 = vunpack.c.h.b16 %v882
      %v1033 = vunpack.c.l.b16 %v883
      %v1034 = vunpack.c.h.b16 %v883
      %v1035 = vunpack.c.l.b16 %v884
      %v1036 = vunpack.c.h.b16 %v884
      %v1037 = vunpack.c.l.b16 %v885
      %v1038 = vunpack.c.h.b16 %v885
      %v1039 = vunpack.c.l.b16 %v886
      %v1040 = vunpack.c.h.b16 %v886
      %v1041 = vunpack.c.l.b16 %v887
      %v1042 = vunpack.c.h.b16 %v887
      %v1043 = vunpack.c.l.b16 %v888
      %v1044 = vunpack.c.h.b16 %v888
      %v1045 = vunpack.c.l.b16 %v889
      %v1046 = vunpack.c.h.b16 %v889
      %v1047 = vunpack.c.l.b16 %v890
      %v1048 = vunpack.c.h.b16 %v890
      %v1049 = vunpack.c.l.b16 %v891
      %v1050 = vunpack.c.h.b16 %v891
      %v1051 = vunpack.c.l.b16 %v892
      %v1052 = vunpack.c.h.b16 %v892
      %v1053 = vunpack.c.l.b16 %v893
      %v1054 = vunpack.c.h.b16 %v893
      %v1055 = vunpack.c.l.b16 %v894
      %v1056 = vunpack.c.h.b16 %v894
      %v1057 = vunpack.c.l.b16 %v895
      %v1058 = vunpack.c.h.b16 %v895
      %v1059 = vunpack.c.l.b16 %v896
      %v1060 = vunpack.c.h.b16 %v896
      %v1061 = vunpack.c.l.b16 %v897
      %v1062 = vunpack.c.h.b16 %v897
      %v1063 = vunpack.c.l.b16 %v898
      %v1064 = vunpack.c.h.b16 %v898
      %v1065 = vunpack.c.l.b16 %v899
      %v1066 = vunpack.c.h.b16 %v899
      %v1067 = vunpack.c.l.b16 %v900
      %v1068 = vunpack.c.h.b16 %v900
      %v1069 = vunpack.c.l.b16 %v901
      %v1070 = vunpack.c.h.b16 %v901
      %v1071 = vunpack.c.l.b16 %v902
      %v1072 = vunpack.c.h.b16 %v902
      %v1073 = vunpack.c.l.b16 %v903
      %v1074 = vunpack.c.h.b16 %v903
      %v1075 = vunpack.c.l.b16 %v904
      %v1076 = vunpack.c.h.b16 %v904
      %v1077 = vunpack.c.l.b16 %v905
      %v1078 = vunpack.c.h.b16 %v905
      %v1079 = vunpack.c.l.b16 %v906
      %v1080 = vunpack.c.h.b16 %v906
      %v1081 = vunpack.c.l.b16 %v907
      %v1082 = vunpack.c.h.b16 %v907
      %v1083 = vunpack.c.l.b16 %v908
      %v1084 = vunpack.c.h.b16 %v908
      %v1085 = vunpack.c.l.b16 %v909
      %v1086 = vunpack.c.h.b16 %v909
      %v1087 = vunpack.c.l.b16 %v910
      %v1088 = vunpack.c.h.b16 %v910
      %v1089 = vunpack.c.l.b16 %v911
      %v1090 = vunpack.c.h.b16 %v911
      %v1091 = vunpack.c.l.b16 %v912
      %v1092 = vunpack.c.h.b16 %v912
      %v1093 = vunpack.c.l.b16 %v913
      %v1094 = vunpack.c.h.b16 %v913
      %v1095 = vunpack.c.l.b16 %v914
      %v1096 = vunpack.c.h.b16 %v914
      %v1097 = vunpack.c.l.b16 %v915
      %v1098 = vunpack.c.h.b16 %v915
      %v1099 = vunpack.c.l.b16 %v916
      %v1100 = vunpack.c.h.b16 %v916
      %v1101 = vunpack.c.l.b16 %v917
      %v1102 = vunpack.c.h.b16 %v917
      %v1103 = vunpack.c.l.b16 %v918
      %v1104 = vunpack.c.h.b16 %v918
      %v1105 = vunpack.c.l.b16 %v919
      %v1106 = vunpack.c.h.b16 %v919
      %v1107 = vunpack.c.l.b16 %v920
      %v1108 = vunpack.c.h.b16 %v920
      %v1109 = vunpack.c.l.b16 %v921
      %v1110 = vunpack.c.h.b16 %v921
      %v1111 = vunpack.c.l.b16 %v922
      %v1112 = vunpack.c.h.b16 %v922
      %v1113 = vunpack.c.l.b16 %v923
      %v1114 = vunpack.c.h.b16 %v923
      %v1115 = vunpack.c.l.b16 %v924
      %v1116 = vunpack.c.h.b16 %v924
      %v1117 = vunpack.c.l.b16 %v925
      %v1118 = vunpack.c.h.b16 %v925
      %v1119 = vunpack.c.l.b16 %v926
      %v1120 = vunpack.c.h.b16 %v926
      %v1121 = vunpack.c.l.b16 %v927
      %v1122 = vunpack.c.h.b16 %v927
      %v1123 = vunpack.c.l.b16 %v928
      %v1124 = vunpack.c.h.b16 %v928
      %v1125 = vunpack.c.l.b16 %v929
      %v1126 = vunpack.c.h.b16 %v929
      %v1127 = vunpack.c.l.b16 %v930
      %v1128 = vunpack.c.h.b16 %v930
      %v1129 = vunpack.c.l.b16 %v931
      %v1130 = vunpack.c.h.b16 %v931
      %v1131 = vunpack.c.l.b16 %v932
      %v1132 = vunpack.c.h.b16 %v932
      %v1133 = vunpack.c.l.b16 %v933
      %v1134 = vunpack.c.h.b16 %v933
      %v1135 = vunpack.c.l.b16 %v934
      %v1136 = vunpack.c.h.b16 %v934
      %v1137 = vunpack.c.l.b16 %v935
      %v1138 = vunpack.c.h.b16 %v935
      %v1139 = vunpack.c.l.b16 %v936
      %v1140 = vunpack.c.h.b16 %v936
      %v1141 = vpack.c.b16 %v1015, %v1013
      %v1142 = vpack.c.b16 %v1016, %v1014
      %v1143 = vpack.c.b16 %v1019, %v1017
      %v1144 = vpack.c.b16 %v1020, %v1018
      %v1145 = vpack.c.b16 %v1023, %v1021
      %v1146 = vpack.c.b16 %v1024, %v1022
      %v1147 = vpack.c.b16 %v1027, %v1025
      %v1148 = vpack.c.b16 %v1028, %v1026
      %v1149 = vpack.c.b16 %v1031, %v1029
      %v1150 = vpack.c.b16 %v1032, %v1030
      %v1151 = vpack.c.b16 %v1035, %v1033
      %v1152 = vpack.c.b16 %v1036, %v1034
      %v1153 = vpack.c.b16 %v1039, %v1037
      %v1154 = vpack.c.b16 %v1040, %v1038
      %v1155 = vpack.c.b16 %v1043, %v1041
      %v1156 = vpack.c.b16 %v1044, %v1042
      %v1157 = vpack.c.b16 %v1047, %v1045
      %v1158 = vpack.c.b16 %v1048, %v1046
      %v1159 = vpack.c.b16 %v1051, %v1049
      %v1160 = vpack.c.b16 %v1052, %v1050
      %v1161 = vpack.c.b16 %v1055, %v1053
      %v1162 = vpack.c.b16 %v1056, %v1054
      %v1163 = vpack.c.b16 %v1059, %v1057
      %v1164 = vpack.c.b16 %v1060, %v1058
      %v1165 = vpack.c.b16 %v1063, %v1061
      %v1166 = vpack.c.b16 %v1064, %v1062
      %v1167 = vpack.c.b16 %v1067, %v1065
      %v1168 = vpack.c.b16 %v1068, %v1066
      %v1169 = vpack.c.b16 %v1071, %v1069
      %v1170 = vpack.c.b16 %v1072, %v1070
      %v1171 = vpack.c.b16 %v1075, %v1073
      %v1172 = vpack.c.b16 %v1076, %v1074
      %v1173 = vpack.c.b16 %v1079, %v1077
      %v1174 = vpack.c.b16 %v1080, %v1078
      %v1175 = vpack.c.b16 %v1083, %v1081
      %v1176 = vpack.c.b16 %v1084, %v1082
      %v1177 = vpack.c.b16 %v1087, %v1085
      %v1178 = vpack.c.b16 %v1088, %v1086
      %v1179 = vpack.c.b16 %v1091, %v1089
      %v1180 = vpack.c.b16 %v1092, %v1090
      %v1181 = vpack.c.b16 %v1095, %v1093
      %v1182 = vpack.c.b16 %v1096, %v1094
      %v1183 = vpack.c.b16 %v1099, %v1097
      %v1184 = vpack.c.b16 %v1100, %v1098
      %v1185 = vpack.c.b16 %v1103, %v1101
      %v1186 = vpack.c.b16 %v1104, %v1102
      %v1187 = vpack.c.b16 %v1107, %v1105
      %v1188 = vpack.c.b16 %v1108, %v1106
      %v1189 = vpack.c.b16 %v1111, %v1109
      %v1190 = vpack.c.b16 %v1112, %v1110
      %v1191 = vpack.c.b16 %v1115, %v1113
      %v1192 = vpack.c.b16 %v1116, %v1114
      %v1193 = vpack.c.b16 %v1119, %v1117
      %v1194 = vpack.c.b16 %v1120, %v1118
      %v1195 = vpack.c.b16 %v1123, %v1121
      %v1196 = vpack.c.b16 %v1124, %v1122
      %v1197 = vpack.c.b16 %v1127, %v1125
      %v1198 = vpack.c.b16 %v1128, %v1126
      %v1199 = vpack.c.b16 %v1131, %v1129
      %v1200 = vpack.c.b16 %v1132, %v1130
      %v1201 = vpack.c.b16 %v1135, %v1133
      %v1202 = vpack.c.b16 %v1136, %v1134
      %v1203 = vpack.c.b16 %v1139, %v1137
      %v1204 = vpack.c.b16 %v1140, %v1138
      %1269 = vmatprep.subr.bf16.mxu0 %v1156
      %1270 = vmatpush1.bf16.msra.mxu0 %v1155
      %1271 = vmatprep.subr.bf16.mxu0 %v1154
      %1272 = vmatpush1.bf16.msra.mxu0 %v1153
      %1273 = vmatprep.subr.bf16.mxu0 %v1152
      %1274 = vmatpush1.bf16.msra.mxu0 %v1151
      %1275 = vmatprep.subr.bf16.mxu0 %v1150
      %1276 = vmatpush1.bf16.msra.mxu0 %v1149
      %1277 = vmatprep.subr.bf16.mxu0 %v1148
      %1278 = vmatpush1.bf16.msra.mxu0 %v1147
      %1279 = vmatprep.subr.bf16.mxu0 %v1146
      %1280 = vmatpush1.bf16.msra.mxu0 %v1145
      %1281 = vmatprep.subr.bf16.mxu0 %v1144
      %1282 = vmatpush1.bf16.msra.mxu0 %v1143
      %1283 = vmatprep.subr.bf16.mxu0 %v1142
      %1284 = vmatpush1.bf16.msra.mxu0 %v1141
      %1285 = vmatprep.subr.bf16.mxu0 %v1172
      %1286 = vmatpush2.bf16.msra.mxu0 %v1171
      %1287 = vmatprep.subr.bf16.mxu0 %v1170
      %1288 = vmatpush2.bf16.msra.mxu0 %v1169
      %1289 = vmatprep.subr.bf16.mxu0 %v1168
      %1290 = vmatpush2.bf16.msra.mxu0 %v1167
      %1291 = vmatprep.subr.bf16.mxu0 %v1166
      %1292 = vmatpush2.bf16.msra.mxu0 %v1165
      %1293 = vmatprep.subr.bf16.mxu0 %v1164
      %1294 = vmatpush2.bf16.msra.mxu0 %v1163
      %1295 = vmatprep.subr.bf16.mxu0 %v1162
      %1296 = vmatpush2.bf16.msra.mxu0 %v1161
      %1297 = vmatprep.subr.bf16.mxu0 %v1160
      %1298 = vmatpush2.bf16.msra.mxu0 %v1159
      %1299 = vmatprep.subr.bf16.mxu0 %v1158
      %1300 = vmatpush2.bf16.msra.mxu0 %v1157
      %1301 = vmatprep.mubr.bf16.mxu0 %v858
      %1302 = vmatmul.mubr.bf16.gmra.mxu0 %v857
      %v1303 = vpop.f32.mrf.mxu0
      %v1304 = vadd.f32 %v942, %v1303
      %v1305 = vpop.f32.mrf.mxu0
      %v1306 = vadd.f32 %v946, %v1305
      %v1307 = vpop.f32.mrf.mxu0
      %v1308 = vadd.f32 %v942, %v1307
      %v1309 = vpop.f32.mrf.mxu0
      %v1310 = vadd.f32 %v946, %v1309
      %1311 = vmatprep.mubr.bf16.mxu0 %v862
      %1312 = vmatmul.mubr.bf16.gmra.mxu0 %v861
      %v1313 = vpop.f32.mrf.mxu0
      %v1314 = vadd.f32 %v942, %v1313
      %v1315 = vpop.f32.mrf.mxu0
      %v1316 = vadd.f32 %v946, %v1315
      %v1317 = vpop.f32.mrf.mxu0
      %v1318 = vadd.f32 %v942, %v1317
      %v1319 = vpop.f32.mrf.mxu0
      %v1320 = vadd.f32 %v946, %v1319
      %1321 = vmatprep.mubr.bf16.mxu0 %v866
      %1322 = vmatmul.mubr.bf16.gmra.mxu0 %v865
      %v1323 = vpop.f32.mrf.mxu0
      %v1324 = vadd.f32 %v942, %v1323
      %v1325 = vpop.f32.mrf.mxu0
      %v1326 = vadd.f32 %v946, %v1325
      %v1327 = vpop.f32.mrf.mxu0
      %v1328 = vadd.f32 %v942, %v1327
      %v1329 = vpop.f32.mrf.mxu0
      %v1330 = vadd.f32 %v946, %v1329
      %1331 = vmatprep.mubr.bf16.mxu0 %v870
      %1332 = vmatmul.mubr.bf16.gmra.mxu0 %v869
      %v1333 = vpop.f32.mrf.mxu0
      %v1334 = vadd.f32 %v942, %v1333
      %v1335 = vpop.f32.mrf.mxu0
      %v1336 = vadd.f32 %v946, %v1335
      %v1337 = vpop.f32.mrf.mxu0
      %v1338 = vadd.f32 %v942, %v1337
      %v1339 = vpop.f32.mrf.mxu0
      %v1340 = vadd.f32 %v946, %v1339
      %1341 = vdwg.mxu0
      %1342 = vmatprep.subr.bf16.mxu0 %v1188
      %1343 = vmatpush1.bf16.msra.mxu0 %v1187
      %1344 = vmatprep.subr.bf16.mxu0 %v1186
      %1345 = vmatpush1.bf16.msra.mxu0 %v1185
      %1346 = vmatprep.subr.bf16.mxu0 %v1184
      %1347 = vmatpush1.bf16.msra.mxu0 %v1183
      %1348 = vmatprep.subr.bf16.mxu0 %v1182
      %1349 = vmatpush1.bf16.msra.mxu0 %v1181
      %1350 = vmatprep.subr.bf16.mxu0 %v1180
      %1351 = vmatpush1.bf16.msra.mxu0 %v1179
      %1352 = vmatprep.subr.bf16.mxu0 %v1178
      %1353 = vmatpush1.bf16.msra.mxu0 %v1177
      %1354 = vmatprep.subr.bf16.mxu0 %v1176
      %1355 = vmatpush1.bf16.msra.mxu0 %v1175
      %1356 = vmatprep.subr.bf16.mxu0 %v1174
      %1357 = vmatpush1.bf16.msra.mxu0 %v1173
      %1358 = vmatprep.subr.bf16.mxu0 %v1204
      %1359 = vmatpush2.bf16.msra.mxu0 %v1203
      %1360 = vmatprep.subr.bf16.mxu0 %v1202
      %1361 = vmatpush2.bf16.msra.mxu0 %v1201
      %1362 = vmatprep.subr.bf16.mxu0 %v1200
      %1363 = vmatpush2.bf16.msra.mxu0 %v1199
      %1364 = vmatprep.subr.bf16.mxu0 %v1198
      %1365 = vmatpush2.bf16.msra.mxu0 %v1197
      %1366 = vmatprep.subr.bf16.mxu0 %v1196
      %1367 = vmatpush2.bf16.msra.mxu0 %v1195
      %1368 = vmatprep.subr.bf16.mxu0 %v1194
      %1369 = vmatpush2.bf16.msra.mxu0 %v1193
      %1370 = vmatprep.subr.bf16.mxu0 %v1192
      %1371 = vmatpush2.bf16.msra.mxu0 %v1191
      %1372 = vmatprep.subr.bf16.mxu0 %v1190
      %1373 = vmatpush2.bf16.msra.mxu0 %v1189
      %1374 = vmatprep.mubr.bf16.mxu0 %v860
      %1375 = vmatmul.mubr.bf16.gmra.mxu0 %v859
      %v1376 = vpop.f32.mrf.mxu0
      %v1377 = vadd.f32 %v1304, %v1376
      %v1378 = vpop.f32.mrf.mxu0
      %v1379 = vadd.f32 %v1306, %v1378
      %v1380 = vpop.f32.mrf.mxu0
      %v1381 = vadd.f32 %v1308, %v1380
      %v1382 = vpop.f32.mrf.mxu0
      %v1383 = vadd.f32 %v1310, %v1382
      %1384 = vmatprep.mubr.bf16.mxu0 %v864
      %1385 = vmatmul.mubr.bf16.gmra.mxu0 %v863
      %v1386 = vpop.f32.mrf.mxu0
      %v1387 = vadd.f32 %v1314, %v1386
      %v1388 = vpop.f32.mrf.mxu0
      %v1389 = vadd.f32 %v1316, %v1388
      %v1390 = vpop.f32.mrf.mxu0
      %v1391 = vadd.f32 %v1318, %v1390
      %v1392 = vpop.f32.mrf.mxu0
      %v1393 = vadd.f32 %v1320, %v1392
      %1394 = vmatprep.mubr.bf16.mxu0 %v868
      %1395 = vmatmul.mubr.bf16.gmra.mxu0 %v867
      %v1396 = vpop.f32.mrf.mxu0
      %v1397 = vadd.f32 %v1324, %v1396
      %v1398 = vpop.f32.mrf.mxu0
      %v1399 = vadd.f32 %v1326, %v1398
      %v1400 = vpop.f32.mrf.mxu0
      %v1401 = vadd.f32 %v1328, %v1400
      %v1402 = vpop.f32.mrf.mxu0
      %v1403 = vadd.f32 %v1330, %v1402
      %1404 = vmatprep.mubr.bf16.mxu0 %v872
      %1405 = vmatmul.mubr.bf16.gmra.mxu0 %v871
      %v1406 = vpop.f32.mrf.mxu0
      %v1407 = vadd.f32 %v1334, %v1406
      %v1408 = vpop.f32.mrf.mxu0
      %v1409 = vadd.f32 %v1336, %v1408
      %v1410 = vpop.f32.mrf.mxu0
      %v1411 = vadd.f32 %v1338, %v1410
      %v1412 = vpop.f32.mrf.mxu0
      %v1413 = vadd.f32 %v1340, %v1412
      %1414 = vdwg.mxu0
      %v1415 = vmax.f32 %v1377, 0.0
      %v1416 = vmax.f32 %v1379, 0.0
      %v1417 = vmax.f32 %v1381, 0.0
      %v1418 = vmax.f32 %v1383, 0.0
      %v1419 = vmax.f32 %v1387, 0.0
      %v1420 = vmax.f32 %v1389, 0.0
      %v1421 = vmax.f32 %v1391, 0.0
      %v1422 = vmax.f32 %v1393, 0.0
      %v1423 = vmax.f32 %v1397, 0.0
      %v1424 = vmax.f32 %v1399, 0.0
      %v1425 = vmax.f32 %v1401, 0.0
      %v1426 = vmax.f32 %v1403, 0.0
      %v1427 = vmax.f32 %v1407, 0.0
      %v1428 = vmax.f32 %v1409, 0.0
      %v1429 = vmax.f32 %v1411, 0.0
      %v1430 = vmax.f32 %v1413, 0.0
      %v1431 = vpack.c.bf16 %v1417, %v1415
      %v1432 = vpack.c.bf16 %v1418, %v1416
      %v1433 = vpack.c.bf16 %v1421, %v1419
      %v1434 = vpack.c.bf16 %v1422, %v1420
      %v1435 = vpack.c.bf16 %v1425, %v1423
      %v1436 = vpack.c.bf16 %v1426, %v1424
      %v1437 = vpack.c.bf16 %v1429, %v1427
      %v1438 = vpack.c.bf16 %v1430, %v1428
      %v1447 = vunpack.c.l.b16 %v1431
      %v1448 = vunpack.c.l.b16 %v1432
      %v1449 = vunpack.c.h.b16 %v1431
      %v1450 = vunpack.c.h.b16 %v1432
      %v1451 = vunpack.c.l.b16 %v1433
      %v1452 = vunpack.c.l.b16 %v1434
      %v1453 = vunpack.c.h.b16 %v1433
      %v1454 = vunpack.c.h.b16 %v1434
      %v1455 = vunpack.c.l.b16 %v1435
      %v1456 = vunpack.c.l.b16 %v1436
      %v1457 = vunpack.c.h.b16 %v1435
      %v1458 = vunpack.c.h.b16 %v1436
      %v1459 = vunpack.c.l.b16 %v1437
      %v1460 = vunpack.c.l.b16 %v1438
      %v1461 = vunpack.c.h.b16 %v1437
      %v1462 = vunpack.c.h.b16 %v1438
      %v1463 = vpack.c.b16 %v1448, %v1447
      %v1464 = vpack.c.b16 %v1450, %v1449
      %v1465 = vpack.c.b16 %v1452, %v1451
      %v1466 = vpack.c.b16 %v1454, %v1453
      %v1467 = vpack.c.b16 %v1456, %v1455
      %v1468 = vpack.c.b16 %v1458, %v1457
      %v1469 = vpack.c.b16 %v1460, %v1459
      %v1470 = vpack.c.b16 %v1462, %v1461
      %1479 = vst [vmem:[%s317] sm:$0xff] %v1463
      %1480 = vst [vmem:[%s317 + $0x8] sm:$0xff] %v1464
      %1481 = vst [vmem:[%s317 + $0x10] sm:$0xff] %v1465
      %1482 = vst [vmem:[%s317 + $0x18] sm:$0xff] %v1466
      %1483 = vst [vmem:[%s317 + $0x20] sm:$0xff] %v1467
      %1484 = vst [vmem:[%s317 + $0x28] sm:$0xff] %v1468
      %1485 = vst [vmem:[%s317 + $0x30] sm:$0xff] %v1469
      %1486 = vst [vmem:[%s317 + $0x38] sm:$0xff] %v1470
      %v1487 = vadd.f32 %v1415, %v1417
      %v1488 = vadd.f32 %v1487, %v1419
      %v1489 = vadd.f32 %v1488, %v1421
      %v1490 = vadd.f32 %v1489, %v1423
      %v1491 = vadd.f32 %v1490, %v1425
      %v1492 = vadd.f32 %v1491, %v1427
      %v1493 = vadd.f32 %v1492, %v1429
      %v1494 = vrot.slane %v1493, 4
      %v1495 = vadd.f32 %v1493, %v1494
      %v1496 = vrot.slane %v1495, 2
      %v1497 = vadd.f32 %v1495, %v1496
      %v1498 = vrot.slane %v1497, 1
      %v1499 = vadd.f32 %v1497, %v1498
      %v1500 = vadd.f32 %v1416, %v1418
      %v1501 = vadd.f32 %v1500, %v1420
      %v1502 = vadd.f32 %v1501, %v1422
      %v1503 = vadd.f32 %v1502, %v1424
      %v1504 = vadd.f32 %v1503, %v1426
      %v1505 = vadd.f32 %v1504, %v1428
      %v1506 = vadd.f32 %v1505, %v1430
      %v1507 = vrot.slane %v1506, 4
      %v1508 = vadd.f32 %v1506, %v1507
      %v1509 = vrot.slane %v1508, 2
      %v1510 = vadd.f32 %v1508, %v1509
      %v1511 = vrot.slane %v1510, 1
      %v1512 = vadd.f32 %v1510, %v1511
      %v1513 = vmul.f32 %v1415, %v1415
      %v1514 = vmul.f32 %v1416, %v1416
      %v1515 = vmul.f32 %v1417, %v1417
      %v1516 = vmul.f32 %v1418, %v1418
      %v1517 = vmul.f32 %v1419, %v1419
      %v1518 = vmul.f32 %v1420, %v1420
      %v1519 = vmul.f32 %v1421, %v1421
      %v1520 = vmul.f32 %v1422, %v1422
      %v1521 = vmul.f32 %v1423, %v1423
      %v1522 = vmul.f32 %v1424, %v1424
      %v1523 = vmul.f32 %v1425, %v1425
      %v1524 = vmul.f32 %v1426, %v1426
      %v1525 = vmul.f32 %v1427, %v1427
      %v1526 = vmul.f32 %v1428, %v1428
      %v1527 = vmul.f32 %v1429, %v1429
      %v1528 = vmul.f32 %v1430, %v1430
      %v1529 = vadd.f32 %v1513, %v1515
      %v1530 = vadd.f32 %v1529, %v1517
      %v1531 = vadd.f32 %v1530, %v1519
      %v1532 = vadd.f32 %v1531, %v1521
      %v1533 = vadd.f32 %v1532, %v1523
      %v1534 = vadd.f32 %v1533, %v1525
      %v1535 = vadd.f32 %v1534, %v1527
      %v1536 = vrot.slane %v1535, 4
      %v1537 = vadd.f32 %v1535, %v1536
      %v1538 = vrot.slane %v1537, 2
      %v1539 = vadd.f32 %v1537, %v1538
      %v1540 = vrot.slane %v1539, 1
      %v1541 = vadd.f32 %v1539, %v1540
      %v1542 = vadd.f32 %v1514, %v1516
      %v1543 = vadd.f32 %v1542, %v1518
      %v1544 = vadd.f32 %v1543, %v1520
      %v1545 = vadd.f32 %v1544, %v1522
      %v1546 = vadd.f32 %v1545, %v1524
      %v1547 = vadd.f32 %v1546, %v1526
      %v1548 = vadd.f32 %v1547, %v1528
      %v1549 = vrot.slane %v1548, 4
      %v1550 = vadd.f32 %v1548, %v1549
      %v1551 = vrot.slane %v1550, 2
      %v1552 = vadd.f32 %v1550, %v1551
      %v1553 = vrot.slane %v1552, 1
      %v1554 = vadd.f32 %v1552, %v1553
      %v1555 = vlaneseq
      %v1556 = vshrl.u32 %v1555, 7
      %vm1557 = vcmp.eq.s32.totalorder %v1556, 0
      %vm1558 = vcmp.eq.s32.totalorder %v1556, 1
      %v1559 = vsel %vm1558, %v1541, 0.0
      %v1560 = vsel %vm1558, %v1554, 0.0
      %v1561 = vsel %vm1557, %v1499, %v1559
      %v1562 = vsel %vm1557, %v1512, %v1560
      %1563 = vst [vmem:[%s323] sm:$0xff] %v1561
      %1564 = vst [vmem:[%s323 + $0x8] sm:$0xff] %v1562
      %s1565 = smul.u32 8, %s20
      %p1566 = scmp.lt.s32.totalorder %s1565, 15
      %s1567 = scalar_select %p1566, %s1565, 15
      %s1568 = smul.addr %s1567, 2
      %s1569 = smul.addr %s1568, 4
      %s1570 = scalar_lea.vmem %s7, %s1569
      %p1571 = scmp.lt.s32.totalorder %s20, 1
      %s1572 = scalar_select %p1571, %s20, 1
      %s1573 = smul.addr %s1572, 2
      %s1574 = smul.addr %s1573, 8
      %s1575 = scalar_lea.vmem %s8, %s1574
      // Predicated region
      $region49: #{latent_guidance_forward.6} parent=47 // pred_check
        %p1576 = pneg %p190
      $region50: #{latent_guidance_forward.6} parent=47 // pred_check_branch
        %1578 = sbr.rel (%p1576) target = $region52
      $region51: #{latent_guidance_forward.6} parent=47 // pred_region
        %s1579 = smul.u32 8, %s20
      $region52: #{latent_guidance_forward.6} parent=47 // pred_fallthru
        _
      // Predicated region
      $region53: #{latent_guidance_forward.6} parent=47 // pred_check
        %p1580 = pneg %p216
      $region54: #{latent_guidance_forward.6} parent=47 // pred_check_branch
        %1582 = sbr.rel (%p1580) target = $region56
      $region55: #{latent_guidance_forward.6} parent=47 // pred_region
        _
      $region56: #{latent_guidance_forward.6} parent=47 // pred_fallthru
        _
    $region48: #{latent_guidance_forward.6} parent=5 // pred_fallthru
      _
    %p1583 = scmp.le.s32.totalorder 2, %s15
    // Predicated region
    $region57: #{latent_guidance_forward.6} parent=5 // pred_check
      %p1584 = pneg %p1583
    $region58: #{latent_guidance_forward.6} parent=5 // pred_check_branch
      %1586 = sbr.rel (%p1584) target = $region60
    $region59: #{latent_guidance_forward.6} parent=5 // pred_region
      %s1587 = ssub.s32 %s15, 2
      // Predicated region
      $region61: #{latent_guidance_forward.6} parent=59 // pred_check
        %p1588 = pneg %p196
      $region62: #{latent_guidance_forward.6} parent=59 // pred_check_branch
        %1590 = sbr.rel (%p1588) target = $region64
      $region63: #{latent_guidance_forward.6} parent=59 // pred_region
        %s1591 = smul.u32 8, %s21
        %p1592 = scmp.lt.s32.totalorder %s1591, 15
        %s1593 = scalar_select %p1592, %s1591, 15
        %s1594 = smul.addr %s1593, 2
        %s1595 = smul.addr %s1594, 4
        %s1596 = scalar_lea.vmem %s7, %s1595
      $region64: #{latent_guidance_forward.6} parent=59 // pred_fallthru
        _
      // Predicated region
      $region65: #{latent_guidance_forward.6} parent=59 // pred_check
        %p1597 = pneg %p222
      $region66: #{latent_guidance_forward.6} parent=59 // pred_check_branch
        %1599 = sbr.rel (%p1597) target = $region68
      $region67: #{latent_guidance_forward.6} parent=59 // pred_region
        %p1600 = scmp.lt.s32.totalorder %s21, 1
        %s1601 = scalar_select %p1600, %s21, 1
        %s1602 = smul.addr %s1601, 2
        %s1603 = smul.addr %s1602, 8
        %s1604 = scalar_lea.vmem %s8, %s1603
      $region68: #{latent_guidance_forward.6} parent=59 // pred_fallthru
        _
    $region60: #{latent_guidance_forward.6} parent=5 // pred_fallthru
      _
  $region6: #{latent_guidance_forward.6} parent=0 // loop_footer
    %s19 = sadd.s32 1, %s15
  $region7: #{latent_guidance_forward.6} parent=0 // loop_footer_branch
    %14 = sbr.rel target = $region3
  $region8: #{latent_guidance_forward.6} parent=0 // loop_exit
    _

// kernel: latent_guidance_forward.9
$region0: #{latent_guidance_forward.9}
  #allocation0 [shape = 'u32[]', space=smem, size = 0x4, offset = 0x4, fixed_abs, tag = 'smem constant byte address 0x4 - core index']
  #allocation1 [shape = 'u32[144,128]{1,0:T(1,128)}', space=vmem, size = 0x12000, scoped, tag = 'internal scratch']
  %s0 = inlined_call_operand.vmem [shape: bf16[128,64], index: 0, kind: input, shape index: {}]
  %s1 = inlined_call_operand.vmem [shape: f32[1,64], index: 1, kind: input, shape index: {}]
  %s2 = inlined_call_operand.vmem [shape: f32[1,64], index: 2, kind: input, shape index: {}]
  %s3 = inlined_call_operand.vmem [shape: bf16[64,128], index: 3, kind: input, shape index: {}]
  %s4 = inlined_call_operand.vmem [shape: f32[1,128], index: 4, kind: input, shape index: {}]
  %s5 = inlined_call_operand.vmem [shape: f32[128,128], index: 5, kind: output, shape index: {}]
  %s6 = sld [smem:[#allocation0]]
  $region53: #{latent_guidance_forward.9} parent=0
    _
  %s8 = ssub.s32 1, %s6
  %s9 = scalar_select 0, %s8, %s6
  loop: start=0, step=1, limit=4
  $region2: #{latent_guidance_forward.9} parent=0 // loop_pre_header
    _
  $region3: #{latent_guidance_forward.9} parent=0 // loop_header
    %s11 = sphi 0, %s15
    %p12 = scmp.ge.s32.totalorder %s11, 4
    %s21 = sphi 0, %s23
    %s24 = sphi 0, %s21
    %s25 = sphi 0, %s24
    %s41 = sphi 0, %s25
    %s45 = sphi 0, %s45
    %s47 = sphi 0, %s45
    %s48 = sphi 0, %s47
    %s62 = sphi 0, %s48
    %s66 = sphi 0, %s66
    %s68 = sphi 0, %s66
    %s69 = sphi 0, %s68
    %s83 = sphi 0, %s69
    %s87 = sphi 0, %s87
    %s89 = sphi 0, %s87
    %s90 = sphi 0, %s89
    %s104 = sphi 0, %s90
    %s108 = sphi 0, %s108
    %s110 = sphi 0, %s108
    %s111 = sphi 0, %s110
    %s125 = sphi 0, %s111
    %s131 = sphi 0, %s133
    %s134 = sphi 0, %s131
    %s135 = sphi 0, %s134
    %s151 = sphi 0, %s135
  $region4: #{latent_guidance_forward.9} parent=0 // loop_header_branch
    %14 = sbr.rel (%p12) target = $region8
  $region5: #{latent_guidance_forward.9} parent=0 // loop_body
    %s16 = ssub.s32 %s11, 1
    %s17 = ssub.s32 %s11, 2
    %s18 = sadd.s32 %s11, 1
    %s19 = ssub.s32 %s11, %s18
    %p20 = scmp.eq.s32.totalorder %s19, 0
    %s22 = sadd.s32 %s21, 1
    %s23 = scalar_select %p20, %s21, %s22
    %p26 = pneg %p20
    %p27 = scmp.eq.s32.totalorder %s11, 1
    %p28 = por %p26, %p27
    %p29 = scmp.ne.s32.totalorder %s21, %s24
    %p30 = scmp.eq.s32.totalorder %s11, 0
    %p31 = por %p29, %p30
    %p32 = scmp.ne.s32.totalorder %s21, %s24
    %p33 = scmp.eq.s32.totalorder %s16, 1
    %p34 = por %p32, %p33
    %p35 = scmp.ne.s32.totalorder %s24, %s25
    %p36 = scmp.eq.s32.totalorder %s16, 0
    %p37 = por %p35, %p36
    %p38 = scmp.ne.s32.totalorder %s24, %s25
    %p39 = scmp.eq.s32.totalorder %s17, 1
    %p40 = por %p38, %p39
    %p42 = scmp.ne.s32.totalorder %s25, %s41
    %p43 = scmp.eq.s32.totalorder %s17, 0
    %p44 = por %p42, %p43
    %s46 = sadd.s32 %s45, 1
    %p49 = scmp.eq.s32.totalorder %s11, 1
    %p50 = scmp.ne.s32.totalorder %s45, %s47
    %p51 = scmp.eq.s32.totalorder %s11, 0
    %p52 = por %p50, %p51
    %p53 = scmp.ne.s32.totalorder %s45, %s47
    %p54 = scmp.eq.s32.totalorder %s16, 1
    %p55 = por %p53, %p54
    %p56 = scmp.ne.s32.totalorder %s47, %s48
    %p57 = scmp.eq.s32.totalorder %s16, 0
    %p58 = por %p56, %p57
    %p59 = scmp.ne.s32.totalorder %s47, %s48
    %p60 = scmp.eq.s32.totalorder %s17, 1
    %p61 = por %p59, %p60
    %p63 = scmp.ne.s32.totalorder %s48, %s62
    %p64 = scmp.eq.s32.totalorder %s17, 0
    %p65 = por %p63, %p64
    %s67 = sadd.s32 %s66, 1
    %p70 = scmp.eq.s32.totalorder %s11, 1
    %p71 = scmp.ne.s32.totalorder %s66, %s68
    %p72 = scmp.eq.s32.totalorder %s11, 0
    %p73 = por %p71, %p72
    %p74 = scmp.ne.s32.totalorder %s66, %s68
    %p75 = scmp.eq.s32.totalorder %s16, 1
    %p76 = por %p74, %p75
    %p77 = scmp.ne.s32.totalorder %s68, %s69
    %p78 = scmp.eq.s32.totalorder %s16, 0
    %p79 = por %p77, %p78
    %p80 = scmp.ne.s32.totalorder %s68, %s69
    %p81 = scmp.eq.s32.totalorder %s17, 1
    %p82 = por %p80, %p81
    %p84 = scmp.ne.s32.totalorder %s69, %s83
    %p85 = scmp.eq.s32.totalorder %s17, 0
    %p86 = por %p84, %p85
    %s88 = sadd.s32 %s87, 1
    %p91 = scmp.eq.s32.totalorder %s11, 1
    %p92 = scmp.ne.s32.totalorder %s87, %s89
    %p93 = scmp.eq.s32.totalorder %s11, 0
    %p94 = por %p92, %p93
    %p95 = scmp.ne.s32.totalorder %s87, %s89
    %p96 = scmp.eq.s32.totalorder %s16, 1
    %p97 = por %p95, %p96
    %p98 = scmp.ne.s32.totalorder %s89, %s90
    %p99 = scmp.eq.s32.totalorder %s16, 0
    %p100 = por %p98, %p99
    %p101 = scmp.ne.s32.totalorder %s89, %s90
    %p102 = scmp.eq.s32.totalorder %s17, 1
    %p103 = por %p101, %p102
    %p105 = scmp.ne.s32.totalorder %s90, %s104
    %p106 = scmp.eq.s32.totalorder %s17, 0
    %p107 = por %p105, %p106
    %s109 = sadd.s32 %s108, 1
    %p112 = scmp.eq.s32.totalorder %s11, 1
    %p113 = scmp.ne.s32.totalorder %s108, %s110
    %p114 = scmp.eq.s32.totalorder %s11, 0
    %p115 = por %p113, %p114
    %p116 = scmp.ne.s32.totalorder %s108, %s110
    %p117 = scmp.eq.s32.totalorder %s16, 1
    %p118 = por %p116, %p117
    %p119 = scmp.ne.s32.totalorder %s110, %s111
    %p120 = scmp.eq.s32.totalorder %s16, 0
    %p121 = por %p119, %p120
    %p122 = scmp.ne.s32.totalorder %s110, %s111
    %p123 = scmp.eq.s32.totalorder %s17, 1
    %p124 = por %p122, %p123
    %p126 = scmp.ne.s32.totalorder %s111, %s125
    %p127 = scmp.eq.s32.totalorder %s17, 0
    %p128 = por %p126, %p127
    %s129 = ssub.s32 %s11, %s18
    %p130 = scmp.eq.s32.totalorder %s129, 0
    %s132 = sadd.s32 %s131, 1
    %s133 = scalar_select %p130, %s131, %s132
    %p136 = pneg %p130
    %p137 = scmp.eq.s32.totalorder %s11, 1
    %p138 = por %p136, %p137
    %p139 = scmp.ne.s32.totalorder %s131, %s134
    %p140 = scmp.eq.s32.totalorder %s11, 0
    %p141 = por %p139, %p140
    %p142 = scmp.ne.s32.totalorder %s131, %s134
    %p143 = scmp.eq.s32.totalorder %s16, 1
    %p144 = por %p142, %p143
    %p145 = scmp.ne.s32.totalorder %s134, %s135
    %p146 = scmp.eq.s32.totalorder %s16, 0
    %p147 = por %p145, %p146
    %p148 = scmp.ne.s32.totalorder %s134, %s135
    %p149 = scmp.eq.s32.totalorder %s17, 1
    %p150 = por %p148, %p149
    %p152 = scmp.ne.s32.totalorder %s135, %s151
    %p153 = scmp.eq.s32.totalorder %s17, 0
    %p154 = por %p152, %p153
    %p155 = scmp.le.s32.totalorder 1, %s11
    %p156 = scmp.lt.s32.totalorder %s11, 3
    %p157 = pnand %p155, %p156
    %p158 = pneg %p157
    // Predicated region
    $region9: #{latent_guidance_forward.9} parent=5 // pred_check
      _
    $region10: #{latent_guidance_forward.9} parent=5 // pred_check_branch
      %160 = sbr.rel (%p157) target = $region12
    $region11: #{latent_guidance_forward.9} parent=5 // pred_region
      %s161 = ssub.s32 %s11, 1
      // Predicated region
      $region13: #{latent_guidance_forward.9} parent=11 // pred_check
        %p162 = pneg %p58
      $region14: #{latent_guidance_forward.9} parent=11 // pred_check_branch
        %164 = sbr.rel (%p162) target = $region16
      $region15: #{latent_guidance_forward.9} parent=11 // pred_region
        _
      $region16: #{latent_guidance_forward.9} parent=11 // pred_fallthru
        _
      // Predicated region
      $region17: #{latent_guidance_forward.9} parent=11 // pred_check
        %p165 = pneg %p79
      $region18: #{latent_guidance_forward.9} parent=11 // pred_check_branch
        %167 = sbr.rel (%p165) target = $region20
      $region19: #{latent_guidance_forward.9} parent=11 // pred_region
        _
      $region20: #{latent_guidance_forward.9} parent=11 // pred_fallthru
        _
      // Predicated region
      $region21: #{latent_guidance_forward.9} parent=11 // pred_check
        %p168 = pneg %p100
      $region22: #{latent_guidance_forward.9} parent=11 // pred_check_branch
        %170 = sbr.rel (%p168) target = $region24
      $region23: #{latent_guidance_forward.9} parent=11 // pred_region
        _
      $region24: #{latent_guidance_forward.9} parent=11 // pred_fallthru
        _
      // Predicated region
      $region25: #{latent_guidance_forward.9} parent=11 // pred_check
        %p171 = pneg %p121
      $region26: #{latent_guidance_forward.9} parent=11 // pred_check_branch
        %173 = sbr.rel (%p171) target = $region28
      $region27: #{latent_guidance_forward.9} parent=11 // pred_region
        _
      $region28: #{latent_guidance_forward.9} parent=11 // pred_fallthru
        _
    $region12: #{latent_guidance_forward.9} parent=5 // pred_fallthru
      _
    %p174 = scmp.lt.s32.totalorder %s11, 2
    // Predicated region
    $region29: #{latent_guidance_forward.9} parent=5 // pred_check
      %p175 = pneg %p174
    $region30: #{latent_guidance_forward.9} parent=5 // pred_check_branch
      %177 = sbr.rel (%p175) target = $region32
    $region31: #{latent_guidance_forward.9} parent=5 // pred_region
      // Predicated region
      $region33: #{latent_guidance_forward.9} parent=31 // pred_check
        %p178 = pneg %p31
      $region34: #{latent_guidance_forward.9} parent=31 // pred_check_branch
        %180 = sbr.rel (%p178) target = $region36
      $region35: #{latent_guidance_forward.9} parent=31 // pred_region
        %s181 = smul.u32 8, %s11
        %p182 = scmp.lt.s32.totalorder %s181, 15
        %s183 = scalar_select %p182, %s181, 15
        %s184 = smul.addr %s183, 4
        %s185 = scalar_lea.vmem %s0, %s184
        %s186 = smul.u32 8, %s11
      $region36: #{latent_guidance_forward.9} parent=31 // pred_fallthru
        _
    $region32: #{latent_guidance_forward.9} parent=5 // pred_fallthru
      _
    %p187 = scmp.le.s32.totalorder 1, %s11
    %p188 = scmp.lt.s32.totalorder %s11, 3
    %p189 = pnand %p187, %p188
    %p190 = pneg %p189
    // Predicated region
    $region37: #{latent_guidance_forward.9} parent=5 // pred_check
      _
    $region38: #{latent_guidance_forward.9} parent=5 // pred_check_branch
      %192 = sbr.rel (%p189) target = $region40
    $region39: #{latent_guidance_forward.9} parent=5 // pred_region
      %s193 = ssub.s32 %s11, 1
      %s194 = smul.u32 8, %s16
      %p195 = scmp.lt.s32.totalorder %s194, 15
      %s196 = scalar_select %p195, %s194, 15
      %s197 = smul.addr %s196, 4
      %s198 = scalar_lea.vmem %s0, %s197
      %p199 = pneg %p37
      %p200 = pneg %p34
      %p201 = pneg %p58
      %p202 = pneg %p55
      %p203 = pneg %p79
      %p204 = pneg %p76
      %p205 = pneg %p100
      %p206 = pneg %p97
      %p207 = pneg %p121
      %p208 = pneg %p118
      %p209 = pneg %p147
      %p210 = pneg %p144
      %s211 = smul.u32 8, %s16
      %p212 = scmp.lt.s32.totalorder %s211, 15
      %s213 = scalar_select %p212, %s211, 15
      %s214 = smul.addr %s213, 8
      %s215 = scalar_lea.vmem %s5, %s214
      %s216 = smul.u32 8, %s16
      %p217 = scmp.lt.s32.totalorder %s216, 15
      %s218 = scalar_select %p217, %s216, 15
      %s219 = smul.addr %s218, 4
      %s220 = scalar_lea.vmem %s0, %s219
      %s221 = smul.u32 8, %s16
      %s222 = smul.u32 8, %s16
      %p223 = scmp.lt.s32.totalorder %s222, 15
      %s224 = scalar_select %p223, %s222, 15
      %s225 = smul.addr %s224, 8
      %s226 = scalar_lea.vmem %s5, %s225
      %s227 = smul.u32 8, %s16
      %v229 = vld [vmem:[%s220] sm:$0xf]
      %v230 = vld [vmem:[%s220 + $0x4] sm:$0xf]
      %v231 = vld [vmem:[%s220 + $0x8] sm:$0xf]
      %v232 = vld [vmem:[%s220 + $0xc] sm:$0xf]
      %v233 = vld [vmem:[%s220 + $0x10] sm:$0xf]
      %v234 = vld [vmem:[%s220 + $0x14] sm:$0xf]
      %v235 = vld [vmem:[%s220 + $0x18] sm:$0xf]
      %v236 = vld [vmem:[%s220 + $0x1c] sm:$0xf]
      %v237 = vunpack.c.l.bf16 %v229
      %v238 = vunpack.c.l.bf16 %v230
      %v239 = vunpack.c.l.bf16 %v231
      %v240 = vunpack.c.l.bf16 %v232
      %v241 = vunpack.c.l.bf16 %v233
      %v242 = vunpack.c.l.bf16 %v234
      %v243 = vunpack.c.l.bf16 %v235
      %v244 = vunpack.c.l.bf16 %v236
      %v245 = vld [vmem:[%s1] sm:$0x1]
      %v247 = vlaneseq
      %v248 = vshrl.u32 %v247, 7
      %v249 = vsub.s32 0, %v248
      %v250 = vrot.slane %v245, %v249
      %v252 = vmul.f32 %v237, %v250
      %v253 = vmul.f32 %v238, %v250
      %v254 = vmul.f32 %v239, %v250
      %v255 = vmul.f32 %v240, %v250
      %v256 = vmul.f32 %v241, %v250
      %v257 = vmul.f32 %v242, %v250
      %v258 = vmul.f32 %v243, %v250
      %v259 = vmul.f32 %v244, %v250
      %v260 = vld [vmem:[%s2] sm:$0x1]
      %v262 = vlaneseq
      %v263 = vshrl.u32 %v262, 7
      %v264 = vsub.s32 0, %v263
      %v265 = vrot.slane %v260, %v264
      %v267 = vadd.f32 %v252, %v265
      %v268 = vadd.f32 %v253, %v265
      %v269 = vadd.f32 %v254, %v265
      %v270 = vadd.f32 %v255, %v265
      %v271 = vadd.f32 %v256, %v265
      %v272 = vadd.f32 %v257, %v265
      %v273 = vadd.f32 %v258, %v265
      %v274 = vadd.f32 %v259, %v265
      %v275 = vpack.c.bf16 %v268, %v267
      %v276 = vpack.c.bf16 %v270, %v269
      %v277 = vpack.c.bf16 %v272, %v271
      %v278 = vpack.c.bf16 %v274, %v273
      %v279 = vld [vmem:[%s3] sm:$0xf]
      %v280 = vld [vmem:[%s3 + $0x4] sm:$0xf]
      %v281 = vld [vmem:[%s3 + $0x8] sm:$0xf]
      %v282 = vld [vmem:[%s3 + $0xc] sm:$0xf]
      %v283 = vld [vmem:[%s3 + $0x10] sm:$0xf]
      %v284 = vld [vmem:[%s3 + $0x14] sm:$0xf]
      %v285 = vld [vmem:[%s3 + $0x18] sm:$0xf]
      %v286 = vld [vmem:[%s3 + $0x1c] sm:$0xf]
      %v287 = vld [vmem:[%s4] sm:$0x1]
      %v289 = vlaneseq
      %v290 = vshrl.u32 %v289, 7
      %v291 = vsub.s32 0, %v290
      %v292 = vrot.slane %v287, %v291
      %v302 = vunpack.c.l.b16 %v279
      %v303 = vunpack.c.l.b16 %v280
      %v304 = vunpack.c.l.b16 %v281
      %v305 = vunpack.c.l.b16 %v282
      %v306 = vunpack.c.l.b16 %v283
      %v307 = vunpack.c.l.b16 %v284
      %v308 = vunpack.c.l.b16 %v285
      %v309 = vunpack.c.l.b16 %v286
      %v310 = vpack.c.b16 %v303, %v302
      %v311 = vpack.c.b16 %v305, %v304
      %v312 = vpack.c.b16 %v307, %v306
      %v313 = vpack.c.b16 %v309, %v308
      %vm318 = vcmask 523264
      %v320 = vsel %vm318, %v275, 0
      %v323 = vsel %vm318, %v276, 0
      %v326 = vsel %vm318, %v277, 0
      %v329 = vsel %vm318, %v278, 0
      %331 = vmatprep.subr.bf16.mxu0 0
      %332 = vmatpush1.bf16.msra.mxu0 0
      %333 = vmatprep.subr.bf16.mxu0 0
      %334 = vmatpush1.bf16.msra.mxu0 0
      %335 = vmatprep.subr.bf16.mxu0 0
      %336 = vmatpush1.bf16.msra.mxu0 0
      %337 = vmatprep.subr.bf16.mxu0 0
      %338 = vmatpush1.bf16.msra.mxu0 0
      %339 = vmatprep.subr.bf16.mxu0 0
      %340 = vmatpush1.bf16.msra.mxu0 %v313
      %341 = vmatprep.subr.bf16.mxu0 0
      %342 = vmatpush1.bf16.msra.mxu0 %v312
      %343 = vmatprep.subr.bf16.mxu0 0
      %344 = vmatpush1.bf16.msra.mxu0 %v311
      %345 = vmatprep.subr.bf16.mxu0 0
      %346 = vmatpush1.bf16.msra.mxu0 %v310
      %347 = vmatprep.subr.bf16.mxu0 0
      %348 = vmatpush2.bf16.msra.mxu0 0
      %349 = vmatprep.subr.bf16.mxu0 0
      %350 = vmatpush2.bf16.msra.mxu0 0
      %351 = vmatprep.subr.bf16.mxu0 0
      %352 = vmatpush2.bf16.msra.mxu0 0
      %353 = vmatprep.subr.bf16.mxu0 0
      %354 = vmatpush2.bf16.msra.mxu0 0
      %355 = vmatprep.subr.bf16.mxu0 0
      %356 = vmatpush2.bf16.msra.mxu0 0
      %357 = vmatprep.subr.bf16.mxu0 0
      %358 = vmatpush2.bf16.msra.mxu0 0
      %359 = vmatprep.subr.bf16.mxu0 0
      %360 = vmatpush2.bf16.msra.mxu0 0
      %361 = vmatprep.subr.bf16.mxu0 0
      %362 = vmatpush2.bf16.msra.mxu0 0
      %363 = vmatprep.mubr.bf16.mxu0 0
      %364 = vmatmul.mubr.bf16.gmra.mxu0 %v320
      %v365 = vpop.f32.mrf.mxu0
      %v366 = vadd.f32 %v292, %v365
      %v367 = vpop.f32.mrf.mxu0
      %v368 = vpop.f32.mrf.mxu0
      %v369 = vadd.f32 %v292, %v368
      %v370 = vpop.f32.mrf.mxu0
      %371 = vmatprep.mubr.bf16.mxu0 0
      %372 = vmatmul.mubr.bf16.gmra.mxu0 %v323
      %v373 = vpop.f32.mrf.mxu0
      %v374 = vadd.f32 %v292, %v373
      %v375 = vpop.f32.mrf.mxu0
      %v376 = vpop.f32.mrf.mxu0
      %v377 = vadd.f32 %v292, %v376
      %v378 = vpop.f32.mrf.mxu0
      %379 = vmatprep.mubr.bf16.mxu0 0
      %380 = vmatmul.mubr.bf16.gmra.mxu0 %v326
      %v381 = vpop.f32.mrf.mxu0
      %v382 = vadd.f32 %v292, %v381
      %v383 = vpop.f32.mrf.mxu0
      %v384 = vpop.f32.mrf.mxu0
      %v385 = vadd.f32 %v292, %v384
      %v386 = vpop.f32.mrf.mxu0
      %387 = vmatprep.mubr.bf16.mxu0 0
      %388 = vmatmul.mubr.bf16.gmra.mxu0 %v329
      %v389 = vpop.f32.mrf.mxu0
      %v390 = vadd.f32 %v292, %v389
      %v391 = vpop.f32.mrf.mxu0
      %v392 = vpop.f32.mrf.mxu0
      %v393 = vadd.f32 %v292, %v392
      %v394 = vpop.f32.mrf.mxu0
      %395 = vdwg.mxu0
      %396 = vst [vmem:[%s226] sm:$0xff] %v366
      %397 = vst [vmem:[%s226 + $0x8] sm:$0xff] %v369
      %398 = vst [vmem:[%s226 + $0x10] sm:$0xff] %v374
      %399 = vst [vmem:[%s226 + $0x18] sm:$0xff] %v377
      %400 = vst [vmem:[%s226 + $0x20] sm:$0xff] %v382
      %401 = vst [vmem:[%s226 + $0x28] sm:$0xff] %v385
      %402 = vst [vmem:[%s226 + $0x30] sm:$0xff] %v390
      %403 = vst [vmem:[%s226 + $0x38] sm:$0xff] %v393
      %s404 = smul.u32 8, %s16
      %p405 = scmp.lt.s32.totalorder %s404, 15
      %s406 = scalar_select %p405, %s404, 15
      %s407 = smul.addr %s406, 8
      %s408 = scalar_lea.vmem %s5, %s407
      // Predicated region
      $region41: #{latent_guidance_forward.9} parent=39 // pred_check
        %p409 = pneg %p144
      $region42: #{latent_guidance_forward.9} parent=39 // pred_check_branch
        %411 = sbr.rel (%p409) target = $region44
      $region43: #{latent_guidance_forward.9} parent=39 // pred_region
        %s412 = smul.u32 8, %s16
      $region44: #{latent_guidance_forward.9} parent=39 // pred_fallthru
        _
    $region40: #{latent_guidance_forward.9} parent=5 // pred_fallthru
      _
    %p413 = scmp.le.s32.totalorder 2, %s11
    // Predicated region
    $region45: #{latent_guidance_forward.9} parent=5 // pred_check
      %p414 = pneg %p413
    $region46: #{latent_guidance_forward.9} parent=5 // pred_check_branch
      %416 = sbr.rel (%p414) target = $region48
    $region47: #{latent_guidance_forward.9} parent=5 // pred_region
      %s417 = ssub.s32 %s11, 2
      // Predicated region
      $region49: #{latent_guidance_forward.9} parent=47 // pred_check
        %p418 = pneg %p150
      $region50: #{latent_guidance_forward.9} parent=47 // pred_check_branch
        %420 = sbr.rel (%p418) target = $region52
      $region51: #{latent_guidance_forward.9} parent=47 // pred_region
        %s421 = smul.u32 8, %s17
        %p422 = scmp.lt.s32.totalorder %s421, 15
        %s423 = scalar_select %p422, %s421, 15
        %s424 = smul.addr %s423, 8
        %s425 = scalar_lea.vmem %s5, %s424
      $region52: #{latent_guidance_forward.9} parent=47 // pred_fallthru
        _
    $region48: #{latent_guidance_forward.9} parent=5 // pred_fallthru
      _
  $region6: #{latent_guidance_forward.9} parent=0 // loop_footer
    %s15 = sadd.s32 1, %s11
  $region7: #{latent_guidance_forward.9} parent=0 // loop_footer_branch
    %10 = sbr.rel target = $region3
  $region8: #{latent_guidance_forward.9} parent=0 // loop_exit
    _

// kernel: latent_guidance_forward.7
$region0: #{latent_guidance_forward.7}
  #allocation0 [shape = 'u32[]', space=smem, size = 0x4, offset = 0x4, fixed_abs, tag = 'smem constant byte address 0x4 - core index']
  #allocation1 [shape = 'u32[144,128]{1,0:T(1,128)}', space=vmem, size = 0x12000, scoped, tag = 'internal scratch']
  %s0 = inlined_call_operand.vmem [shape: bf16[128,256], index: 0, kind: input, shape index: {}]
  %s1 = inlined_call_operand.vmem [shape: f32[1,256], index: 1, kind: input, shape index: {}]
  %s2 = inlined_call_operand.vmem [shape: f32[1,256], index: 2, kind: input, shape index: {}]
  %s3 = inlined_call_operand.vmem [shape: bf16[256,128], index: 3, kind: input, shape index: {}]
  %s4 = inlined_call_operand.vmem [shape: f32[1,128], index: 4, kind: input, shape index: {}]
  %s5 = inlined_call_operand.vmem [shape: bf16[128,128], index: 5, kind: output, shape index: {0}]
  %s6 = inlined_call_operand.vmem [shape: f32[2,8,128], index: 6, kind: output, shape index: {1}]
  %7 = xla_tuple %s5, %s6
  %s8 = sld [smem:[#allocation0]]
  $region61: #{latent_guidance_forward.7} parent=0
    _
  %s10 = ssub.s32 1, %s8
  %s11 = scalar_select 0, %s10, %s8
  loop: start=0, step=1, limit=4
  $region2: #{latent_guidance_forward.7} parent=0 // loop_pre_header
    _
  $region3: #{latent_guidance_forward.7} parent=0 // loop_header
    %s13 = sphi 0, %s17
    %p14 = scmp.ge.s32.totalorder %s13, 4
    %s23 = sphi 0, %s25
    %s26 = sphi 0, %s23
    %s27 = sphi 0, %s26
    %s43 = sphi 0, %s27
    %s47 = sphi 0, %s47
    %s49 = sphi 0, %s47
    %s50 = sphi 0, %s49
    %s64 = sphi 0, %s50
    %s68 = sphi 0, %s68
    %s70 = sphi 0, %s68
    %s71 = sphi 0, %s70
    %s85 = sphi 0, %s71
    %s89 = sphi 0, %s89
    %s91 = sphi 0, %s89
    %s92 = sphi 0, %s91
    %s106 = sphi 0, %s92
    %s110 = sphi 0, %s110
    %s112 = sphi 0, %s110
    %s113 = sphi 0, %s112
    %s127 = sphi 0, %s113
    %s133 = sphi 0, %s135
    %s136 = sphi 0, %s133
    %s137 = sphi 0, %s136
    %s153 = sphi 0, %s137
    %s159 = sphi 0, %s161
    %s162 = sphi 0, %s159
    %s163 = sphi 0, %s162
    %s179 = sphi 0, %s163
  $region4: #{latent_guidance_forward.7} parent=0 // loop_header_branch
    %16 = sbr.rel (%p14) target = $region8
  $region5: #{latent_guidance_forward.7} parent=0 // loop_body
    %s18 = ssub.s32 %s13, 1
    %s19 = ssub.s32 %s13, 2
    %s20 = sadd.s32 %s13, 1
    %s21 = ssub.s32 %s13, %s20
    %p22 = scmp.eq.s32.totalorder %s21, 0
    %s24 = sadd.s32 %s23, 1
    %s25 = scalar_select %p22, %s23, %s24
    %p28 = pneg %p22
    %p29 = scmp.eq.s32.totalorder %s13, 1
    %p30 = por %p28, %p29
    %p31 = scmp.ne.s32.totalorder %s23, %s26
    %p32 = scmp.eq.s32.totalorder %s13, 0
    %p33 = por %p31, %p32
    %p34 = scmp.ne.s32.totalorder %s23, %s26
    %p35 = scmp.eq.s32.totalorder %s18, 1
    %p36 = por %p34, %p35
    %p37 = scmp.ne.s32.totalorder %s26, %s27
    %p38 = scmp.eq.s32.totalorder %s18, 0
    %p39 = por %p37, %p38
    %p40 = scmp.ne.s32.totalorder %s26, %s27
    %p41 = scmp.eq.s32.totalorder %s19, 1
    %p42 = por %p40, %p41
    %p44 = scmp.ne.s32.totalorder %s27, %s43
    %p45 = scmp.eq.s32.totalorder %s19, 0
    %p46 = por %p44, %p45
    %s48 = sadd.s32 %s47, 1
    %p51 = scmp.eq.s32.totalorder %s13, 1
    %p52 = scmp.ne.s32.totalorder %s47, %s49
    %p53 = scmp.eq.s32.totalorder %s13, 0
    %p54 = por %p52, %p53
    %p55 = scmp.ne.s32.totalorder %s47, %s49
    %p56 = scmp.eq.s32.totalorder %s18, 1
    %p57 = por %p55, %p56
    %p58 = scmp.ne.s32.totalorder %s49, %s50
    %p59 = scmp.eq.s32.totalorder %s18, 0
    %p60 = por %p58, %p59
    %p61 = scmp.ne.s32.totalorder %s49, %s50
    %p62 = scmp.eq.s32.totalorder %s19, 1
    %p63 = por %p61, %p62
    %p65 = scmp.ne.s32.totalorder %s50, %s64
    %p66 = scmp.eq.s32.totalorder %s19, 0
    %p67 = por %p65, %p66
    %s69 = sadd.s32 %s68, 1
    %p72 = scmp.eq.s32.totalorder %s13, 1
    %p73 = scmp.ne.s32.totalorder %s68, %s70
    %p74 = scmp.eq.s32.totalorder %s13, 0
    %p75 = por %p73, %p74
    %p76 = scmp.ne.s32.totalorder %s68, %s70
    %p77 = scmp.eq.s32.totalorder %s18, 1
    %p78 = por %p76, %p77
    %p79 = scmp.ne.s32.totalorder %s70, %s71
    %p80 = scmp.eq.s32.totalorder %s18, 0
    %p81 = por %p79, %p80
    %p82 = scmp.ne.s32.totalorder %s70, %s71
    %p83 = scmp.eq.s32.totalorder %s19, 1
    %p84 = por %p82, %p83
    %p86 = scmp.ne.s32.totalorder %s71, %s85
    %p87 = scmp.eq.s32.totalorder %s19, 0
    %p88 = por %p86, %p87
    %s90 = sadd.s32 %s89, 1
    %p93 = scmp.eq.s32.totalorder %s13, 1
    %p94 = scmp.ne.s32.totalorder %s89, %s91
    %p95 = scmp.eq.s32.totalorder %s13, 0
    %p96 = por %p94, %p95
    %p97 = scmp.ne.s32.totalorder %s89, %s91
    %p98 = scmp.eq.s32.totalorder %s18, 1
    %p99 = por %p97, %p98
    %p100 = scmp.ne.s32.totalorder %s91, %s92
    %p101 = scmp.eq.s32.totalorder %s18, 0
    %p102 = por %p100, %p101
    %p103 = scmp.ne.s32.totalorder %s91, %s92
    %p104 = scmp.eq.s32.totalorder %s19, 1
    %p105 = por %p103, %p104
    %p107 = scmp.ne.s32.totalorder %s92, %s106
    %p108 = scmp.eq.s32.totalorder %s19, 0
    %p109 = por %p107, %p108
    %s111 = sadd.s32 %s110, 1
    %p114 = scmp.eq.s32.totalorder %s13, 1
    %p115 = scmp.ne.s32.totalorder %s110, %s112
    %p116 = scmp.eq.s32.totalorder %s13, 0
    %p117 = por %p115, %p116
    %p118 = scmp.ne.s32.totalorder %s110, %s112
    %p119 = scmp.eq.s32.totalorder %s18, 1
    %p120 = por %p118, %p119
    %p121 = scmp.ne.s32.totalorder %s112, %s113
    %p122 = scmp.eq.s32.totalorder %s18, 0
    %p123 = por %p121, %p122
    %p124 = scmp.ne.s32.totalorder %s112, %s113
    %p125 = scmp.eq.s32.totalorder %s19, 1
    %p126 = por %p124, %p125
    %p128 = scmp.ne.s32.totalorder %s113, %s127
    %p129 = scmp.eq.s32.totalorder %s19, 0
    %p130 = por %p128, %p129
    %s131 = ssub.s32 %s13, %s20
    %p132 = scmp.eq.s32.totalorder %s131, 0
    %s134 = sadd.s32 %s133, 1
    %s135 = scalar_select %p132, %s133, %s134
    %p138 = pneg %p132
    %p139 = scmp.eq.s32.totalorder %s13, 1
    %p140 = por %p138, %p139
    %p141 = scmp.ne.s32.totalorder %s133, %s136
    %p142 = scmp.eq.s32.totalorder %s13, 0
    %p143 = por %p141, %p142
    %p144 = scmp.ne.s32.totalorder %s133, %s136
    %p145 = scmp.eq.s32.totalorder %s18, 1
    %p146 = por %p144, %p145
    %p147 = scmp.ne.s32.totalorder %s136, %s137
    %p148 = scmp.eq.s32.totalorder %s18, 0
    %p149 = por %p147, %p148
    %p150 = scmp.ne.s32.totalorder %s136, %s137
    %p151 = scmp.eq.s32.totalorder %s19, 1
    %p152 = por %p150, %p151
    %p154 = scmp.ne.s32.totalorder %s137, %s153
    %p155 = scmp.eq.s32.totalorder %s19, 0
    %p156 = por %p154, %p155
    %s157 = ssub.s32 %s13, %s20
    %p158 = scmp.eq.s32.totalorder %s157, 0
    %s160 = sadd.s32 %s159, 1
    %s161 = scalar_select %p158, %s159, %s160
    %p164 = pneg %p158
    %p165 = scmp.eq.s32.totalorder %s13, 1
    %p166 = por %p164, %p165
    %p167 = scmp.ne.s32.totalorder %s159, %s162
    %p168 = scmp.eq.s32.totalorder %s13, 0
    %p169 = por %p167, %p168
    %p170 = scmp.ne.s32.totalorder %s159, %s162
    %p171 = scmp.eq.s32.totalorder %s18, 1
    %p172 = por %p170, %p171
    %p173 = scmp.ne.s32.totalorder %s162, %s163
    %p174 = scmp.eq.s32.totalorder %s18, 0
    %p175 = por %p173, %p174
    %p176 = scmp.ne.s32.totalorder %s162, %s163
    %p177 = scmp.eq.s32.totalorder %s19, 1
    %p178 = por %p176, %p177
    %p180 = scmp.ne.s32.totalorder %s163, %s179
    %p181 = scmp.eq.s32.totalorder %s19, 0
    %p182 = por %p180, %p181
    %p183 = scmp.le.s32.totalorder 1, %s13
    %p184 = scmp.lt.s32.totalorder %s13, 3
    %p185 = pnand %p183, %p184
    %p186 = pneg %p185
    // Predicated region
    $region9: #{latent_guidance_forward.7} parent=5 // pred_check
      _
    $region10: #{latent_guidance_forward.7} parent=5 // pred_check_branch
      %188 = sbr.rel (%p185) target = $region12
    $region11: #{latent_guidance_forward.7} parent=5 // pred_region
      %s189 = ssub.s32 %s13, 1
      // Predicated region
      $region13: #{latent_guidance_forward.7} parent=11 // pred_check
        %p190 = pneg %p60
      $region14: #{latent_guidance_forward.7} parent=11 // pred_check_branch
        %192 = sbr.rel (%p190) target = $region16
      $region15: #{latent_guidance_forward.7} parent=11 // pred_region
        _
      $region16: #{latent_guidance_forward.7} parent=11 // pred_fallthru
        _
      // Predicated region
      $region17: #{latent_guidance_forward.7} parent=11 // pred_check
        %p193 = pneg %p81
      $region18: #{latent_guidance_forward.7} parent=11 // pred_check_branch
        %195 = sbr.rel (%p193) target = $region20
      $region19: #{latent_guidance_forward.7} parent=11 // pred_region
        _
      $region20: #{latent_guidance_forward.7} parent=11 // pred_fallthru
        _
      // Predicated region
      $region21: #{latent_guidance_forward.7} parent=11 // pred_check
        %p196 = pneg %p102
      $region22: #{latent_guidance_forward.7} parent=11 // pred_check_branch
        %198 = sbr.rel (%p196) target = $region24
      $region23: #{latent_guidance_forward.7} parent=11 // pred_region
        _
      $region24: #{latent_guidance_forward.7} parent=11 // pred_fallthru
        _
      // Predicated region
      $region25: #{latent_guidance_forward.7} parent=11 // pred_check
        %p199 = pneg %p123
      $region26: #{latent_guidance_forward.7} parent=11 // pred_check_branch
        %201 = sbr.rel (%p199) target = $region28
      $region27: #{latent_guidance_forward.7} parent=11 // pred_region
        _
      $region28: #{latent_guidance_forward.7} parent=11 // pred_fallthru
        _
    $region12: #{latent_guidance_forward.7} parent=5 // pred_fallthru
      _
    %p202 = scmp.lt.s32.totalorder %s13, 2
    // Predicated region
    $region29: #{latent_guidance_forward.7} parent=5 // pred_check
      %p203 = pneg %p202
    $region30: #{latent_guidance_forward.7} parent=5 // pred_check_branch
      %205 = sbr.rel (%p203) target = $region32
    $region31: #{latent_guidance_forward.7} parent=5 // pred_region
      // Predicated region
      $region33: #{latent_guidance_forward.7} parent=31 // pred_check
        %p206 = pneg %p33
      $region34: #{latent_guidance_forward.7} parent=31 // pred_check_branch
        %208 = sbr.rel (%p206) target = $region36
      $region35: #{latent_guidance_forward.7} parent=31 // pred_region
        %s209 = smul.u32 8, %s13
        %p210 = scmp.lt.s32.totalorder %s209, 15
        %s211 = scalar_select %p210, %s209, 15
        %s212 = smul.addr %s211, 2
        %s213 = smul.addr %s212, 4
        %s214 = scalar_lea.vmem %s0, %s213
        %s215 = smul.u32 8, %s13
      $region36: #{latent_guidance_forward.7} parent=31 // pred_fallthru
        _
    $region32: #{latent_guidance_forward.7} parent=5 // pred_fallthru
      _
    %p216 = scmp.le.s32.totalorder 1, %s13
    %p217 = scmp.lt.s32.totalorder %s13, 3
    %p218 = pnand %p216, %p217
    %p219 = pneg %p218
    // Predicated region
    $region37: #{latent_guidance_forward.7} parent=5 // pred_check
      _
    $region38: #{latent_guidance_forward.7} parent=5 // pred_check_branch
      %221 = sbr.rel (%p218) target = $region40
    $region39: #{latent_guidance_forward.7} parent=5 // pred_region
      %s222 = ssub.s32 %s13, 1
      %s223 = smul.u32 8, %s18
      %p224 = scmp.lt.s32.totalorder %s223, 15
      %s225 = scalar_select %p224, %s223, 15
      %s226 = smul.addr %s225, 2
      %s227 = smul.addr %s226, 4
      %s228 = scalar_lea.vmem %s0, %s227
      %p229 = pneg %p39
      %p230 = pneg %p36
      %p231 = pneg %p60
      %p232 = pneg %p57
      %p233 = pneg %p81
      %p234 = pneg %p78
      %p235 = pneg %p102
      %p236 = pneg %p99
      %p237 = pneg %p123
      %p238 = pneg %p120
      %p239 = pneg %p149
      %p240 = pneg %p146
      %s241 = smul.u32 8, %s18
      %p242 = scmp.lt.s32.totalorder %s241, 15
      %s243 = scalar_select %p242, %s241, 15
      %s244 = smul.addr %s243, 4
      %s245 = scalar_lea.vmem %s5, %s244
      %p246 = pneg %p175
      %p247 = pneg %p172
      %p248 = scmp.lt.s32.totalorder %s18, 1
      %s249 = scalar_select %p248, %s18, 1
      %s250 = smul.addr %s249, 8
      %s251 = scalar_lea.vmem %s6, %s250
      %s252 = smul.u32 8, %s18
      %p253 = scmp.lt.s32.totalorder %s252, 15
      %s254 = scalar_select %p253, %s252, 15
      %s255 = smul.addr %s254, 2
      %s256 = smul.addr %s255, 4
      %s257 = scalar_lea.vmem %s0, %s256
      %s258 = smul.u32 8, %s18
      %s259 = smul.u32 8, %s18
      %p260 = scmp.lt.s32.totalorder %s259, 15
      %s261 = scalar_select %p260, %s259, 15
      %s262 = smul.addr %s261, 4
      %s263 = scalar_lea.vmem %s5, %s262
      %s264 = smul.u32 8, %s18
      %p265 = scmp.lt.s32.totalorder %s18, 1
      %s266 = scalar_select %p265, %s18, 1
      %s267 = smul.addr %s266, 8
      %s268 = scalar_lea.vmem %s6, %s267
      %v270 = vld [vmem:[%s257] sm:$0xff]
      %v271 = vld [vmem:[%s257 + $0x8] sm:$0xff]
      %v272 = vld [vmem:[%s257 + $0x10] sm:$0xff]
      %v273 = vld [vmem:[%s257 + $0x18] sm:$0xff]
      %v274 = vld [vmem:[%s257 + $0x20] sm:$0xff]
      %v275 = vld [vmem:[%s257 + $0x28] sm:$0xff]
      %v276 = vld [vmem:[%s257 + $0x30] sm:$0xff]
      %v277 = vld [vmem:[%s257 + $0x38] sm:$0xff]
      %v278 = vunpack.c.l.bf16 %v270
      %v279 = vunpack.c.h.bf16 %v270
      %v280 = vunpack.c.l.bf16 %v271
      %v281 = vunpack.c.h.bf16 %v271
      %v282 = vunpack.c.l.bf16 %v272
      %v283 = vunpack.c.h.bf16 %v272
      %v284 = vunpack.c.l.bf16 %v273
      %v285 = vunpack.c.h.bf16 %v273
      %v286 = vunpack.c.l.bf16 %v274
      %v287 = vunpack.c.h.bf16 %v274
      %v288 = vunpack.c.l.bf16 %v275
      %v289 = vunpack.c.h.bf16 %v275
      %v290 = vunpack.c.l.bf16 %v276
      %v291 = vunpack.c.h.bf16 %v276
      %v292 = vunpack.c.l.bf16 %v277
      %v293 = vunpack.c.h.bf16 %v277
      %v294 = vld [vmem:[%s1] sm:$0x3]
      %v296 = vlaneseq
      %v297 = vshrl.u32 %v296, 7
      %v298 = vsub.s32 0, %v297
      %v299 = vrot.slane %v294, %v298
      %v300 = vlaneseq
      %v301 = vshrl.u32 %v300, 7
      %v302 = vsub.s32 1, %v301
      %v303 = vrot.slane %v294, %v302
      %v306 = vmul.f32 %v278, %v299
      %v307 = vmul.f32 %v279, %v303
      %v308 = vmul.f32 %v280, %v299
      %v309 = vmul.f32 %v281, %v303
      %v310 = vmul.f32 %v282, %v299
      %v311 = vmul.f32 %v283, %v303
      %v312 = vmul.f32 %v284, %v299
      %v313 = vmul.f32 %v285, %v303
      %v314 = vmul.f32 %v286, %v299
      %v315 = vmul.f32 %v287, %v303
      %v316 = vmul.f32 %v288, %v299
      %v317 = vmul.f32 %v289, %v303
      %v318 = vmul.f32 %v290, %v299
      %v319 = vmul.f32 %v291, %v303
      %v320 = vmul.f32 %v292, %v299
      %v321 = vmul.f32 %v293, %v303
      %v322 = vld [vmem:[%s2] sm:$0x3]
      %v324 = vlaneseq
      %v325 = vshrl.u32 %v324, 7
      %v326 = vsub.s32 0, %v325
      %v327 = vrot.slane %v322, %v326
      %v328 = vlaneseq
      %v329 = vshrl.u32 %v328, 7
      %v330 = vsub.s32 1, %v329
      %v331 = vrot.slane %v322, %v330
      %v334 = vadd.f32 %v306, %v327
      %v335 = vadd.f32 %v307, %v331
      %v336 = vadd.f32 %v308, %v327
      %v337 = vadd.f32 %v309, %v331
      %v338 = vadd.f32 %v310, %v327
      %v339 = vadd.f32 %v311, %v331
      %v340 = vadd.f32 %v312, %v327
      %v341 = vadd.f32 %v313, %v331
      %v342 = vadd.f32 %v314, %v327
      %v343 = vadd.f32 %v315, %v331
      %v344 = vadd.f32 %v316, %v327
      %v345 = vadd.f32 %v317, %v331
      %v346 = vadd.f32 %v318, %v327
      %v347 = vadd.f32 %v319, %v331
      %v348 = vadd.f32 %v320, %v327
      %v349 = vadd.f32 %v321, %v331
      %v350 = vpack.c.bf16 %v336, %v334
      %v351 = vpack.c.bf16 %v337, %v335
      %v352 = vpack.c.bf16 %v340, %v338
      %v353 = vpack.c.bf16 %v341, %v339
      %v354 = vpack.c.bf16 %v344, %v342
      %v355 = vpack.c.bf16 %v345, %v343
      %v356 = vpack.c.bf16 %v348, %v346
      %v357 = vpack.c.bf16 %v349, %v347
      %v358 = vld [vmem:[%s3] sm:$0xf]
      %v359 = vld [vmem:[%s3 + $0x4] sm:$0xf]
      %v360 = vld [vmem:[%s3 + $0x8] sm:$0xf]
      %v361 = vld [vmem:[%s3 + $0xc] sm:$0xf]
      %v362 = vld [vmem:[%s3 + $0x10] sm:$0xf]
      %v363 = vld [vmem:[%s3 + $0x14] sm:$0xf]
      %v364 = vld [vmem:[%s3 + $0x18] sm:$0xf]
      %v365 = vld [vmem:[%s3 + $0x1c] sm:$0xf]
      %v366 = vld [vmem:[%s3 + $0x20] sm:$0xf]
      %v367 = vld [vmem:[%s3 + $0x24] sm:$0xf]
      %v368 = vld [vmem:[%s3 + $0x28] sm:$0xf]
      %v369 = vld [vmem:[%s3 + $0x2c] sm:$0xf]
      %v370 = vld [vmem:[%s3 + $0x30] sm:$0xf]
      %v371 = vld [vmem:[%s3 + $0x34] sm:$0xf]
      %v372 = vld [vmem:[%s3 + $0x38] sm:$0xf]
      %v373 = vld [vmem:[%s3 + $0x3c] sm:$0xf]
      %v374 = vld [vmem:[%s3 + $0x40] sm:$0xf]
      %v375 = vld [vmem:[%s3 + $0x44] sm:$0xf]
      %v376 = vld [vmem:[%s3 + $0x48] sm:$0xf]
      %v377 = vld [vmem:[%s3 + $0x4c] sm:$0xf]
      %v378 = vld [vmem:[%s3 + $0x50] sm:$0xf]
      %v379 = vld [vmem:[%s3 + $0x54] sm:$0xf]
      %v380 = vld [vmem:[%s3 + $0x58] sm:$0xf]
      %v381 = vld [vmem:[%s3 + $0x5c] sm:$0xf]
      %v382 = vld [vmem:[%s3 + $0x60] sm:$0xf]
      %v383 = vld [vmem:[%s3 + $0x64] sm:$0xf]
      %v384 = vld [vmem:[%s3 + $0x68] sm:$0xf]
      %v385 = vld [vmem:[%s3 + $0x6c] sm:$0xf]
      %v386 = vld [vmem:[%s3 + $0x70] sm:$0xf]
      %v387 = vld [vmem:[%s3 + $0x74] sm:$0xf]
      %v388 = vld [vmem:[%s3 + $0x78] sm:$0xf]
      %v389 = vld [vmem:[%s3 + $0x7c] sm:$0xf]
      %v390 = vld [vmem:[%s4] sm:$0x1]
      %v392 = vlaneseq
      %v393 = vshrl.u32 %v392, 7
      %v394 = vsub.s32 0, %v393
      %v395 = vrot.slane %v390, %v394
      %v429 = vunpack.c.l.b16 %v358
      %v430 = vunpack.c.l.b16 %v359
      %v431 = vunpack.c.l.b16 %v360
      %v432 = vunpack.c.l.b16 %v361
      %v433 = vunpack.c.l.b16 %v362
      %v434 = vunpack.c.l.b16 %v363
      %v435 = vunpack.c.l.b16 %v364
      %v436 = vunpack.c.l.b16 %v365
      %v437 = vunpack.c.l.b16 %v366
      %v438 = vunpack.c.l.b16 %v367
      %v439 = vunpack.c.l.b16 %v368
      %v440 = vunpack.c.l.b16 %v369
      %v441 = vunpack.c.l.b16 %v370
      %v442 = vunpack.c.l.b16 %v371
      %v443 = vunpack.c.l.b16 %v372
      %v444 = vunpack.c.l.b16 %v373
      %v445 = vunpack.c.l.b16 %v374
      %v446 = vunpack.c.l.b16 %v375
      %v447 = vunpack.c.l.b16 %v376
      %v448 = vunpack.c.l.b16 %v377
      %v449 = vunpack.c.l.b16 %v378
      %v450 = vunpack.c.l.b16 %v379
      %v451 = vunpack.c.l.b16 %v380
      %v452 = vunpack.c.l.b16 %v381
      %v453 = vunpack.c.l.b16 %v382
      %v454 = vunpack.c.l.b16 %v383
      %v455 = vunpack.c.l.b16 %v384
      %v456 = vunpack.c.l.b16 %v385
      %v457 = vunpack.c.l.b16 %v386
      %v458 = vunpack.c.l.b16 %v387
      %v459 = vunpack.c.l.b16 %v388
      %v460 = vunpack.c.l.b16 %v389
      %v461 = vpack.c.b16 %v430, %v429
      %v462 = vpack.c.b16 %v432, %v431
      %v463 = vpack.c.b16 %v434, %v433
      %v464 = vpack.c.b16 %v436, %v435
      %v465 = vpack.c.b16 %v438, %v437
      %v466 = vpack.c.b16 %v440, %v439
      %v467 = vpack.c.b16 %v442, %v441
      %v468 = vpack.c.b16 %v444, %v443
      %v469 = vpack.c.b16 %v446, %v445
      %v470 = vpack.c.b16 %v448, %v447
      %v471 = vpack.c.b16 %v450, %v449
      %v472 = vpack.c.b16 %v452, %v451
      %v473 = vpack.c.b16 %v454, %v453
      %v474 = vpack.c.b16 %v456, %v455
      %v475 = vpack.c.b16 %v458, %v457
      %v476 = vpack.c.b16 %v460, %v459
      %493 = vmatprep.subr.bf16.mxu0 0
      %494 = vmatpush1.bf16.msra.mxu0 %v468
      %495 = vmatprep.subr.bf16.mxu0 0
      %496 = vmatpush1.bf16.msra.mxu0 %v467
      %497 = vmatprep.subr.bf16.mxu0 0
      %498 = vmatpush1.bf16.msra.mxu0 %v466
      %499 = vmatprep.subr.bf16.mxu0 0
      %500 = vmatpush1.bf16.msra.mxu0 %v465
      %501 = vmatprep.subr.bf16.mxu0 0
      %502 = vmatpush1.bf16.msra.mxu0 %v464
      %503 = vmatprep.subr.bf16.mxu0 0
      %504 = vmatpush1.bf16.msra.mxu0 %v463
      %505 = vmatprep.subr.bf16.mxu0 0
      %506 = vmatpush1.bf16.msra.mxu0 %v462
      %507 = vmatprep.subr.bf16.mxu0 0
      %508 = vmatpush1.bf16.msra.mxu0 %v461
      %509 = vmatprep.subr.bf16.mxu0 0
      %510 = vmatpush2.bf16.msra.mxu0 %v476
      %511 = vmatprep.subr.bf16.mxu0 0
      %512 = vmatpush2.bf16.msra.mxu0 %v475
      %513 = vmatprep.subr.bf16.mxu0 0
      %514 = vmatpush2.bf16.msra.mxu0 %v474
      %515 = vmatprep.subr.bf16.mxu0 0
      %516 = vmatpush2.bf16.msra.mxu0 %v473
      %517 = vmatprep.subr.bf16.mxu0 0
      %518 = vmatpush2.bf16.msra.mxu0 %v472
      %519 = vmatprep.subr.bf16.mxu0 0
      %520 = vmatpush2.bf16.msra.mxu0 %v471
      %521 = vmatprep.subr.bf16.mxu0 0
      %522 = vmatpush2.bf16.msra.mxu0 %v470
      %523 = vmatprep.subr.bf16.mxu0 0
      %524 = vmatpush2.bf16.msra.mxu0 %v469
      %525 = vmatprep.mubr.bf16.mxu0 %v351
      %526 = vmatmul.mubr.bf16.gmra.mxu0 %v350
      %v527 = vpop.f32.mrf.mxu0
      %v528 = vadd.f32 %v395, %v527
      %v529 = vpop.f32.mrf.mxu0
      %v530 = vpop.f32.mrf.mxu0
      %v531 = vadd.f32 %v395, %v530
      %v532 = vpop.f32.mrf.mxu0
      %533 = vmatprep.mubr.bf16.mxu0 %v353
      %534 = vmatmul.mubr.bf16.gmra.mxu0 %v352
      %v535 = vpop.f32.mrf.mxu0
      %v536 = vadd.f32 %v395, %v535
      %v537 = vpop.f32.mrf.mxu0
      %v538 = vpop.f32.mrf.mxu0
      %v539 = vadd.f32 %v395, %v538
      %v540 = vpop.f32.mrf.mxu0
      %541 = vmatprep.mubr.bf16.mxu0 %v355
      %542 = vmatmul.mubr.bf16.gmra.mxu0 %v354
      %v543 = vpop.f32.mrf.mxu0
      %v544 = vadd.f32 %v395, %v543
      %v545 = vpop.f32.mrf.mxu0
      %v546 = vpop.f32.mrf.mxu0
      %v547 = vadd.f32 %v395, %v546
      %v548 = vpop.f32.mrf.mxu0
      %549 = vmatprep.mubr.bf16.mxu0 %v357
      %550 = vmatmul.mubr.bf16.gmra.mxu0 %v356
      %v551 = vpop.f32.mrf.mxu0
      %v552 = vadd.f32 %v395, %v551
      %v553 = vpop.f32.mrf.mxu0
      %v554 = vpop.f32.mrf.mxu0
      %v555 = vadd.f32 %v395, %v554
      %v556 = vpop.f32.mrf.mxu0
      %557 = vdwg.mxu0
      %v558 = vmax.f32 %v528, 0.0
      %v559 = vmax.f32 %v531, 0.0
      %v560 = vmax.f32 %v536, 0.0
      %v561 = vmax.f32 %v539, 0.0
      %v562 = vmax.f32 %v544, 0.0
      %v563 = vmax.f32 %v547, 0.0
      %v564 = vmax.f32 %v552, 0.0
      %v565 = vmax.f32 %v555, 0.0
      %v566 = vpack.c.bf16 %v559, %v558
      %v567 = vpack.c.bf16 %v561, %v560
      %v568 = vpack.c.bf16 %v563, %v562
      %v569 = vpack.c.bf16 %v565, %v564
      %v574 = vunpack.c.l.b16 %v566
      %v575 = vunpack.c.h.b16 %v566
      %v576 = vunpack.c.l.b16 %v567
      %v577 = vunpack.c.h.b16 %v567
      %v578 = vunpack.c.l.b16 %v568
      %v579 = vunpack.c.h.b16 %v568
      %v580 = vunpack.c.l.b16 %v569
      %v581 = vunpack.c.h.b16 %v569
      %v582 = vpack.c.b16 %v574, %v574
      %v583 = vpack.c.b16 %v575, %v575
      %v584 = vpack.c.b16 %v576, %v576
      %v585 = vpack.c.b16 %v577, %v577
      %v586 = vpack.c.b16 %v578, %v578
      %v587 = vpack.c.b16 %v579, %v579
      %v588 = vpack.c.b16 %v580, %v580
      %v589 = vpack.c.b16 %v581, %v581
      %598 = vst [vmem:[%s263] sm:$0xf] %v582
      %599 = vst [vmem:[%s263 + $0x4] sm:$0xf] %v583
      %600 = vst [vmem:[%s263 + $0x8] sm:$0xf] %v584
      %601 = vst [vmem:[%s263 + $0xc] sm:$0xf] %v585
      %602 = vst [vmem:[%s263 + $0x10] sm:$0xf] %v586
      %603 = vst [vmem:[%s263 + $0x14] sm:$0xf] %v587
      %604 = vst [vmem:[%s263 + $0x18] sm:$0xf] %v588
      %605 = vst [vmem:[%s263 + $0x1c] sm:$0xf] %v589
      %v606 = vadd.f32 %v558, %v559
      %v607 = vadd.f32 %v606, %v560
      %v608 = vadd.f32 %v607, %v561
      %v609 = vadd.f32 %v608, %v562
      %v610 = vadd.f32 %v609, %v563
      %v611 = vadd.f32 %v610, %v564
      %v612 = vadd.f32 %v611, %v565
      %v613 = vrot.slane %v612, 4
      %v614 = vadd.f32 %v612, %v613
      %v615 = vrot.slane %v614, 2
      %v616 = vadd.f32 %v614, %v615
      %v617 = vrot.slane %v616, 1
      %v618 = vadd.f32 %v616, %v617
      %v619 = vmul.f32 %v558, %v558
      %v620 = vmul.f32 %v559, %v559
      %v621 = vmul.f32 %v560, %v560
      %v622 = vmul.f32 %v561, %v561
      %v623 = vmul.f32 %v562, %v562
      %v624 = vmul.f32 %v563, %v563
      %v625 = vmul.f32 %v564, %v564
      %v626 = vmul.f32 %v565, %v565
      %v627 = vadd.f32 %v619, %v620
      %v628 = vadd.f32 %v627, %v621
      %v629 = vadd.f32 %v628, %v622
      %v630 = vadd.f32 %v629, %v623
      %v631 = vadd.f32 %v630, %v624
      %v632 = vadd.f32 %v631, %v625
      %v633 = vadd.f32 %v632, %v626
      %v634 = vrot.slane %v633, 4
      %v635 = vadd.f32 %v633, %v634
      %v636 = vrot.slane %v635, 2
      %v637 = vadd.f32 %v635, %v636
      %v638 = vrot.slane %v637, 1
      %v639 = vadd.f32 %v637, %v638
      %v640 = vlaneseq
      %v641 = vshrl.u32 %v640, 7
      %vm642 = vcmp.eq.s32.totalorder %v641, 0
      %vm643 = vcmp.eq.s32.totalorder %v641, 1
      %v644 = vsel %vm643, %v639, 0.0
      %v645 = vsel %vm642, %v618, %v644
      %646 = vst [vmem:[%s268] sm:$0xff] %v645
      %s647 = smul.u32 8, %s18
      %p648 = scmp.lt.s32.totalorder %s647, 15
      %s649 = scalar_select %p648, %s647, 15
      %s650 = smul.addr %s649, 4
      %s651 = scalar_lea.vmem %s5, %s650
      %p652 = scmp.lt.s32.totalorder %s18, 1
      %s653 = scalar_select %p652, %s18, 1
      %s654 = smul.addr %s653, 8
      %s655 = scalar_lea.vmem %s6, %s654
      // Predicated region
      $region41: #{latent_guidance_forward.7} parent=39 // pred_check
        %p656 = pneg %p146
      $region42: #{latent_guidance_forward.7} parent=39 // pred_check_branch
        %658 = sbr.rel (%p656) target = $region44
      $region43: #{latent_guidance_forward.7} parent=39 // pred_region
        %s659 = smul.u32 8, %s18
      $region44: #{latent_guidance_forward.7} parent=39 // pred_fallthru
        _
      // Predicated region
      $region45: #{latent_guidance_forward.7} parent=39 // pred_check
        %p660 = pneg %p172
      $region46: #{latent_guidance_forward.7} parent=39 // pred_check_branch
        %662 = sbr.rel (%p660) target = $region48
      $region47: #{latent_guidance_forward.7} parent=39 // pred_region
        _
      $region48: #{latent_guidance_forward.7} parent=39 // pred_fallthru
        _
    $region40: #{latent_guidance_forward.7} parent=5 // pred_fallthru
      _
    %p663 = scmp.le.s32.totalorder 2, %s13
    // Predicated region
    $region49: #{latent_guidance_forward.7} parent=5 // pred_check
      %p664 = pneg %p663
    $region50: #{latent_guidance_forward.7} parent=5 // pred_check_branch
      %666 = sbr.rel (%p664) target = $region52
    $region51: #{latent_guidance_forward.7} parent=5 // pred_region
      %s667 = ssub.s32 %s13, 2
      // Predicated region
      $region53: #{latent_guidance_forward.7} parent=51 // pred_check
        %p668 = pneg %p152
      $region54: #{latent_guidance_forward.7} parent=51 // pred_check_branch
        %670 = sbr.rel (%p668) target = $region56
      $region55: #{latent_guidance_forward.7} parent=51 // pred_region
        %s671 = smul.u32 8, %s19
        %p672 = scmp.lt.s32.totalorder %s671, 15
        %s673 = scalar_select %p672, %s671, 15
        %s674 = smul.addr %s673, 4
        %s675 = scalar_lea.vmem %s5, %s674
      $region56: #{latent_guidance_forward.7} parent=51 // pred_fallthru
        _
      // Predicated region
      $region57: #{latent_guidance_forward.7} parent=51 // pred_check
        %p676 = pneg %p178
      $region58: #{latent_guidance_forward.7} parent=51 // pred_check_branch
        %678 = sbr.rel (%p676) target = $region60
      $region59: #{latent_guidance_forward.7} parent=51 // pred_region
        %p679 = scmp.lt.s32.totalorder %s19, 1
        %s680 = scalar_select %p679, %s19, 1
        %s681 = smul.addr %s680, 8
        %s682 = scalar_lea.vmem %s6, %s681
      $region60: #{latent_guidance_forward.7} parent=51 // pred_fallthru
        _
    $region52: #{latent_guidance_forward.7} parent=5 // pred_fallthru
      _
  $region6: #{latent_guidance_forward.7} parent=0 // loop_footer
    %s17 = sadd.s32 1, %s13
  $region7: #{latent_guidance_forward.7} parent=0 // loop_footer_branch
    %12 = sbr.rel target = $region3
  $region8: #{latent_guidance_forward.7} parent=0 // loop_exit
    _

// kernel: latent_guidance_forward.8
$region0: #{latent_guidance_forward.8}
  #allocation0 [shape = 'u32[]', space=smem, size = 0x4, offset = 0x4, fixed_abs, tag = 'smem constant byte address 0x4 - core index']
  #allocation1 [shape = 'u32[144,128]{1,0:T(1,128)}', space=vmem, size = 0x12000, scoped, tag = 'internal scratch']
  %s0 = inlined_call_operand.vmem [shape: bf16[128,128], index: 0, kind: input, shape index: {}]
  %s1 = inlined_call_operand.vmem [shape: f32[1,128], index: 1, kind: input, shape index: {}]
  %s2 = inlined_call_operand.vmem [shape: f32[1,128], index: 2, kind: input, shape index: {}]
  %s3 = inlined_call_operand.vmem [shape: bf16[128,64], index: 3, kind: input, shape index: {}]
  %s4 = inlined_call_operand.vmem [shape: f32[1,64], index: 4, kind: input, shape index: {}]
  %s5 = inlined_call_operand.vmem [shape: bf16[128,64], index: 5, kind: output, shape index: {0}]
  %s6 = inlined_call_operand.vmem [shape: f32[2,8,64], index: 6, kind: output, shape index: {1}]
  %7 = xla_tuple %s5, %s6
  %s8 = sld [smem:[#allocation0]]
  $region61: #{latent_guidance_forward.8} parent=0
    _
  %s10 = ssub.s32 1, %s8
  %s11 = scalar_select 0, %s10, %s8
  loop: start=0, step=1, limit=4
  $region2: #{latent_guidance_forward.8} parent=0 // loop_pre_header
    _
  $region3: #{latent_guidance_forward.8} parent=0 // loop_header
    %s13 = sphi 0, %s17
    %p14 = scmp.ge.s32.totalorder %s13, 4
    %s23 = sphi 0, %s25
    %s26 = sphi 0, %s23
    %s27 = sphi 0, %s26
    %s43 = sphi 0, %s27
    %s47 = sphi 0, %s47
    %s49 = sphi 0, %s47
    %s50 = sphi 0, %s49
    %s64 = sphi 0, %s50
    %s68 = sphi 0, %s68
    %s70 = sphi 0, %s68
    %s71 = sphi 0, %s70
    %s85 = sphi 0, %s71
    %s89 = sphi 0, %s89
    %s91 = sphi 0, %s89
    %s92 = sphi 0, %s91
    %s106 = sphi 0, %s92
    %s110 = sphi 0, %s110
    %s112 = sphi 0, %s110
    %s113 = sphi 0, %s112
    %s127 = sphi 0, %s113
    %s133 = sphi 0, %s135
    %s136 = sphi 0, %s133
    %s137 = sphi 0, %s136
    %s153 = sphi 0, %s137
    %s159 = sphi 0, %s161
    %s162 = sphi 0, %s159
    %s163 = sphi 0, %s162
    %s179 = sphi 0, %s163
  $region4: #{latent_guidance_forward.8} parent=0 // loop_header_branch
    %16 = sbr.rel (%p14) target = $region8
  $region5: #{latent_guidance_forward.8} parent=0 // loop_body
    %s18 = ssub.s32 %s13, 1
    %s19 = ssub.s32 %s13, 2
    %s20 = sadd.s32 %s13, 1
    %s21 = ssub.s32 %s13, %s20
    %p22 = scmp.eq.s32.totalorder %s21, 0
    %s24 = sadd.s32 %s23, 1
    %s25 = scalar_select %p22, %s23, %s24
    %p28 = pneg %p22
    %p29 = scmp.eq.s32.totalorder %s13, 1
    %p30 = por %p28, %p29
    %p31 = scmp.ne.s32.totalorder %s23, %s26
    %p32 = scmp.eq.s32.totalorder %s13, 0
    %p33 = por %p31, %p32
    %p34 = scmp.ne.s32.totalorder %s23, %s26
    %p35 = scmp.eq.s32.totalorder %s18, 1
    %p36 = por %p34, %p35
    %p37 = scmp.ne.s32.totalorder %s26, %s27
    %p38 = scmp.eq.s32.totalorder %s18, 0
    %p39 = por %p37, %p38
    %p40 = scmp.ne.s32.totalorder %s26, %s27
    %p41 = scmp.eq.s32.totalorder %s19, 1
    %p42 = por %p40, %p41
    %p44 = scmp.ne.s32.totalorder %s27, %s43
    %p45 = scmp.eq.s32.totalorder %s19, 0
    %p46 = por %p44, %p45
    %s48 = sadd.s32 %s47, 1
    %p51 = scmp.eq.s32.totalorder %s13, 1
    %p52 = scmp.ne.s32.totalorder %s47, %s49
    %p53 = scmp.eq.s32.totalorder %s13, 0
    %p54 = por %p52, %p53
    %p55 = scmp.ne.s32.totalorder %s47, %s49
    %p56 = scmp.eq.s32.totalorder %s18, 1
    %p57 = por %p55, %p56
    %p58 = scmp.ne.s32.totalorder %s49, %s50
    %p59 = scmp.eq.s32.totalorder %s18, 0
    %p60 = por %p58, %p59
    %p61 = scmp.ne.s32.totalorder %s49, %s50
    %p62 = scmp.eq.s32.totalorder %s19, 1
    %p63 = por %p61, %p62
    %p65 = scmp.ne.s32.totalorder %s50, %s64
    %p66 = scmp.eq.s32.totalorder %s19, 0
    %p67 = por %p65, %p66
    %s69 = sadd.s32 %s68, 1
    %p72 = scmp.eq.s32.totalorder %s13, 1
    %p73 = scmp.ne.s32.totalorder %s68, %s70
    %p74 = scmp.eq.s32.totalorder %s13, 0
    %p75 = por %p73, %p74
    %p76 = scmp.ne.s32.totalorder %s68, %s70
    %p77 = scmp.eq.s32.totalorder %s18, 1
    %p78 = por %p76, %p77
    %p79 = scmp.ne.s32.totalorder %s70, %s71
    %p80 = scmp.eq.s32.totalorder %s18, 0
    %p81 = por %p79, %p80
    %p82 = scmp.ne.s32.totalorder %s70, %s71
    %p83 = scmp.eq.s32.totalorder %s19, 1
    %p84 = por %p82, %p83
    %p86 = scmp.ne.s32.totalorder %s71, %s85
    %p87 = scmp.eq.s32.totalorder %s19, 0
    %p88 = por %p86, %p87
    %s90 = sadd.s32 %s89, 1
    %p93 = scmp.eq.s32.totalorder %s13, 1
    %p94 = scmp.ne.s32.totalorder %s89, %s91
    %p95 = scmp.eq.s32.totalorder %s13, 0
    %p96 = por %p94, %p95
    %p97 = scmp.ne.s32.totalorder %s89, %s91
    %p98 = scmp.eq.s32.totalorder %s18, 1
    %p99 = por %p97, %p98
    %p100 = scmp.ne.s32.totalorder %s91, %s92
    %p101 = scmp.eq.s32.totalorder %s18, 0
    %p102 = por %p100, %p101
    %p103 = scmp.ne.s32.totalorder %s91, %s92
    %p104 = scmp.eq.s32.totalorder %s19, 1
    %p105 = por %p103, %p104
    %p107 = scmp.ne.s32.totalorder %s92, %s106
    %p108 = scmp.eq.s32.totalorder %s19, 0
    %p109 = por %p107, %p108
    %s111 = sadd.s32 %s110, 1
    %p114 = scmp.eq.s32.totalorder %s13, 1
    %p115 = scmp.ne.s32.totalorder %s110, %s112
    %p116 = scmp.eq.s32.totalorder %s13, 0
    %p117 = por %p115, %p116
    %p118 = scmp.ne.s32.totalorder %s110, %s112
    %p119 = scmp.eq.s32.totalorder %s18, 1
    %p120 = por %p118, %p119
    %p121 = scmp.ne.s32.totalorder %s112, %s113
    %p122 = scmp.eq.s32.totalorder %s18, 0
    %p123 = por %p121, %p122
    %p124 = scmp.ne.s32.totalorder %s112, %s113
    %p125 = scmp.eq.s32.totalorder %s19, 1
    %p126 = por %p124, %p125
    %p128 = scmp.ne.s32.totalorder %s113, %s127
    %p129 = scmp.eq.s32.totalorder %s19, 0
    %p130 = por %p128, %p129
    %s131 = ssub.s32 %s13, %s20
    %p132 = scmp.eq.s32.totalorder %s131, 0
    %s134 = sadd.s32 %s133, 1
    %s135 = scalar_select %p132, %s133, %s134
    %p138 = pneg %p132
    %p139 = scmp.eq.s32.totalorder %s13, 1
    %p140 = por %p138, %p139
    %p141 = scmp.ne.s32.totalorder %s133, %s136
    %p142 = scmp.eq.s32.totalorder %s13, 0
    %p143 = por %p141, %p142
    %p144 = scmp.ne.s32.totalorder %s133, %s136
    %p145 = scmp.eq.s32.totalorder %s18, 1
    %p146 = por %p144, %p145
    %p147 = scmp.ne.s32.totalorder %s136, %s137
    %p148 = scmp.eq.s32.totalorder %s18, 0
    %p149 = por %p147, %p148
    %p150 = scmp.ne.s32.totalorder %s136, %s137
    %p151 = scmp.eq.s32.totalorder %s19, 1
    %p152 = por %p150, %p151
    %p154 = scmp.ne.s32.totalorder %s137, %s153
    %p155 = scmp.eq.s32.totalorder %s19, 0
    %p156 = por %p154, %p155
    %s157 = ssub.s32 %s13, %s20
    %p158 = scmp.eq.s32.totalorder %s157, 0
    %s160 = sadd.s32 %s159, 1
    %s161 = scalar_select %p158, %s159, %s160
    %p164 = pneg %p158
    %p165 = scmp.eq.s32.totalorder %s13, 1
    %p166 = por %p164, %p165
    %p167 = scmp.ne.s32.totalorder %s159, %s162
    %p168 = scmp.eq.s32.totalorder %s13, 0
    %p169 = por %p167, %p168
    %p170 = scmp.ne.s32.totalorder %s159, %s162
    %p171 = scmp.eq.s32.totalorder %s18, 1
    %p172 = por %p170, %p171
    %p173 = scmp.ne.s32.totalorder %s162, %s163
    %p174 = scmp.eq.s32.totalorder %s18, 0
    %p175 = por %p173, %p174
    %p176 = scmp.ne.s32.totalorder %s162, %s163
    %p177 = scmp.eq.s32.totalorder %s19, 1
    %p178 = por %p176, %p177
    %p180 = scmp.ne.s32.totalorder %s163, %s179
    %p181 = scmp.eq.s32.totalorder %s19, 0
    %p182 = por %p180, %p181
    %p183 = scmp.le.s32.totalorder 1, %s13
    %p184 = scmp.lt.s32.totalorder %s13, 3
    %p185 = pnand %p183, %p184
    %p186 = pneg %p185
    // Predicated region
    $region9: #{latent_guidance_forward.8} parent=5 // pred_check
      _
    $region10: #{latent_guidance_forward.8} parent=5 // pred_check_branch
      %188 = sbr.rel (%p185) target = $region12
    $region11: #{latent_guidance_forward.8} parent=5 // pred_region
      %s189 = ssub.s32 %s13, 1
      // Predicated region
      $region13: #{latent_guidance_forward.8} parent=11 // pred_check
        %p190 = pneg %p60
      $region14: #{latent_guidance_forward.8} parent=11 // pred_check_branch
        %192 = sbr.rel (%p190) target = $region16
      $region15: #{latent_guidance_forward.8} parent=11 // pred_region
        _
      $region16: #{latent_guidance_forward.8} parent=11 // pred_fallthru
        _
      // Predicated region
      $region17: #{latent_guidance_forward.8} parent=11 // pred_check
        %p193 = pneg %p81
      $region18: #{latent_guidance_forward.8} parent=11 // pred_check_branch
        %195 = sbr.rel (%p193) target = $region20
      $region19: #{latent_guidance_forward.8} parent=11 // pred_region
        _
      $region20: #{latent_guidance_forward.8} parent=11 // pred_fallthru
        _
      // Predicated region
      $region21: #{latent_guidance_forward.8} parent=11 // pred_check
        %p196 = pneg %p102
      $region22: #{latent_guidance_forward.8} parent=11 // pred_check_branch
        %198 = sbr.rel (%p196) target = $region24
      $region23: #{latent_guidance_forward.8} parent=11 // pred_region
        _
      $region24: #{latent_guidance_forward.8} parent=11 // pred_fallthru
        _
      // Predicated region
      $region25: #{latent_guidance_forward.8} parent=11 // pred_check
        %p199 = pneg %p123
      $region26: #{latent_guidance_forward.8} parent=11 // pred_check_branch
        %201 = sbr.rel (%p199) target = $region28
      $region27: #{latent_guidance_forward.8} parent=11 // pred_region
        _
      $region28: #{latent_guidance_forward.8} parent=11 // pred_fallthru
        _
    $region12: #{latent_guidance_forward.8} parent=5 // pred_fallthru
      _
    %p202 = scmp.lt.s32.totalorder %s13, 2
    // Predicated region
    $region29: #{latent_guidance_forward.8} parent=5 // pred_check
      %p203 = pneg %p202
    $region30: #{latent_guidance_forward.8} parent=5 // pred_check_branch
      %205 = sbr.rel (%p203) target = $region32
    $region31: #{latent_guidance_forward.8} parent=5 // pred_region
      // Predicated region
      $region33: #{latent_guidance_forward.8} parent=31 // pred_check
        %p206 = pneg %p33
      $region34: #{latent_guidance_forward.8} parent=31 // pred_check_branch
        %208 = sbr.rel (%p206) target = $region36
      $region35: #{latent_guidance_forward.8} parent=31 // pred_region
        %s209 = smul.u32 8, %s13
        %p210 = scmp.lt.s32.totalorder %s209, 15
        %s211 = scalar_select %p210, %s209, 15
        %s212 = smul.addr %s211, 4
        %s213 = scalar_lea.vmem %s0, %s212
        %s214 = smul.u32 8, %s13
      $region36: #{latent_guidance_forward.8} parent=31 // pred_fallthru
        _
    $region32: #{latent_guidance_forward.8} parent=5 // pred_fallthru
      _
    %p215 = scmp.le.s32.totalorder 1, %s13
    %p216 = scmp.lt.s32.totalorder %s13, 3
    %p217 = pnand %p215, %p216
    %p218 = pneg %p217
    // Predicated region
    $region37: #{latent_guidance_forward.8} parent=5 // pred_check
      _
    $region38: #{latent_guidance_forward.8} parent=5 // pred_check_branch
      %220 = sbr.rel (%p217) target = $region40
    $region39: #{latent_guidance_forward.8} parent=5 // pred_region
      %s221 = ssub.s32 %s13, 1
      %s222 = smul.u32 8, %s18
      %p223 = scmp.lt.s32.totalorder %s222, 15
      %s224 = scalar_select %p223, %s222, 15
      %s225 = smul.addr %s224, 4
      %s226 = scalar_lea.vmem %s0, %s225
      %p227 = pneg %p39
      %p228 = pneg %p36
      %p229 = pneg %p60
      %p230 = pneg %p57
      %p231 = pneg %p81
      %p232 = pneg %p78
      %p233 = pneg %p102
      %p234 = pneg %p99
      %p235 = pneg %p123
      %p236 = pneg %p120
      %p237 = pneg %p149
      %p238 = pneg %p146
      %s239 = smul.u32 8, %s18
      %p240 = scmp.lt.s32.totalorder %s239, 15
      %s241 = scalar_select %p240, %s239, 15
      %s242 = smul.addr %s241, 4
      %s243 = scalar_lea.vmem %s5, %s242
      %p244 = pneg %p175
      %p245 = pneg %p172
      %p246 = scmp.lt.s32.totalorder %s18, 1
      %s247 = scalar_select %p246, %s18, 1
      %s248 = smul.addr %s247, 8
      %s249 = scalar_lea.vmem %s6, %s248
      %s250 = smul.u32 8, %s18
      %p251 = scmp.lt.s32.totalorder %s250, 15
      %s252 = scalar_select %p251, %s250, 15
      %s253 = smul.addr %s252, 4
      %s254 = scalar_lea.vmem %s0, %s253
      %s255 = smul.u32 8, %s18
      %s256 = smul.u32 8, %s18
      %p257 = scmp.lt.s32.totalorder %s256, 15
      %s258 = scalar_select %p257, %s256, 15
      %s259 = smul.addr %s258, 4
      %s260 = scalar_lea.vmem %s5, %s259
      %s261 = smul.u32 8, %s18
      %p262 = scmp.lt.s32.totalorder %s18, 1
      %s263 = scalar_select %p262, %s18, 1
      %s264 = smul.addr %s263, 8
      %s265 = scalar_lea.vmem %s6, %s264
      %v267 = vld [vmem:[%s254] sm:$0xf]
      %v268 = vld [vmem:[%s254 + $0x4] sm:$0xf]
      %v269 = vld [vmem:[%s254 + $0x8] sm:$0xf]
      %v270 = vld [vmem:[%s254 + $0xc] sm:$0xf]
      %v271 = vld [vmem:[%s254 + $0x10] sm:$0xf]
      %v272 = vld [vmem:[%s254 + $0x14] sm:$0xf]
      %v273 = vld [vmem:[%s254 + $0x18] sm:$0xf]
      %v274 = vld [vmem:[%s254 + $0x1c] sm:$0xf]
      %v275 = vunpack.c.l.bf16 %v267
      %v276 = vunpack.c.l.bf16 %v268
      %v277 = vunpack.c.l.bf16 %v269
      %v278 = vunpack.c.l.bf16 %v270
      %v279 = vunpack.c.l.bf16 %v271
      %v280 = vunpack.c.l.bf16 %v272
      %v281 = vunpack.c.l.bf16 %v273
      %v282 = vunpack.c.l.bf16 %v274
      %v283 = vld [vmem:[%s1] sm:$0x1]
      %v285 = vlaneseq
      %v286 = vshrl.u32 %v285, 7
      %v287 = vsub.s32 0, %v286
      %v288 = vrot.slane %v283, %v287
      %v290 = vmul.f32 %v275, %v288
      %v291 = vmul.f32 %v276, %v288
      %v292 = vmul.f32 %v277, %v288
      %v293 = vmul.f32 %v278, %v288
      %v294 = vmul.f32 %v279, %v288
      %v295 = vmul.f32 %v280, %v288
      %v296 = vmul.f32 %v281, %v288
      %v297 = vmul.f32 %v282, %v288
      %v298 = vld [vmem:[%s2] sm:$0x1]
      %v300 = vlaneseq
      %v301 = vshrl.u32 %v300, 7
      %v302 = vsub.s32 0, %v301
      %v303 = vrot.slane %v298, %v302
      %v305 = vadd.f32 %v290, %v303
      %v306 = vadd.f32 %v291, %v303
      %v307 = vadd.f32 %v292, %v303
      %v308 = vadd.f32 %v293, %v303
      %v309 = vadd.f32 %v294, %v303
      %v310 = vadd.f32 %v295, %v303
      %v311 = vadd.f32 %v296, %v303
      %v312 = vadd.f32 %v297, %v303
      %v313 = vpack.c.bf16 %v306, %v305
      %v314 = vpack.c.bf16 %v308, %v307
      %v315 = vpack.c.bf16 %v310, %v309
      %v316 = vpack.c.bf16 %v312, %v311
      %v317 = vld [vmem:[%s3] sm:$0xf]
      %v318 = vld [vmem:[%s3 + $0x4] sm:$0xf]
      %v319 = vld [vmem:[%s3 + $0x8] sm:$0xf]
      %v320 = vld [vmem:[%s3 + $0xc] sm:$0xf]
      %v321 = vld [vmem:[%s3 + $0x10] sm:$0xf]
      %v322 = vld [vmem:[%s3 + $0x14] sm:$0xf]
      %v323 = vld [vmem:[%s3 + $0x18] sm:$0xf]
      %v324 = vld [vmem:[%s3 + $0x1c] sm:$0xf]
      %v325 = vld [vmem:[%s3 + $0x20] sm:$0xf]
      %v326 = vld [vmem:[%s3 + $0x24] sm:$0xf]
      %v327 = vld [vmem:[%s3 + $0x28] sm:$0xf]
      %v328 = vld [vmem:[%s3 + $0x2c] sm:$0xf]
      %v329 = vld [vmem:[%s3 + $0x30] sm:$0xf]
      %v330 = vld [vmem:[%s3 + $0x34] sm:$0xf]
      %v331 = vld [vmem:[%s3 + $0x38] sm:$0xf]
      %v332 = vld [vmem:[%s3 + $0x3c] sm:$0xf]
      %v333 = vld [vmem:[%s4] sm:$0x1]
      %v335 = vlaneseq
      %v336 = vshrl.u32 %v335, 7
      %v337 = vsub.s32 0, %v336
      %v338 = vrot.slane %v333, %v337
      %v356 = vunpack.c.l.b16 %v317
      %v357 = vunpack.c.l.b16 %v318
      %v358 = vunpack.c.l.b16 %v319
      %v359 = vunpack.c.l.b16 %v320
      %v360 = vunpack.c.l.b16 %v321
      %v361 = vunpack.c.l.b16 %v322
      %v362 = vunpack.c.l.b16 %v323
      %v363 = vunpack.c.l.b16 %v324
      %v364 = vunpack.c.l.b16 %v325
      %v365 = vunpack.c.l.b16 %v326
      %v366 = vunpack.c.l.b16 %v327
      %v367 = vunpack.c.l.b16 %v328
      %v368 = vunpack.c.l.b16 %v329
      %v369 = vunpack.c.l.b16 %v330
      %v370 = vunpack.c.l.b16 %v331
      %v371 = vunpack.c.l.b16 %v332
      %v372 = vpack.c.b16 %v357, %v356
      %v373 = vpack.c.b16 %v359, %v358
      %v374 = vpack.c.b16 %v361, %v360
      %v375 = vpack.c.b16 %v363, %v362
      %v376 = vpack.c.b16 %v365, %v364
      %v377 = vpack.c.b16 %v367, %v366
      %v378 = vpack.c.b16 %v369, %v368
      %v379 = vpack.c.b16 %v371, %v370
      %388 = vmatprep.subr.bf16.mxu0 0
      %389 = vmatpush1.bf16.msra.mxu0 %v379
      %390 = vmatprep.subr.bf16.mxu0 0
      %391 = vmatpush1.bf16.msra.mxu0 %v378
      %392 = vmatprep.subr.bf16.mxu0 0
      %393 = vmatpush1.bf16.msra.mxu0 %v377
      %394 = vmatprep.subr.bf16.mxu0 0
      %395 = vmatpush1.bf16.msra.mxu0 %v376
      %396 = vmatprep.subr.bf16.mxu0 0
      %397 = vmatpush1.bf16.msra.mxu0 %v375
      %398 = vmatprep.subr.bf16.mxu0 0
      %399 = vmatpush1.bf16.msra.mxu0 %v374
      %400 = vmatprep.subr.bf16.mxu0 0
      %401 = vmatpush1.bf16.msra.mxu0 %v373
      %402 = vmatprep.subr.bf16.mxu0 0
      %403 = vmatpush1.bf16.msra.mxu0 %v372
      %404 = vmatprep.subr.bf16.mxu0 0
      %405 = vmatpush2.bf16.msra.mxu0 0
      %406 = vmatprep.subr.bf16.mxu0 0
      %407 = vmatpush2.bf16.msra.mxu0 0
      %408 = vmatprep.subr.bf16.mxu0 0
      %409 = vmatpush2.bf16.msra.mxu0 0
      %410 = vmatprep.subr.bf16.mxu0 0
      %411 = vmatpush2.bf16.msra.mxu0 0
      %412 = vmatprep.subr.bf16.mxu0 0
      %413 = vmatpush2.bf16.msra.mxu0 0
      %414 = vmatprep.subr.bf16.mxu0 0
      %415 = vmatpush2.bf16.msra.mxu0 0
      %416 = vmatprep.subr.bf16.mxu0 0
      %417 = vmatpush2.bf16.msra.mxu0 0
      %418 = vmatprep.subr.bf16.mxu0 0
      %419 = vmatpush2.bf16.msra.mxu0 0
      %420 = vmatprep.mubr.bf16.mxu0 0
      %421 = vmatmul.mubr.bf16.gmra.mxu0 %v313
      %v422 = vpop.f32.mrf.mxu0
      %v423 = vadd.f32 %v338, %v422
      %v424 = vpop.f32.mrf.mxu0
      %v425 = vpop.f32.mrf.mxu0
      %v426 = vadd.f32 %v338, %v425
      %v427 = vpop.f32.mrf.mxu0
      %428 = vmatprep.mubr.bf16.mxu0 0
      %429 = vmatmul.mubr.bf16.gmra.mxu0 %v314
      %v430 = vpop.f32.mrf.mxu0
      %v431 = vadd.f32 %v338, %v430
      %v432 = vpop.f32.mrf.mxu0
      %v433 = vpop.f32.mrf.mxu0
      %v434 = vadd.f32 %v338, %v433
      %v435 = vpop.f32.mrf.mxu0
      %436 = vmatprep.mubr.bf16.mxu0 0
      %437 = vmatmul.mubr.bf16.gmra.mxu0 %v315
      %v438 = vpop.f32.mrf.mxu0
      %v439 = vadd.f32 %v338, %v438
      %v440 = vpop.f32.mrf.mxu0
      %v441 = vpop.f32.mrf.mxu0
      %v442 = vadd.f32 %v338, %v441
      %v443 = vpop.f32.mrf.mxu0
      %444 = vmatprep.mubr.bf16.mxu0 0
      %445 = vmatmul.mubr.bf16.gmra.mxu0 %v316
      %v446 = vpop.f32.mrf.mxu0
      %v447 = vadd.f32 %v338, %v446
      %v448 = vpop.f32.mrf.mxu0
      %v449 = vpop.f32.mrf.mxu0
      %v450 = vadd.f32 %v338, %v449
      %v451 = vpop.f32.mrf.mxu0
      %452 = vdwg.mxu0
      %v453 = vmax.f32 %v423, 0.0
      %v454 = vmax.f32 %v426, 0.0
      %v455 = vmax.f32 %v431, 0.0
      %v456 = vmax.f32 %v434, 0.0
      %v457 = vmax.f32 %v439, 0.0
      %v458 = vmax.f32 %v442, 0.0
      %v459 = vmax.f32 %v447, 0.0
      %v460 = vmax.f32 %v450, 0.0
      %v461 = vpack.c.bf16 %v454, %v453
      %v462 = vpack.c.bf16 %v456, %v455
      %v463 = vpack.c.bf16 %v458, %v457
      %v464 = vpack.c.bf16 %v460, %v459
      %v469 = vunpack.c.l.b16 %v461
      %v470 = vunpack.c.h.b16 %v461
      %v471 = vunpack.c.l.b16 %v462
      %v472 = vunpack.c.h.b16 %v462
      %v473 = vunpack.c.l.b16 %v463
      %v474 = vunpack.c.h.b16 %v463
      %v475 = vunpack.c.l.b16 %v464
      %v476 = vunpack.c.h.b16 %v464
      %v477 = vpack.c.b16 %v469, %v469
      %v478 = vpack.c.b16 %v470, %v470
      %v479 = vpack.c.b16 %v471, %v471
      %v480 = vpack.c.b16 %v472, %v472
      %v481 = vpack.c.b16 %v473, %v473
      %v482 = vpack.c.b16 %v474, %v474
      %v483 = vpack.c.b16 %v475, %v475
      %v484 = vpack.c.b16 %v476, %v476
      %vm493 = vcmask 519168
      %494 = vst.msk [vmem:[%s260] sm:$0xf] %vm493, %v477
      %495 = vst.msk [vmem:[%s260 + $0x4] sm:$0xf] %vm493, %v478
      %496 = vst.msk [vmem:[%s260 + $0x8] sm:$0xf] %vm493, %v479
      %497 = vst.msk [vmem:[%s260 + $0xc] sm:$0xf] %vm493, %v480
      %498 = vst.msk [vmem:[%s260 + $0x10] sm:$0xf] %vm493, %v481
      %499 = vst.msk [vmem:[%s260 + $0x14] sm:$0xf] %vm493, %v482
      %500 = vst.msk [vmem:[%s260 + $0x18] sm:$0xf] %vm493, %v483
      %501 = vst.msk [vmem:[%s260 + $0x1c] sm:$0xf] %vm493, %v484
      %vm502 = vcmask 523264
      %v503 = vsel %vm502, %v453, 0.0
      %v504 = vsel %vm502, %v454, 0.0
      %v505 = vadd.f32 %v503, %v504
      %v506 = vsel %vm502, %v455, 0.0
      %v507 = vadd.f32 %v505, %v506
      %v508 = vsel %vm502, %v456, 0.0
      %v509 = vadd.f32 %v507, %v508
      %v510 = vsel %vm502, %v457, 0.0
      %v511 = vadd.f32 %v509, %v510
      %v512 = vsel %vm502, %v458, 0.0
      %v513 = vadd.f32 %v511, %v512
      %v514 = vsel %vm502, %v459, 0.0
      %v515 = vadd.f32 %v513, %v514
      %v516 = vsel %vm502, %v460, 0.0
      %v517 = vadd.f32 %v515, %v516
      %v518 = vrot.slane %v517, 4
      %v519 = vadd.f32 %v517, %v518
      %v520 = vrot.slane %v519, 2
      %v521 = vadd.f32 %v519, %v520
      %v522 = vrot.slane %v521, 1
      %v523 = vadd.f32 %v521, %v522
      %v524 = vmul.f32 %v453, %v453
      %v525 = vmul.f32 %v454, %v454
      %v526 = vmul.f32 %v455, %v455
      %v527 = vmul.f32 %v456, %v456
      %v528 = vmul.f32 %v457, %v457
      %v529 = vmul.f32 %v458, %v458
      %v530 = vmul.f32 %v459, %v459
      %v531 = vmul.f32 %v460, %v460
      %v532 = vsel %vm502, %v524, 0.0
      %v533 = vsel %vm502, %v525, 0.0
      %v534 = vadd.f32 %v532, %v533
      %v535 = vsel %vm502, %v526, 0.0
      %v536 = vadd.f32 %v534, %v535
      %v537 = vsel %vm502, %v527, 0.0
      %v538 = vadd.f32 %v536, %v537
      %v539 = vsel %vm502, %v528, 0.0
      %v540 = vadd.f32 %v538, %v539
      %v541 = vsel %vm502, %v529, 0.0
      %v542 = vadd.f32 %v540, %v541
      %v543 = vsel %vm502, %v530, 0.0
      %v544 = vadd.f32 %v542, %v543
      %v545 = vsel %vm502, %v531, 0.0
      %v546 = vadd.f32 %v544, %v545
      %v547 = vrot.slane %v546, 4
      %v548 = vadd.f32 %v546, %v547
      %v549 = vrot.slane %v548, 2
      %v550 = vadd.f32 %v548, %v549
      %v551 = vrot.slane %v550, 1
      %v552 = vadd.f32 %v550, %v551
      %v553 = vlaneseq
      %v554 = vshrl.u32 %v553, 7
      %vm555 = vcmp.eq.s32.totalorder %v554, 0
      %vm556 = vcmp.eq.s32.totalorder %v554, 1
      %v557 = vsel %vm556, %v552, 0.0
      %v558 = vsel %vm555, %v523, %v557
      %559 = vst.msk [vmem:[%s265] sm:$0xff] %vm502, %v558
      %s560 = smul.u32 8, %s18
      %p561 = scmp.lt.s32.totalorder %s560, 15
      %s562 = scalar_select %p561, %s560, 15
      %s563 = smul.addr %s562, 4
      %s564 = scalar_lea.vmem %s5, %s563
      %p565 = scmp.lt.s32.totalorder %s18, 1
      %s566 = scalar_select %p565, %s18, 1
      %s567 = smul.addr %s566, 8
      %s568 = scalar_lea.vmem %s6, %s567
      // Predicated region
      $region41: #{latent_guidance_forward.8} parent=39 // pred_check
        %p569 = pneg %p146
      $region42: #{latent_guidance_forward.8} parent=39 // pred_check_branch
        %571 = sbr.rel (%p569) target = $region44
      $region43: #{latent_guidance_forward.8} parent=39 // pred_region
        %s572 = smul.u32 8, %s18
      $region44: #{latent_guidance_forward.8} parent=39 // pred_fallthru
        _
      // Predicated region
      $region45: #{latent_guidance_forward.8} parent=39 // pred_check
        %p573 = pneg %p172
      $region46: #{latent_guidance_forward.8} parent=39 // pred_check_branch
        %575 = sbr.rel (%p573) target = $region48
      $region47: #{latent_guidance_forward.8} parent=39 // pred_region
        _
      $region48: #{latent_guidance_forward.8} parent=39 // pred_fallthru
        _
    $region40: #{latent_guidance_forward.8} parent=5 // pred_fallthru
      _
    %p576 = scmp.le.s32.totalorder 2, %s13
    // Predicated region
    $region49: #{latent_guidance_forward.8} parent=5 // pred_check
      %p577 = pneg %p576
    $region50: #{latent_guidance_forward.8} parent=5 // pred_check_branch
      %579 = sbr.rel (%p577) target = $region52
    $region51: #{latent_guidance_forward.8} parent=5 // pred_region
      %s580 = ssub.s32 %s13, 2
      // Predicated region
      $region53: #{latent_guidance_forward.8} parent=51 // pred_check
        %p581 = pneg %p152
      $region54: #{latent_guidance_forward.8} parent=51 // pred_check_branch
        %583 = sbr.rel (%p581) target = $region56
      $region55: #{latent_guidance_forward.8} parent=51 // pred_region
        %s584 = smul.u32 8, %s19
        %p585 = scmp.lt.s32.totalorder %s584, 15
        %s586 = scalar_select %p585, %s584, 15
        %s587 = smul.addr %s586, 4
        %s588 = scalar_lea.vmem %s5, %s587
      $region56: #{latent_guidance_forward.8} parent=51 // pred_fallthru
        _
      // Predicated region
      $region57: #{latent_guidance_forward.8} parent=51 // pred_check
        %p589 = pneg %p178
      $region58: #{latent_guidance_forward.8} parent=51 // pred_check_branch
        %591 = sbr.rel (%p589) target = $region60
      $region59: #{latent_guidance_forward.8} parent=51 // pred_region
        %p592 = scmp.lt.s32.totalorder %s19, 1
        %s593 = scalar_select %p592, %s19, 1
        %s594 = smul.addr %s593, 8
        %s595 = scalar_lea.vmem %s6, %s594
      $region60: #{latent_guidance_forward.8} parent=51 // pred_fallthru
        _
    $region52: #{latent_guidance_forward.8} parent=5 // pred_fallthru
      _
  $region6: #{latent_guidance_forward.8} parent=0 // loop_footer
    %s17 = sadd.s32 1, %s13
  $region7: #{latent_guidance_forward.8} parent=0 // loop_footer_branch
    %12 = sbr.rel target = $region3
  $region8: #{latent_guidance_forward.8} parent=0 // loop_exit
    _

</llo_original>
